<compile_context>
chip_gen: v7x
topology: tpu7x:2x2x1
jax: 0.10.0
libtpu: 0.0.40
codegen_flags: <defaults>
</compile_context>

<pallas_src>
import functools
import math

import jax
import jax.numpy as jnp
from jax.experimental import pallas as pl
from jax.experimental.pallas import tpu as pltpu


_HP = jax.lax.Precision.HIGHEST


def _dot(a, b):
    return jnp.dot(a, b, preferred_element_type=jnp.float32, precision=_HP)


def _bond2atom_kernel(x_ref, bond_ref, battn_ref, src_ref, dst_ref, dstr_ref,
                      wkq_ref, wv_ref, wdis_ref, r_ref, rt_ref,
                      wbhe_ref, wbx_ref, w1_ref, b1_ref, w2_ref, o_ref):
    # x:(N,C) bond:(E,C) battn:(E,1) src/dst:(E,1) int32, dstr:(1,E) int32
    # wkq:(C,2C) wv:(C,C) wdis:(1,H) R:(C,H) (scale folded) RT:(H,C)
    # wbhe/wbx:(1,C) w1:(C,2C) (LN affine folded) b1:(1,2C) w2:(2C,C) out:(N,C)
    x = x_ref[...]
    bond = bond_ref[...]
    N, C = x.shape
    E = bond.shape[0]
    f32 = jnp.float32

    # TODO(synk): feat_drop / attn_drop are identity here (inference); use
    # pltpu.prng_random_bits-based masks to support training-mode dropout.

    # --- build graph one-hot operators in-VMEM from index vectors (VPU).
    node_iota_en = jax.lax.broadcasted_iota(jnp.int32, (E, N), 1)
    S = (src_ref[...] == node_iota_en).astype(f32)          # (E, N)
    D = (dst_ref[...] == node_iota_en).astype(f32)          # (E, N)
    node_iota_ne = jax.lax.broadcasted_iota(jnp.int32, (N, E), 0)
    DT = (dstr_ref[...] == node_iota_ne).astype(f32)        # (N, E)

    # --- fused K/Q projection on node features, V projection on bond features.
    kq = _dot(x, wkq_ref[...])                              # (N, 2C)
    k = kq[:, :C]
    q = kq[:, C:]
    v_e = _dot(bond, wv_ref[...])                           # (E, C)

    # --- gather k[src] / q[dst] via one-hot matmuls (MXU).
    k_src = _dot(S, k)                                      # (E, C)
    q_dst = _dot(D, q)                                      # (E, C)

    # --- per-head dot product via block-diagonal head-reduce matrix
    #     (1/sqrt(F) already folded into R).
    att = _dot(k_src * q_dst, r_ref[...])                   # (E, H)

    # --- distance decay: Linear(1 -> H, no bias) is an outer-product broadcast.
    logits = att + battn_ref[...] * wdis_ref[...]           # (E, H)

    # --- edge softmax grouped by destination node.
    # Softmax is shift-invariant per segment, so a global per-head max is a
    # valid (and cheap) stabilizer.
    logits = logits - jnp.max(logits, axis=0, keepdims=True)
    ex = jnp.exp(logits)                                    # (E, H)
    denom = _dot(DT, ex)                                    # (N, H) per-dst sums
    denom_e = _dot(D, denom)                                # (E, H) gathered back
    alpha = ex / denom_e                                    # (E, H)

    # --- weighted message aggregation into destination nodes.
    alpha_full = _dot(alpha, rt_ref[...])                   # (E, C) head broadcast
    ft = _dot(DT, v_e * alpha_full)                         # (N, C)  == he

    # --- beta gate: sigmoid(lin_beta([he, x, he - x])) with folded weights.
    beta_logit = jnp.sum(ft * wbhe_ref[...] + x * wbx_ref[...],
                         axis=-1, keepdims=True)            # (N, 1)
    beta = 1.0 / (1.0 + jnp.exp(-beta_logit))
    he = ft + beta * (x - ft)                               # = beta*x + (1-beta)*ft

    # --- PoswiseFeedForwardNet (LN1 affine folded into w1/b1).
    eps = 1e-5
    mu = jnp.mean(he, axis=-1, keepdims=True)
    var = jnp.mean((he - mu) ** 2, axis=-1, keepdims=True)
    zn = (he - mu) * jax.lax.rsqrt(var + eps)               # (N, C), no affine
    h1 = jnp.maximum(_dot(zn, w1_ref[...]) + b1_ref[...], 0.0)   # (N, 2C)
    y = _dot(h1, w2_ref[...]) + he                          # (N, C) + residual
    mu2 = jnp.mean(y, axis=-1, keepdims=True)
    var2 = jnp.mean((y - mu2) ** 2, axis=-1, keepdims=True)
    # Final LayerNorm is freshly constructed in PyTorch -> gamma=1, beta=0.
    o_ref[...] = ((y - mu2) * jax.lax.rsqrt(var2 + eps)).astype(o_ref.dtype)


def bond2atom_forward(src, dst, bond_embedding, node_embedding, basic_attn,
                      params, num_head):
    """Pallas forward for Bond2AtomLayer (inference).

    src, dst:        (E,) int32 edge endpoints (messages flow src -> dst)
    bond_embedding:  (E, C), node_embedding: (N, C), basic_attn: (E, 1)
    params:          PyTorch-layout weights (Linear stores (out, in)).
    """
    E, C = bond_embedding.shape
    N = node_embedding.shape[0]
    F = C // num_head
    f32 = jnp.float32

    # Graph structure as raw index vectors; one-hot operators are built
    # inside the kernel (saves 3 dense (E,N) f32 arrays of HBM traffic).
    src_col = src.astype(jnp.int32).reshape(E, 1)
    dst_col = dst.astype(jnp.int32).reshape(E, 1)
    dst_row = dst.astype(jnp.int32).reshape(1, E)

    # Block-diagonal head-reduce / head-broadcast matrices (scale folded in R).
    head_of_col = jnp.arange(C) // F
    R = jax.nn.one_hot(head_of_col, num_head, dtype=f32) / math.sqrt(F)  # (C, H)
    RT = jax.nn.one_hot(head_of_col, num_head, dtype=f32).T              # (H, C)

    # Fold / pre-transpose weights.
    wkq = jnp.concatenate([params["Wk"].T, params["Wq"].T], axis=1)      # (C, 2C)
    wv = params["Wv"].T                                                  # (C, C)
    wdis = params["Wdis"].T.astype(f32)                                  # (1, H)
    wb = params["Wbeta"]                                                 # (1, 3C)
    wb_he = wb[:, :C] + wb[:, 2 * C:]                                    # (1, C)
    wb_x = wb[:, C:2 * C] - wb[:, 2 * C:]                                # (1, C)
    w1 = params["W1"].T                                                  # (C, 2C)
    # Fold LayerNorm1 affine: (zn*g + b) @ W1 == zn @ (g[:,None]*W1) + b @ W1
    w1p = params["ln_g"].reshape(C, 1) * w1                              # (C, 2C)
    b1 = jnp.dot(params["ln_b"].reshape(1, C), w1, precision=_HP)        # (1, 2C)
    w2 = params["W2"].T                                                  # (2C, C)

    vmem = pl.BlockSpec(memory_space=pltpu.MemorySpace.VMEM)
    return pl.pallas_call(
        _bond2atom_kernel,
        out_shape=jax.ShapeDtypeStruct((N, C), f32),
        in_specs=[vmem] * 16,
        out_specs=vmem,
    )(node_embedding.astype(f32), bond_embedding.astype(f32),
      basic_attn.astype(f32), src_col, dst_col, dst_row,
      wkq, wv, wdis, R, RT, wb_he, wb_x, w1p, b1, w2)


def _layer_norm(x, gamma, beta, eps=1e-5):
    mu = jnp.mean(x, axis=-1, keepdims=True)
    var = jnp.mean((x - mu) ** 2, axis=-1, keepdims=True)
    return (x - mu) / jnp.sqrt(var + eps) * gamma + beta


def bond2atom_ref(src, dst, bond_embedding, node_embedding, basic_attn,
                  params, num_head):
    """Pure-JAX reference mirroring the PyTorch forward (eval mode)."""
    N, C = node_embedding.shape
    E = bond_embedding.shape[0]
    F = C // num_head

    v_e = jnp.dot(bond_embedding, params["Wv"].T, precision=_HP)
    k = jnp.dot(node_embedding, params["Wk"].T, precision=_HP).reshape(N, num_head, F)
    q = jnp.dot(node_embedding, params["Wq"].T, precision=_HP).reshape(N, num_head, F)
    att = jnp.sum(k[src] * q[dst], axis=-1)                            # (E, H)
    dist_decay = jnp.dot(basic_attn, params["Wdis"].T, precision=_HP)  # (E, H)
    logits = att / jnp.sqrt(jnp.float32(F)) + dist_decay

    seg_max = jax.ops.segment_max(logits, dst, num_segments=N)
    ex = jnp.exp(logits - seg_max[dst])
    denom = jax.ops.segment_sum(ex, dst, num_segments=N)
    alpha = ex / denom[dst]                                            # (E, H)

    m = v_e.reshape(E, num_head, F) * alpha[:, :, None]
    he = jax.ops.segment_sum(m.reshape(E, C), dst, num_segments=N)     # (N, C)

    x = node_embedding
    beta = jax.nn.sigmoid(
        jnp.dot(jnp.concatenate([he, x, he - x], axis=-1),
                params["Wbeta"].T, precision=_HP))
    he = beta * x + (1.0 - beta) * he

    resid = he
    z = _layer_norm(he, params["ln_g"], params["ln_b"])
    h1 = jax.nn.relu(jnp.dot(z, params["W1"].T, precision=_HP))
    out = jnp.dot(h1, params["W2"].T, precision=_HP)
    return _layer_norm(out + resid, jnp.ones((C,), jnp.float32),
                       jnp.zeros((C,), jnp.float32))


if __name__ == "__main__":
    node_dim, num_head = 32, 4            # out_feat = 8
    n_nodes, n_edges = 8, 16

    key = jax.random.PRNGKey(0)
    ks = jax.random.split(key, 12)

    node_emb = jax.random.normal(ks[0], (n_nodes, node_dim), jnp.float32)
    bond_emb = jax.random.normal(ks[1], (n_edges, node_dim), jnp.float32)
    basic_attn = jax.random.uniform(ks[2], (n_edges, 1), jnp.float32)

    # Small directed graph: every node has exactly two incoming bonds.
    src = jnp.array([0, 1, 2, 3, 4, 5, 6, 7, 1, 2, 3, 4, 5, 6, 7, 0], jnp.int32)
    dst = jnp.array([1, 2, 3, 4, 5, 6, 7, 0, 0, 1, 2, 3, 4, 5, 6, 7], jnp.int32)

    def uni(k, shape, fan_in):
        b = 1.0 / math.sqrt(fan_in)
        return jax.random.uniform(k, shape, jnp.float32, -b, b)

    params = {
        "Wk": uni(ks[3], (node_dim, node_dim), node_dim),
        "Wq": uni(ks[4], (node_dim, node_dim), node_dim),
        "Wv": uni(ks[5], (node_dim, node_dim), node_dim),
        "Wdis": uni(ks[6], (num_head, 1), 1),
        "Wbeta": uni(ks[7], (1, 3 * node_dim), 3 * node_dim),
        "ln_g": 1.0 + 0.1 * jax.random.normal(ks[8], (node_dim,), jnp.float32),
        "ln_b": 0.1 * jax.random.normal(ks[9], (node_dim,), jnp.float32),
        "W1": uni(ks[10], (2 * node_dim, node_dim), node_dim),
        "W2": uni(ks[11], (node_dim, 2 * node_dim), 2 * node_dim),
    }

    out = bond2atom_forward(src, dst, bond_emb, node_emb, basic_attn,
                            params, num_head)
    out = jax.block_until_ready(out)

    ref = bond2atom_ref(src, dst, bond_emb, node_emb, basic_attn,
                        params, num_head)
    assert out.shape == (n_nodes, node_dim)
    err = float(jnp.max(jnp.abs(out - ref)))
    assert jnp.allclose(out, ref, atol=1e-4, rtol=1e-4), f"max |err| = {err}"
    print("KERNEL_OK")
</pallas_src>

<mosaic_0001>
module attributes {stable_mosaic.version = 11 : i64} {
  func.func @_bond2atom_kernel(%arg0: memref<8x32xf32, #tpu.memory_space<vmem>>, %arg1: memref<16x32xf32, #tpu.memory_space<vmem>>, %arg2: memref<16x1xf32, #tpu.memory_space<vmem>>, %arg3: memref<16x1xi32, #tpu.memory_space<vmem>>, %arg4: memref<16x1xi32, #tpu.memory_space<vmem>>, %arg5: memref<1x16xi32, #tpu.memory_space<vmem>>, %arg6: memref<32x64xf32, #tpu.memory_space<vmem>>, %arg7: memref<32x32xf32, #tpu.memory_space<vmem>>, %arg8: memref<1x4xf32, #tpu.memory_space<vmem>>, %arg9: memref<32x4xf32, #tpu.memory_space<vmem>>, %arg10: memref<4x32xf32, #tpu.memory_space<vmem>>, %arg11: memref<1x32xf32, #tpu.memory_space<vmem>>, %arg12: memref<1x32xf32, #tpu.memory_space<vmem>>, %arg13: memref<32x64xf32, #tpu.memory_space<vmem>>, %arg14: memref<1x64xf32, #tpu.memory_space<vmem>>, %arg15: memref<64x32xf32, #tpu.memory_space<vmem>>, %arg16: memref<8x32xf32, #tpu.memory_space<vmem>>) attributes {dimension_semantics = [], scalar_prefetch = 0 : i64, scratch_operands = 0 : i64, tpu.core_type = #tpu.core_type<tc>} {
    %c0 = arith.constant 0 : index
    %c0_0 = arith.constant 0 : index
    %0 = vector.load %arg0[%c0, %c0_0] : memref<8x32xf32, #tpu.memory_space<vmem>>, vector<8x32xf32>
    %c0_1 = arith.constant 0 : index
    %c0_2 = arith.constant 0 : index
    %1 = vector.load %arg1[%c0_1, %c0_2] : memref<16x32xf32, #tpu.memory_space<vmem>>, vector<16x32xf32>
    %2 = tpu.iota {dimensions = array<i32: 1>} : vector<16x8xi32>
    %c0_3 = arith.constant 0 : index
    %c0_4 = arith.constant 0 : index
    %3 = vector.load %arg3[%c0_3, %c0_4] : memref<16x1xi32, #tpu.memory_space<vmem>>, vector<16x1xi32>
    %4 = vector.broadcast %3 : vector<16x1xi32> to vector<16x8xi32>
    %5 = arith.cmpi eq, %4, %2 : vector<16x8xi32>
    %6 = arith.extui %5 : vector<16x8xi1> to vector<16x8xi32>
    %7 = arith.sitofp %6 : vector<16x8xi32> to vector<16x8xf32>
    %c0_5 = arith.constant 0 : index
    %c0_6 = arith.constant 0 : index
    %8 = vector.load %arg4[%c0_5, %c0_6] : memref<16x1xi32, #tpu.memory_space<vmem>>, vector<16x1xi32>
    %9 = vector.broadcast %8 : vector<16x1xi32> to vector<16x8xi32>
    %10 = arith.cmpi eq, %9, %2 : vector<16x8xi32>
    %11 = arith.extui %10 : vector<16x8xi1> to vector<16x8xi32>
    %12 = arith.sitofp %11 : vector<16x8xi32> to vector<16x8xf32>
    %13 = tpu.iota {dimensions = array<i32: 0>} : vector<8x16xi32>
    %c0_7 = arith.constant 0 : index
    %c0_8 = arith.constant 0 : index
    %14 = vector.load %arg5[%c0_7, %c0_8] : memref<1x16xi32, #tpu.memory_space<vmem>>, vector<1x16xi32>
    %15 = vector.broadcast %14 : vector<1x16xi32> to vector<8x16xi32>
    %16 = arith.cmpi eq, %15, %13 : vector<8x16xi32>
    %17 = arith.extui %16 : vector<8x16xi1> to vector<8x16xi32>
    %18 = arith.sitofp %17 : vector<8x16xi32> to vector<8x16xf32>
    %c0_9 = arith.constant 0 : index
    %c0_10 = arith.constant 0 : index
    %19 = vector.load %arg6[%c0_9, %c0_10] : memref<32x64xf32, #tpu.memory_space<vmem>>, vector<32x64xf32>
    %cst = arith.constant dense<0.000000e+00> : vector<8x64xf32>
    %20 = tpu.matmul %0, %19, %cst {dimension_numbers = #tpu.dot_dimension_numbers<[1], [0], [0], [1], [0, 0, 1, 1], [], []>, precision = #tpu.contract_precision<fp32>} : vector<8x32xf32>, vector<32x64xf32>, vector<8x64xf32> -> vector<8x64xf32>
    %21 = vector.extract_strided_slice %20 {offsets = [0, 0], sizes = [8, 32], strides = [1, 1]} : vector<8x64xf32> to vector<8x32xf32>
    %22 = vector.extract_strided_slice %20 {offsets = [0, 32], sizes = [8, 32], strides = [1, 1]} : vector<8x64xf32> to vector<8x32xf32>
    %c0_11 = arith.constant 0 : index
    %c0_12 = arith.constant 0 : index
    %23 = vector.load %arg7[%c0_11, %c0_12] : memref<32x32xf32, #tpu.memory_space<vmem>>, vector<32x32xf32>
    %cst_13 = arith.constant dense<0.000000e+00> : vector<16x32xf32>
    %24 = tpu.matmul %1, %23, %cst_13 {dimension_numbers = #tpu.dot_dimension_numbers<[1], [0], [0], [1], [0, 0, 1, 1], [], []>, precision = #tpu.contract_precision<fp32>} : vector<16x32xf32>, vector<32x32xf32>, vector<16x32xf32> -> vector<16x32xf32>
    %cst_14 = arith.constant dense<0.000000e+00> : vector<16x32xf32>
    %25 = tpu.matmul %7, %21, %cst_14 {dimension_numbers = #tpu.dot_dimension_numbers<[1], [0], [0], [1], [0, 0, 1, 1], [], []>, precision = #tpu.contract_precision<fp32>} : vector<16x8xf32>, vector<8x32xf32>, vector<16x32xf32> -> vector<16x32xf32>
    %cst_15 = arith.constant dense<0.000000e+00> : vector<16x32xf32>
    %26 = tpu.matmul %12, %22, %cst_15 {dimension_numbers = #tpu.dot_dimension_numbers<[1], [0], [0], [1], [0, 0, 1, 1], [], []>, precision = #tpu.contract_precision<fp32>} : vector<16x8xf32>, vector<8x32xf32>, vector<16x32xf32> -> vector<16x32xf32>
    %27 = arith.mulf %25, %26 : vector<16x32xf32>
    %c0_16 = arith.constant 0 : index
    %c0_17 = arith.constant 0 : index
    %28 = vector.load %arg9[%c0_16, %c0_17] : memref<32x4xf32, #tpu.memory_space<vmem>>, vector<32x4xf32>
    %cst_18 = arith.constant dense<0.000000e+00> : vector<16x4xf32>
    %29 = tpu.matmul %27, %28, %cst_18 {dimension_numbers = #tpu.dot_dimension_numbers<[1], [0], [0], [1], [0, 0, 1, 1], [], []>, precision = #tpu.contract_precision<fp32>} : vector<16x32xf32>, vector<32x4xf32>, vector<16x4xf32> -> vector<16x4xf32>
    %c0_19 = arith.constant 0 : index
    %c0_20 = arith.constant 0 : index
    %30 = vector.load %arg2[%c0_19, %c0_20] : memref<16x1xf32, #tpu.memory_space<vmem>>, vector<16x1xf32>
    %c0_21 = arith.constant 0 : index
    %c0_22 = arith.constant 0 : index
    %31 = vector.load %arg8[%c0_21, %c0_22] : memref<1x4xf32, #tpu.memory_space<vmem>>, vector<1x4xf32>
    %32 = vector.broadcast %30 : vector<16x1xf32> to vector<16x4xf32>
    %33 = vector.broadcast %31 : vector<1x4xf32> to vector<16x4xf32>
    %34 = arith.mulf %32, %33 : vector<16x4xf32>
    %35 = arith.addf %29, %34 : vector<16x4xf32>
    %cst_23 = arith.constant dense<0xFF800000> : vector<4xf32>
    %36 = vector.multi_reduction <maximumf>, %35, %cst_23 [0] : vector<16x4xf32> to vector<4xf32>
    %37 = vector.shape_cast %36 : vector<4xf32> to vector<1x4xf32>
    %38 = vector.broadcast %37 : vector<1x4xf32> to vector<16x4xf32>
    %39 = arith.subf %35, %38 : vector<16x4xf32>
    %40 = math.exp %39 : vector<16x4xf32>
    %cst_24 = arith.constant dense<0.000000e+00> : vector<8x4xf32>
    %41 = tpu.matmul %18, %40, %cst_24 {dimension_numbers = #tpu.dot_dimension_numbers<[1], [0], [0], [1], [0, 0, 1, 1], [], []>, precision = #tpu.contract_precision<fp32>} : vector<8x16xf32>, vector<16x4xf32>, vector<8x4xf32> -> vector<8x4xf32>
    %cst_25 = arith.constant dense<0.000000e+00> : vector<16x4xf32>
    %42 = tpu.matmul %12, %41, %cst_25 {dimension_numbers = #tpu.dot_dimension_numbers<[1], [0], [0], [1], [0, 0, 1, 1], [], []>, precision = #tpu.contract_precision<fp32>} : vector<16x8xf32>, vector<8x4xf32>, vector<16x4xf32> -> vector<16x4xf32>
    %43 = arith.divf %40, %42 : vector<16x4xf32>
    %c0_26 = arith.constant 0 : index
    %c0_27 = arith.constant 0 : index
    %44 = vector.load %arg10[%c0_26, %c0_27] : memref<4x32xf32, #tpu.memory_space<vmem>>, vector<4x32xf32>
    %cst_28 = arith.constant dense<0.000000e+00> : vector<16x32xf32>
    %45 = tpu.matmul %43, %44, %cst_28 {dimension_numbers = #tpu.dot_dimension_numbers<[1], [0], [0], [1], [0, 0, 1, 1], [], []>, precision = #tpu.contract_precision<fp32>} : vector<16x4xf32>, vector<4x32xf32>, vector<16x32xf32> -> vector<16x32xf32>
    %46 = arith.mulf %24, %45 : vector<16x32xf32>
    %cst_29 = arith.constant dense<0.000000e+00> : vector<8x32xf32>
    %47 = tpu.matmul %18, %46, %cst_29 {dimension_numbers = #tpu.dot_dimension_numbers<[1], [0], [0], [1], [0, 0, 1, 1], [], []>, precision = #tpu.contract_precision<fp32>} : vector<8x16xf32>, vector<16x32xf32>, vector<8x32xf32> -> vector<8x32xf32>
    %c0_30 = arith.constant 0 : index
    %c0_31 = arith.constant 0 : index
    %48 = vector.load %arg11[%c0_30, %c0_31] : memref<1x32xf32, #tpu.memory_space<vmem>>, vector<1x32xf32>
    %49 = vector.broadcast %48 : vector<1x32xf32> to vector<8x32xf32>
    %50 = arith.mulf %47, %49 : vector<8x32xf32>
    %c0_32 = arith.constant 0 : index
    %c0_33 = arith.constant 0 : index
    %51 = vector.load %arg12[%c0_32, %c0_33] : memref<1x32xf32, #tpu.memory_space<vmem>>, vector<1x32xf32>
    %52 = vector.broadcast %51 : vector<1x32xf32> to vector<8x32xf32>
    %53 = arith.mulf %0, %52 : vector<8x32xf32>
    %54 = arith.addf %50, %53 : vector<8x32xf32>
    %cst_34 = arith.constant dense<0.000000e+00> : vector<8xf32>
    %55 = vector.multi_reduction <add>, %54, %cst_34 [1] : vector<8x32xf32> to vector<8xf32>
    %56 = vector.shape_cast %55 : vector<8xf32> to vector<8x1xf32>
    %cst_35 = arith.constant 0.000000e+00 : f32
    %57 = vector.broadcast %cst_35 : f32 to vector<8x1xf32>
    %58 = arith.subf %57, %56 : vector<8x1xf32>
    %59 = math.exp %58 : vector<8x1xf32>
    %cst_36 = arith.constant 1.000000e+00 : f32
    %60 = vector.broadcast %cst_36 : f32 to vector<8x1xf32>
    %61 = arith.addf %60, %59 : vector<8x1xf32>
    %cst_37 = arith.constant 1.000000e+00 : f32
    %62 = vector.broadcast %cst_37 : f32 to vector<8x1xf32>
    %63 = arith.divf %62, %61 : vector<8x1xf32>
    %64 = arith.subf %0, %47 : vector<8x32xf32>
    %65 = vector.broadcast %63 : vector<8x1xf32> to vector<8x32xf32>
    %66 = arith.mulf %65, %64 : vector<8x32xf32>
    %67 = arith.addf %47, %66 : vector<8x32xf32>
    %cst_38 = arith.constant dense<0.000000e+00> : vector<8xf32>
    %68 = vector.multi_reduction <add>, %67, %cst_38 [1] : vector<8x32xf32> to vector<8xf32>
    %69 = vector.shape_cast %68 : vector<8xf32> to vector<8x1xf32>
    %cst_39 = arith.constant 3.200000e+01 : f32
    %70 = vector.broadcast %cst_39 : f32 to vector<8x1xf32>
    %71 = arith.divf %69, %70 : vector<8x1xf32>
    %72 = vector.broadcast %71 : vector<8x1xf32> to vector<8x32xf32>
    %73 = arith.subf %67, %72 : vector<8x32xf32>
    %74 = arith.mulf %73, %73 : vector<8x32xf32>
    %cst_40 = arith.constant dense<0.000000e+00> : vector<8xf32>
    %75 = vector.multi_reduction <add>, %74, %cst_40 [1] : vector<8x32xf32> to vector<8xf32>
    %76 = vector.shape_cast %75 : vector<8xf32> to vector<8x1xf32>
    %cst_41 = arith.constant 3.200000e+01 : f32
    %77 = vector.broadcast %cst_41 : f32 to vector<8x1xf32>
    %78 = arith.divf %76, %77 : vector<8x1xf32>
    %79 = vector.broadcast %71 : vector<8x1xf32> to vector<8x32xf32>
    %80 = arith.subf %67, %79 : vector<8x32xf32>
    %cst_42 = arith.constant 9.99999974E-6 : f32
    %81 = vector.broadcast %cst_42 : f32 to vector<8x1xf32>
    %82 = arith.addf %78, %81 : vector<8x1xf32>
    %83 = math.rsqrt %82 : vector<8x1xf32>
    %84 = vector.broadcast %83 : vector<8x1xf32> to vector<8x32xf32>
    %85 = arith.mulf %80, %84 : vector<8x32xf32>
    %c0_43 = arith.constant 0 : index
    %c0_44 = arith.constant 0 : index
    %86 = vector.load %arg13[%c0_43, %c0_44] : memref<32x64xf32, #tpu.memory_space<vmem>>, vector<32x64xf32>
    %cst_45 = arith.constant dense<0.000000e+00> : vector<8x64xf32>
    %87 = tpu.matmul %85, %86, %cst_45 {dimension_numbers = #tpu.dot_dimension_numbers<[1], [0], [0], [1], [0, 0, 1, 1], [], []>, precision = #tpu.contract_precision<fp32>} : vector<8x32xf32>, vector<32x64xf32>, vector<8x64xf32> -> vector<8x64xf32>
    %c0_46 = arith.constant 0 : index
    %c0_47 = arith.constant 0 : index
    %88 = vector.load %arg14[%c0_46, %c0_47] : memref<1x64xf32, #tpu.memory_space<vmem>>, vector<1x64xf32>
    %89 = vector.broadcast %88 : vector<1x64xf32> to vector<8x64xf32>
    %90 = arith.addf %87, %89 : vector<8x64xf32>
    %cst_48 = arith.constant 0.000000e+00 : f32
    %91 = vector.broadcast %cst_48 : f32 to vector<8x64xf32>
    %92 = arith.maximumf %90, %91 : vector<8x64xf32>
    %c0_49 = arith.constant 0 : index
    %c0_50 = arith.constant 0 : index
    %93 = vector.load %arg15[%c0_49, %c0_50] : memref<64x32xf32, #tpu.memory_space<vmem>>, vector<64x32xf32>
    %cst_51 = arith.constant dense<0.000000e+00> : vector<8x32xf32>
    %94 = tpu.matmul %92, %93, %cst_51 {dimension_numbers = #tpu.dot_dimension_numbers<[1], [0], [0], [1], [0, 0, 1, 1], [], []>, precision = #tpu.contract_precision<fp32>} : vector<8x64xf32>, vector<64x32xf32>, vector<8x32xf32> -> vector<8x32xf32>
    %95 = arith.addf %94, %67 : vector<8x32xf32>
    %cst_52 = arith.constant dense<0.000000e+00> : vector<8xf32>
    %96 = vector.multi_reduction <add>, %95, %cst_52 [1] : vector<8x32xf32> to vector<8xf32>
    %97 = vector.shape_cast %96 : vector<8xf32> to vector<8x1xf32>
    %cst_53 = arith.constant 3.200000e+01 : f32
    %98 = vector.broadcast %cst_53 : f32 to vector<8x1xf32>
    %99 = arith.divf %97, %98 : vector<8x1xf32>
    %100 = vector.broadcast %99 : vector<8x1xf32> to vector<8x32xf32>
    %101 = arith.subf %95, %100 : vector<8x32xf32>
    %102 = arith.mulf %101, %101 : vector<8x32xf32>
    %cst_54 = arith.constant dense<0.000000e+00> : vector<8xf32>
    %103 = vector.multi_reduction <add>, %102, %cst_54 [1] : vector<8x32xf32> to vector<8xf32>
    %104 = vector.shape_cast %103 : vector<8xf32> to vector<8x1xf32>
    %cst_55 = arith.constant 3.200000e+01 : f32
    %105 = vector.broadcast %cst_55 : f32 to vector<8x1xf32>
    %106 = arith.divf %104, %105 : vector<8x1xf32>
    %107 = vector.broadcast %99 : vector<8x1xf32> to vector<8x32xf32>
    %108 = arith.subf %95, %107 : vector<8x32xf32>
    %cst_56 = arith.constant 9.99999974E-6 : f32
    %109 = vector.broadcast %cst_56 : f32 to vector<8x1xf32>
    %110 = arith.addf %106, %109 : vector<8x1xf32>
    %111 = math.rsqrt %110 : vector<8x1xf32>
    %112 = vector.broadcast %111 : vector<8x1xf32> to vector<8x32xf32>
    %113 = arith.mulf %108, %112 : vector<8x32xf32>
    %c0_57 = arith.constant 0 : index
    %c0_58 = arith.constant 0 : index
    %114 = vector.load %arg16[%c0_57, %c0_58] : memref<8x32xf32, #tpu.memory_space<vmem>>, vector<8x32xf32>
    tpu.vector_store %arg16[%c0_57, %c0_58], %113 {strides = array<i32>} : memref<8x32xf32, #tpu.memory_space<vmem>>, vector<8x32xf32>,
    return
  }
}

</mosaic_0001>

<llo_original>
// kernel: tpu_custom_call.1
$region0: #{tpu_custom_call.1}
  #allocation0 [shape = 'u32[]', space=smem, size = 0x4, offset = 0x4, fixed_abs, tag = 'smem constant byte address 0x4 - core index']
  #allocation1 [shape = 'u32[144,128]{1,0:T(1,128)}', space=vmem, size = 0x12000, scoped, tag = 'internal scratch']
  %s0 = inlined_call_operand.vmem [shape: f32[8,32], index: 0, kind: input, shape index: {}]
  %s1 = inlined_call_operand.vmem [shape: f32[16,32], index: 1, kind: input, shape index: {}]
  %s2 = inlined_call_operand.vmem [shape: f32[16,1], index: 2, kind: input, shape index: {}]
  %s3 = inlined_call_operand.vmem [shape: s32[16,1], index: 3, kind: input, shape index: {}]
  %s4 = inlined_call_operand.vmem [shape: s32[16,1], index: 4, kind: input, shape index: {}]
  %s5 = inlined_call_operand.vmem [shape: s32[1,16], index: 5, kind: input, shape index: {}]
  %s6 = inlined_call_operand.vmem [shape: f32[32,64], index: 6, kind: input, shape index: {}]
  %s7 = inlined_call_operand.vmem [shape: f32[32,32], index: 7, kind: input, shape index: {}]
  %s8 = inlined_call_operand.vmem [shape: f32[1,4], index: 8, kind: input, shape index: {}]
  %s9 = inlined_call_operand.vmem [shape: f32[32,4], index: 9, kind: input, shape index: {}]
  %s10 = inlined_call_operand.vmem [shape: f32[4,32], index: 10, kind: input, shape index: {}]
  %s11 = inlined_call_operand.vmem [shape: f32[1,32], index: 11, kind: input, shape index: {}]
  %s12 = inlined_call_operand.vmem [shape: f32[1,32], index: 12, kind: input, shape index: {}]
  %s13 = inlined_call_operand.vmem [shape: f32[32,64], index: 13, kind: input, shape index: {}]
  %s14 = inlined_call_operand.vmem [shape: f32[1,64], index: 14, kind: input, shape index: {}]
  %s15 = inlined_call_operand.vmem [shape: f32[64,32], index: 15, kind: input, shape index: {}]
  %s16 = inlined_call_operand.hbm [shape: f32[8,32], index: 16, kind: output, shape index: {}]
  %s17 = sld [smem:[#allocation0]]
  $region74: #{tpu_custom_call.1} parent=0
    _
  %s19 = ssub.s32 1, %s17
  %s20 = scalar_select 0, %s19, %s17
  $region1: #{tpu_custom_call.1} parent=0
    #allocation2 [shape = 'u8[4096]{0}', space=vmem, size = 0x1000, scoped, tag = 'output window, operand 0, single buffered']
    #allocation3 [shape = 's32[1]{0}', space=sflag, size = 0x4, scoped, tag = 'scoped memory for tpu_custom_call.1']
    %21 = vsyncpa [#allocation3], 0
    // Predicated region
    $region2: #{tpu_custom_call.1} parent=1 // pred_check
      _
    $region3: #{tpu_custom_call.1} parent=1 // pred_check_branch
      %23 = sbr.rel (0) target = $region5
    $region4: #{tpu_custom_call.1} parent=1 // pred_region
      _
    $region5: #{tpu_custom_call.1} parent=1 // pred_fallthru
      _
    // Predicated region
    $region6: #{tpu_custom_call.1} parent=1 // pred_check
      _
    $region7: #{tpu_custom_call.1} parent=1 // pred_check_branch
      %25 = sbr.rel (0) target = $region9
    $region8: #{tpu_custom_call.1} parent=1 // pred_region
      _
    $region9: #{tpu_custom_call.1} parent=1 // pred_fallthru
      _
    // Predicated region
    $region10: #{tpu_custom_call.1} parent=1 // pred_check
      _
    $region11: #{tpu_custom_call.1} parent=1 // pred_check_branch
      %27 = sbr.rel (0) target = $region13
    $region12: #{tpu_custom_call.1} parent=1 // pred_region
      _
    $region13: #{tpu_custom_call.1} parent=1 // pred_fallthru
      _
    // Predicated region
    $region14: #{tpu_custom_call.1} parent=1 // pred_check
      _
    $region15: #{tpu_custom_call.1} parent=1 // pred_check_branch
      %29 = sbr.rel (0) target = $region17
    $region16: #{tpu_custom_call.1} parent=1 // pred_region
      _
    $region17: #{tpu_custom_call.1} parent=1 // pred_fallthru
      _
    // Predicated region
    $region18: #{tpu_custom_call.1} parent=1 // pred_check
      _
    $region19: #{tpu_custom_call.1} parent=1 // pred_check_branch
      %31 = sbr.rel (0) target = $region21
    $region20: #{tpu_custom_call.1} parent=1 // pred_region
      _
    $region21: #{tpu_custom_call.1} parent=1 // pred_fallthru
      _
    // Predicated region
    $region22: #{tpu_custom_call.1} parent=1 // pred_check
      _
    $region23: #{tpu_custom_call.1} parent=1 // pred_check_branch
      %33 = sbr.rel (0) target = $region25
    $region24: #{tpu_custom_call.1} parent=1 // pred_region
      _
    $region25: #{tpu_custom_call.1} parent=1 // pred_fallthru
      _
    // Predicated region
    $region26: #{tpu_custom_call.1} parent=1 // pred_check
      _
    $region27: #{tpu_custom_call.1} parent=1 // pred_check_branch
      %35 = sbr.rel (0) target = $region29
    $region28: #{tpu_custom_call.1} parent=1 // pred_region
      _
    $region29: #{tpu_custom_call.1} parent=1 // pred_fallthru
      _
    // Predicated region
    $region30: #{tpu_custom_call.1} parent=1 // pred_check
      _
    $region31: #{tpu_custom_call.1} parent=1 // pred_check_branch
      %37 = sbr.rel (0) target = $region33
    $region32: #{tpu_custom_call.1} parent=1 // pred_region
      _
    $region33: #{tpu_custom_call.1} parent=1 // pred_fallthru
      _
    // Predicated region
    $region34: #{tpu_custom_call.1} parent=1 // pred_check
      _
    $region35: #{tpu_custom_call.1} parent=1 // pred_check_branch
      %39 = sbr.rel (0) target = $region37
    $region36: #{tpu_custom_call.1} parent=1 // pred_region
      _
    $region37: #{tpu_custom_call.1} parent=1 // pred_fallthru
      _
    // Predicated region
    $region38: #{tpu_custom_call.1} parent=1 // pred_check
      _
    $region39: #{tpu_custom_call.1} parent=1 // pred_check_branch
      %41 = sbr.rel (0) target = $region41
    $region40: #{tpu_custom_call.1} parent=1 // pred_region
      _
    $region41: #{tpu_custom_call.1} parent=1 // pred_fallthru
      _
    // Predicated region
    $region42: #{tpu_custom_call.1} parent=1 // pred_check
      _
    $region43: #{tpu_custom_call.1} parent=1 // pred_check_branch
      %43 = sbr.rel (0) target = $region45
    $region44: #{tpu_custom_call.1} parent=1 // pred_region
      _
    $region45: #{tpu_custom_call.1} parent=1 // pred_fallthru
      _
    // Predicated region
    $region46: #{tpu_custom_call.1} parent=1 // pred_check
      _
    $region47: #{tpu_custom_call.1} parent=1 // pred_check_branch
      %45 = sbr.rel (0) target = $region49
    $region48: #{tpu_custom_call.1} parent=1 // pred_region
      _
    $region49: #{tpu_custom_call.1} parent=1 // pred_fallthru
      _
    // Predicated region
    $region50: #{tpu_custom_call.1} parent=1 // pred_check
      _
    $region51: #{tpu_custom_call.1} parent=1 // pred_check_branch
      %47 = sbr.rel (0) target = $region53
    $region52: #{tpu_custom_call.1} parent=1 // pred_region
      _
    $region53: #{tpu_custom_call.1} parent=1 // pred_fallthru
      _
    // Predicated region
    $region54: #{tpu_custom_call.1} parent=1 // pred_check
      _
    $region55: #{tpu_custom_call.1} parent=1 // pred_check_branch
      %49 = sbr.rel (0) target = $region57
    $region56: #{tpu_custom_call.1} parent=1 // pred_region
      _
    $region57: #{tpu_custom_call.1} parent=1 // pred_fallthru
      _
    // Predicated region
    $region58: #{tpu_custom_call.1} parent=1 // pred_check
      _
    $region59: #{tpu_custom_call.1} parent=1 // pred_check_branch
      %51 = sbr.rel (0) target = $region61
    $region60: #{tpu_custom_call.1} parent=1 // pred_region
      _
    $region61: #{tpu_custom_call.1} parent=1 // pred_fallthru
      _
    // Predicated region
    $region62: #{tpu_custom_call.1} parent=1 // pred_check
      _
    $region63: #{tpu_custom_call.1} parent=1 // pred_check_branch
      %53 = sbr.rel (0) target = $region65
    $region64: #{tpu_custom_call.1} parent=1 // pred_region
      _
    $region65: #{tpu_custom_call.1} parent=1 // pred_fallthru
      _
    %v54 = vld [vmem:[%s0] sm:$0xff]
    %v55 = vld [vmem:[%s1] sm:$0xff]
    %v56 = vld [vmem:[%s1 + $0x8] sm:$0xff]
    %v57 = vlaneseq
    %v58 = vand.u32 %v57, 127
    %v59 = vld [vmem:[%s3] sm:$0xff]
    %v60 = vld [vmem:[%s3 + $0x8] sm:$0xff]
    %61 = vset.pattern.permute.xlu0 0
    %62 = vperm.xlu0 %61, %v59
    %v63 = vpop.permute.xlu0 %62
    %64 = vset.pattern.permute.xlu0 0
    %65 = vperm.xlu0 %64, %v60
    %v66 = vpop.permute.xlu0 %65
    %vm67 = vcmp.eq.s32.totalorder %v63, %v58
    %vm68 = vcmp.eq.s32.totalorder %v66, %v58
    %v69 = vsel %vm67, 1, 0
    %v70 = vsel %vm68, 1, 0
    %v71 = vcvt.s32.f32 %v69
    %v72 = vcvt.s32.f32 %v70
    %v73 = vld [vmem:[%s4] sm:$0xff]
    %v74 = vld [vmem:[%s4 + $0x8] sm:$0xff]
    %75 = vset.pattern.permute.xlu0 0
    %76 = vperm.xlu0 %75, %v73
    %v77 = vpop.permute.xlu0 %76
    %78 = vset.pattern.permute.xlu0 0
    %79 = vperm.xlu0 %78, %v74
    %v80 = vpop.permute.xlu0 %79
    %vm81 = vcmp.eq.s32.totalorder %v77, %v58
    %vm82 = vcmp.eq.s32.totalorder %v80, %v58
    %v83 = vsel %vm81, 1, 0
    %v84 = vsel %vm82, 1, 0
    %v85 = vcvt.s32.f32 %v83
    %v86 = vcvt.s32.f32 %v84
    %v87 = vlaneseq
    %v88 = vshrl.u32 %v87, 7
    %v89 = vld [vmem:[%s5] sm:$0x1]
    %v90 = vlaneseq
    %v91 = vshrl.u32 %v90, 7
    %v92 = vsub.s32 0, %v91
    %v93 = vrot.slane %v89, %v92
    %vm94 = vcmp.eq.s32.totalorder %v93, %v88
    %v95 = vsel %vm94, 1, 0
    %v96 = vcvt.s32.f32 %v95
    %v97 = vld [vmem:[%s6] sm:$0xff]
    %v98 = vld [vmem:[%s6 + $0x8] sm:$0xff]
    %v99 = vld [vmem:[%s6 + $0x10] sm:$0xff]
    %v100 = vld [vmem:[%s6 + $0x18] sm:$0xff]
    %vm101 = vcmask 261120
    %v103 = vsel %vm101, %v54, 0
    %105 = vmatprep.subr.mxu0 0.0
    %v106 = vand.u32 %v97, 4294901760
    %107 = vmatpush1.msra.mxu0 %v106
    %108 = vmatprep.subr.mxu0 0.0
    %v109 = vand.u32 %v98, 4294901760
    %110 = vmatpush1.msra.mxu0 %v109
    %111 = vmatprep.subr.mxu0 0.0
    %v112 = vand.u32 %v99, 4294901760
    %113 = vmatpush1.msra.mxu0 %v112
    %114 = vmatprep.subr.mxu0 0.0
    %v115 = vand.u32 %v100, 4294901760
    %116 = vmatpush1.msra.mxu0 %v115
    %117 = vmatprep.subr.mxu0 0.0
    %118 = vmatpush1.msra.mxu0 0.0
    %119 = vmatprep.subr.mxu0 0.0
    %120 = vmatpush1.msra.mxu0 0.0
    %121 = vmatprep.subr.mxu0 0.0
    %122 = vmatpush1.msra.mxu0 0.0
    %123 = vmatprep.subr.mxu0 0.0
    %124 = vmatpush1.msra.mxu0 0.0
    %125 = vmatprep.subr.mxu0 0.0
    %126 = vmatpush1.msra.mxu0 0.0
    %127 = vmatprep.subr.mxu0 0.0
    %128 = vmatpush1.msra.mxu0 0.0
    %129 = vmatprep.subr.mxu0 0.0
    %130 = vmatpush1.msra.mxu0 0.0
    %131 = vmatprep.subr.mxu0 0.0
    %132 = vmatpush1.msra.mxu0 0.0
    %133 = vmatprep.subr.mxu0 0.0
    %134 = vmatpush1.msra.mxu0 0.0
    %135 = vmatprep.subr.mxu0 0.0
    %136 = vmatpush1.msra.mxu0 0.0
    %137 = vmatprep.subr.mxu0 0.0
    %138 = vmatpush1.msra.mxu0 0.0
    %139 = vmatprep.subr.mxu0 0.0
    %140 = vmatpush1.msra.mxu0 0.0
    %141 = vmatprep.subr.mxu0 0.0
    %142 = vmatpush1.msra.mxu0 0.0
    %143 = vmatprep.subr.mxu0 0.0
    %144 = vmatpush1.msra.mxu0 0.0
    %145 = vmatprep.subr.mxu0 0.0
    %146 = vmatpush1.msra.mxu0 0.0
    %147 = vmatprep.subr.mxu0 0.0
    %148 = vmatpush1.msra.mxu0 0.0
    %149 = vmatprep.subr.mxu0 0.0
    %150 = vmatpush1.msra.mxu0 0.0
    %151 = vmatprep.subr.mxu0 0.0
    %152 = vmatpush1.msra.mxu0 0.0
    %153 = vmatprep.subr.mxu0 0.0
    %154 = vmatpush1.msra.mxu0 0.0
    %155 = vmatprep.subr.mxu0 0.0
    %156 = vmatpush1.msra.mxu0 0.0
    %157 = vmatprep.subr.mxu0 0.0
    %158 = vmatpush1.msra.mxu0 0.0
    %159 = vmatprep.subr.mxu0 0.0
    %160 = vmatpush1.msra.mxu0 0.0
    %161 = vmatprep.subr.mxu0 0.0
    %162 = vmatpush1.msra.mxu0 0.0
    %163 = vmatprep.subr.mxu0 0.0
    %164 = vmatpush1.msra.mxu0 0.0
    %165 = vmatprep.subr.mxu0 0.0
    %166 = vmatpush1.msra.mxu0 0.0
    %167 = vmatprep.subr.mxu0 0.0
    %168 = vmatpush1.msra.mxu0 0.0
    %169 = vmatprep.subr.mxu0 0.0
    %170 = vmatpush1.msra.mxu0 0.0
    %171 = vmatprep.subr.mxu0 0.0
    %172 = vmatpush1.msra.mxu0 0.0
    %173 = vmatprep.mubr.f32.mxu0 0.0
    %v174 = vand.u32 %v103, 4294901760
    %v175 = vsub.f32 %v103, %v174
    %v176 = vand.u32 %v175, 4294901760
    %v177 = vsub.f32 %v175, %v176
    %v178 = vand.u32 %v177, 4294901760
    %179 = vmatmul.mubr.f32.gmra.mrb[0].mxu0 %v178
    %v180 = vpop.f32.mrb[0].mxu0
    %v181 = vadd.f32 0.0, %v180
    %v182 = vpop.f32.mrb[0].mxu0
    %183 = vdwg.mxu0
    %184 = vmatprep.subr.mxu0 0.0
    %v185 = vand.u32 %v97, 4294901760
    %v186 = vsub.f32 %v97, %v185
    %v187 = vand.u32 %v186, 4294901760
    %v188 = vsub.f32 %v186, %v187
    %v189 = vand.u32 %v188, 4294901760
    %190 = vmatpush1.msra.mxu0 %v189
    %191 = vmatprep.subr.mxu0 0.0
    %v192 = vand.u32 %v98, 4294901760
    %v193 = vsub.f32 %v98, %v192
    %v194 = vand.u32 %v193, 4294901760
    %v195 = vsub.f32 %v193, %v194
    %v196 = vand.u32 %v195, 4294901760
    %197 = vmatpush1.msra.mxu0 %v196
    %198 = vmatprep.subr.mxu0 0.0
    %v199 = vand.u32 %v99, 4294901760
    %v200 = vsub.f32 %v99, %v199
    %v201 = vand.u32 %v200, 4294901760
    %v202 = vsub.f32 %v200, %v201
    %v203 = vand.u32 %v202, 4294901760
    %204 = vmatpush1.msra.mxu0 %v203
    %205 = vmatprep.subr.mxu0 0.0
    %v206 = vand.u32 %v100, 4294901760
    %v207 = vsub.f32 %v100, %v206
    %v208 = vand.u32 %v207, 4294901760
    %v209 = vsub.f32 %v207, %v208
    %v210 = vand.u32 %v209, 4294901760
    %211 = vmatpush1.msra.mxu0 %v210
    %212 = vmatprep.subr.mxu0 0.0
    %213 = vmatpush1.msra.mxu0 0.0
    %214 = vmatprep.subr.mxu0 0.0
    %215 = vmatpush1.msra.mxu0 0.0
    %216 = vmatprep.subr.mxu0 0.0
    %217 = vmatpush1.msra.mxu0 0.0
    %218 = vmatprep.subr.mxu0 0.0
    %219 = vmatpush1.msra.mxu0 0.0
    %220 = vmatprep.subr.mxu0 0.0
    %221 = vmatpush1.msra.mxu0 0.0
    %222 = vmatprep.subr.mxu0 0.0
    %223 = vmatpush1.msra.mxu0 0.0
    %224 = vmatprep.subr.mxu0 0.0
    %225 = vmatpush1.msra.mxu0 0.0
    %226 = vmatprep.subr.mxu0 0.0
    %227 = vmatpush1.msra.mxu0 0.0
    %228 = vmatprep.subr.mxu0 0.0
    %229 = vmatpush1.msra.mxu0 0.0
    %230 = vmatprep.subr.mxu0 0.0
    %231 = vmatpush1.msra.mxu0 0.0
    %232 = vmatprep.subr.mxu0 0.0
    %233 = vmatpush1.msra.mxu0 0.0
    %234 = vmatprep.subr.mxu0 0.0
    %235 = vmatpush1.msra.mxu0 0.0
    %236 = vmatprep.subr.mxu0 0.0
    %237 = vmatpush1.msra.mxu0 0.0
    %238 = vmatprep.subr.mxu0 0.0
    %239 = vmatpush1.msra.mxu0 0.0
    %240 = vmatprep.subr.mxu0 0.0
    %241 = vmatpush1.msra.mxu0 0.0
    %242 = vmatprep.subr.mxu0 0.0
    %243 = vmatpush1.msra.mxu0 0.0
    %244 = vmatprep.subr.mxu0 0.0
    %245 = vmatpush1.msra.mxu0 0.0
    %246 = vmatprep.subr.mxu0 0.0
    %247 = vmatpush1.msra.mxu0 0.0
    %248 = vmatprep.subr.mxu0 0.0
    %249 = vmatpush1.msra.mxu0 0.0
    %250 = vmatprep.subr.mxu0 0.0
    %251 = vmatpush1.msra.mxu0 0.0
    %252 = vmatprep.subr.mxu0 0.0
    %253 = vmatpush1.msra.mxu0 0.0
    %254 = vmatprep.subr.mxu0 0.0
    %255 = vmatpush1.msra.mxu0 0.0
    %256 = vmatprep.subr.mxu0 0.0
    %257 = vmatpush1.msra.mxu0 0.0
    %258 = vmatprep.subr.mxu0 0.0
    %259 = vmatpush1.msra.mxu0 0.0
    %260 = vmatprep.subr.mxu0 0.0
    %261 = vmatpush1.msra.mxu0 0.0
    %262 = vmatprep.subr.mxu0 0.0
    %263 = vmatpush1.msra.mxu0 0.0
    %264 = vmatprep.subr.mxu0 0.0
    %265 = vmatpush1.msra.mxu0 0.0
    %266 = vmatprep.subr.mxu0 0.0
    %267 = vmatpush1.msra.mxu0 0.0
    %268 = vmatprep.mubr.f32.mxu0 0.0
    %v269 = vand.u32 %v103, 4294901760
    %270 = vmatmul.mubr.f32.gmra.mrb[0].mxu0 %v269
    %v271 = vpop.f32.mrb[0].mxu0
    %v272 = vadd.f32 %v181, %v271
    %v273 = vpop.f32.mrb[0].mxu0
    %274 = vdwg.mxu0
    %275 = vmatprep.subr.mxu0 0.0
    %v276 = vand.u32 %v97, 4294901760
    %v277 = vsub.f32 %v97, %v276
    %278 = vmatpush1.msra.mxu0 %v277
    %279 = vmatprep.subr.mxu0 0.0
    %v280 = vand.u32 %v98, 4294901760
    %v281 = vsub.f32 %v98, %v280
    %282 = vmatpush1.msra.mxu0 %v281
    %283 = vmatprep.subr.mxu0 0.0
    %v284 = vand.u32 %v99, 4294901760
    %v285 = vsub.f32 %v99, %v284
    %286 = vmatpush1.msra.mxu0 %v285
    %287 = vmatprep.subr.mxu0 0.0
    %v288 = vand.u32 %v100, 4294901760
    %v289 = vsub.f32 %v100, %v288
    %290 = vmatpush1.msra.mxu0 %v289
    %291 = vmatprep.subr.mxu0 0.0
    %292 = vmatpush1.msra.mxu0 0.0
    %293 = vmatprep.subr.mxu0 0.0
    %294 = vmatpush1.msra.mxu0 0.0
    %295 = vmatprep.subr.mxu0 0.0
    %296 = vmatpush1.msra.mxu0 0.0
    %297 = vmatprep.subr.mxu0 0.0
    %298 = vmatpush1.msra.mxu0 0.0
    %299 = vmatprep.subr.mxu0 0.0
    %300 = vmatpush1.msra.mxu0 0.0
    %301 = vmatprep.subr.mxu0 0.0
    %302 = vmatpush1.msra.mxu0 0.0
    %303 = vmatprep.subr.mxu0 0.0
    %304 = vmatpush1.msra.mxu0 0.0
    %305 = vmatprep.subr.mxu0 0.0
    %306 = vmatpush1.msra.mxu0 0.0
    %307 = vmatprep.subr.mxu0 0.0
    %308 = vmatpush1.msra.mxu0 0.0
    %309 = vmatprep.subr.mxu0 0.0
    %310 = vmatpush1.msra.mxu0 0.0
    %311 = vmatprep.subr.mxu0 0.0
    %312 = vmatpush1.msra.mxu0 0.0
    %313 = vmatprep.subr.mxu0 0.0
    %314 = vmatpush1.msra.mxu0 0.0
    %315 = vmatprep.subr.mxu0 0.0
    %316 = vmatpush1.msra.mxu0 0.0
    %317 = vmatprep.subr.mxu0 0.0
    %318 = vmatpush1.msra.mxu0 0.0
    %319 = vmatprep.subr.mxu0 0.0
    %320 = vmatpush1.msra.mxu0 0.0
    %321 = vmatprep.subr.mxu0 0.0
    %322 = vmatpush1.msra.mxu0 0.0
    %323 = vmatprep.subr.mxu0 0.0
    %324 = vmatpush1.msra.mxu0 0.0
    %325 = vmatprep.subr.mxu0 0.0
    %326 = vmatpush1.msra.mxu0 0.0
    %327 = vmatprep.subr.mxu0 0.0
    %328 = vmatpush1.msra.mxu0 0.0
    %329 = vmatprep.subr.mxu0 0.0
    %330 = vmatpush1.msra.mxu0 0.0
    %331 = vmatprep.subr.mxu0 0.0
    %332 = vmatpush1.msra.mxu0 0.0
    %333 = vmatprep.subr.mxu0 0.0
    %334 = vmatpush1.msra.mxu0 0.0
    %335 = vmatprep.subr.mxu0 0.0
    %336 = vmatpush1.msra.mxu0 0.0
    %337 = vmatprep.subr.mxu0 0.0
    %338 = vmatpush1.msra.mxu0 0.0
    %339 = vmatprep.subr.mxu0 0.0
    %340 = vmatpush1.msra.mxu0 0.0
    %341 = vmatprep.subr.mxu0 0.0
    %342 = vmatpush1.msra.mxu0 0.0
    %343 = vmatprep.subr.mxu0 0.0
    %344 = vmatpush1.msra.mxu0 0.0
    %345 = vmatprep.subr.mxu0 0.0
    %346 = vmatpush1.msra.mxu0 0.0
    %347 = vmatprep.mubr.f32.mxu0 0.0
    %v348 = vand.u32 %v103, 4294901760
    %v349 = vsub.f32 %v103, %v348
    %350 = vmatmul.mubr.f32.gmra.mrb[0].mxu0 %v349
    %v351 = vpop.f32.mrb[0].mxu0
    %v352 = vadd.f32 %v272, %v351
    %v353 = vpop.f32.mrb[0].mxu0
    %354 = vdwg.mxu0
    %355 = vmatprep.subr.mxu0 0.0
    %v356 = vand.u32 %v97, 4294901760
    %357 = vmatpush1.msra.mxu0 %v356
    %358 = vmatprep.subr.mxu0 0.0
    %v359 = vand.u32 %v98, 4294901760
    %360 = vmatpush1.msra.mxu0 %v359
    %361 = vmatprep.subr.mxu0 0.0
    %v362 = vand.u32 %v99, 4294901760
    %363 = vmatpush1.msra.mxu0 %v362
    %364 = vmatprep.subr.mxu0 0.0
    %v365 = vand.u32 %v100, 4294901760
    %366 = vmatpush1.msra.mxu0 %v365
    %367 = vmatprep.subr.mxu0 0.0
    %368 = vmatpush1.msra.mxu0 0.0
    %369 = vmatprep.subr.mxu0 0.0
    %370 = vmatpush1.msra.mxu0 0.0
    %371 = vmatprep.subr.mxu0 0.0
    %372 = vmatpush1.msra.mxu0 0.0
    %373 = vmatprep.subr.mxu0 0.0
    %374 = vmatpush1.msra.mxu0 0.0
    %375 = vmatprep.subr.mxu0 0.0
    %376 = vmatpush1.msra.mxu0 0.0
    %377 = vmatprep.subr.mxu0 0.0
    %378 = vmatpush1.msra.mxu0 0.0
    %379 = vmatprep.subr.mxu0 0.0
    %380 = vmatpush1.msra.mxu0 0.0
    %381 = vmatprep.subr.mxu0 0.0
    %382 = vmatpush1.msra.mxu0 0.0
    %383 = vmatprep.subr.mxu0 0.0
    %384 = vmatpush1.msra.mxu0 0.0
    %385 = vmatprep.subr.mxu0 0.0
    %386 = vmatpush1.msra.mxu0 0.0
    %387 = vmatprep.subr.mxu0 0.0
    %388 = vmatpush1.msra.mxu0 0.0
    %389 = vmatprep.subr.mxu0 0.0
    %390 = vmatpush1.msra.mxu0 0.0
    %391 = vmatprep.subr.mxu0 0.0
    %392 = vmatpush1.msra.mxu0 0.0
    %393 = vmatprep.subr.mxu0 0.0
    %394 = vmatpush1.msra.mxu0 0.0
    %395 = vmatprep.subr.mxu0 0.0
    %396 = vmatpush1.msra.mxu0 0.0
    %397 = vmatprep.subr.mxu0 0.0
    %398 = vmatpush1.msra.mxu0 0.0
    %399 = vmatprep.subr.mxu0 0.0
    %400 = vmatpush1.msra.mxu0 0.0
    %401 = vmatprep.subr.mxu0 0.0
    %402 = vmatpush1.msra.mxu0 0.0
    %403 = vmatprep.subr.mxu0 0.0
    %404 = vmatpush1.msra.mxu0 0.0
    %405 = vmatprep.subr.mxu0 0.0
    %406 = vmatpush1.msra.mxu0 0.0
    %407 = vmatprep.subr.mxu0 0.0
    %408 = vmatpush1.msra.mxu0 0.0
    %409 = vmatprep.subr.mxu0 0.0
    %410 = vmatpush1.msra.mxu0 0.0
    %411 = vmatprep.subr.mxu0 0.0
    %412 = vmatpush1.msra.mxu0 0.0
    %413 = vmatprep.subr.mxu0 0.0
    %414 = vmatpush1.msra.mxu0 0.0
    %415 = vmatprep.subr.mxu0 0.0
    %416 = vmatpush1.msra.mxu0 0.0
    %417 = vmatprep.subr.mxu0 0.0
    %418 = vmatpush1.msra.mxu0 0.0
    %419 = vmatprep.subr.mxu0 0.0
    %420 = vmatpush1.msra.mxu0 0.0
    %421 = vmatprep.subr.mxu0 0.0
    %422 = vmatpush1.msra.mxu0 0.0
    %423 = vmatprep.mubr.f32.mxu0 0.0
    %v424 = vand.u32 %v103, 4294901760
    %v425 = vsub.f32 %v103, %v424
    %v426 = vand.u32 %v425, 4294901760
    %427 = vmatmul.mubr.f32.gmra.mrb[0].mxu0 %v426
    %v428 = vpop.f32.mrb[0].mxu0
    %v429 = vadd.f32 %v352, %v428
    %v430 = vpop.f32.mrb[0].mxu0
    %431 = vdwg.mxu0
    %432 = vmatprep.subr.mxu0 0.0
    %v433 = vand.u32 %v97, 4294901760
    %v434 = vsub.f32 %v97, %v433
    %v435 = vand.u32 %v434, 4294901760
    %436 = vmatpush1.msra.mxu0 %v435
    %437 = vmatprep.subr.mxu0 0.0
    %v438 = vand.u32 %v98, 4294901760
    %v439 = vsub.f32 %v98, %v438
    %v440 = vand.u32 %v439, 4294901760
    %441 = vmatpush1.msra.mxu0 %v440
    %442 = vmatprep.subr.mxu0 0.0
    %v443 = vand.u32 %v99, 4294901760
    %v444 = vsub.f32 %v99, %v443
    %v445 = vand.u32 %v444, 4294901760
    %446 = vmatpush1.msra.mxu0 %v445
    %447 = vmatprep.subr.mxu0 0.0
    %v448 = vand.u32 %v100, 4294901760
    %v449 = vsub.f32 %v100, %v448
    %v450 = vand.u32 %v449, 4294901760
    %451 = vmatpush1.msra.mxu0 %v450
    %452 = vmatprep.subr.mxu0 0.0
    %453 = vmatpush1.msra.mxu0 0.0
    %454 = vmatprep.subr.mxu0 0.0
    %455 = vmatpush1.msra.mxu0 0.0
    %456 = vmatprep.subr.mxu0 0.0
    %457 = vmatpush1.msra.mxu0 0.0
    %458 = vmatprep.subr.mxu0 0.0
    %459 = vmatpush1.msra.mxu0 0.0
    %460 = vmatprep.subr.mxu0 0.0
    %461 = vmatpush1.msra.mxu0 0.0
    %462 = vmatprep.subr.mxu0 0.0
    %463 = vmatpush1.msra.mxu0 0.0
    %464 = vmatprep.subr.mxu0 0.0
    %465 = vmatpush1.msra.mxu0 0.0
    %466 = vmatprep.subr.mxu0 0.0
    %467 = vmatpush1.msra.mxu0 0.0
    %468 = vmatprep.subr.mxu0 0.0
    %469 = vmatpush1.msra.mxu0 0.0
    %470 = vmatprep.subr.mxu0 0.0
    %471 = vmatpush1.msra.mxu0 0.0
    %472 = vmatprep.subr.mxu0 0.0
    %473 = vmatpush1.msra.mxu0 0.0
    %474 = vmatprep.subr.mxu0 0.0
    %475 = vmatpush1.msra.mxu0 0.0
    %476 = vmatprep.subr.mxu0 0.0
    %477 = vmatpush1.msra.mxu0 0.0
    %478 = vmatprep.subr.mxu0 0.0
    %479 = vmatpush1.msra.mxu0 0.0
    %480 = vmatprep.subr.mxu0 0.0
    %481 = vmatpush1.msra.mxu0 0.0
    %482 = vmatprep.subr.mxu0 0.0
    %483 = vmatpush1.msra.mxu0 0.0
    %484 = vmatprep.subr.mxu0 0.0
    %485 = vmatpush1.msra.mxu0 0.0
    %486 = vmatprep.subr.mxu0 0.0
    %487 = vmatpush1.msra.mxu0 0.0
    %488 = vmatprep.subr.mxu0 0.0
    %489 = vmatpush1.msra.mxu0 0.0
    %490 = vmatprep.subr.mxu0 0.0
    %491 = vmatpush1.msra.mxu0 0.0
    %492 = vmatprep.subr.mxu0 0.0
    %493 = vmatpush1.msra.mxu0 0.0
    %494 = vmatprep.subr.mxu0 0.0
    %495 = vmatpush1.msra.mxu0 0.0
    %496 = vmatprep.subr.mxu0 0.0
    %497 = vmatpush1.msra.mxu0 0.0
    %498 = vmatprep.subr.mxu0 0.0
    %499 = vmatpush1.msra.mxu0 0.0
    %500 = vmatprep.subr.mxu0 0.0
    %501 = vmatpush1.msra.mxu0 0.0
    %502 = vmatprep.subr.mxu0 0.0
    %503 = vmatpush1.msra.mxu0 0.0
    %504 = vmatprep.subr.mxu0 0.0
    %505 = vmatpush1.msra.mxu0 0.0
    %506 = vmatprep.subr.mxu0 0.0
    %507 = vmatpush1.msra.mxu0 0.0
    %508 = vmatprep.mubr.f32.mxu0 0.0
    %v509 = vand.u32 %v103, 4294901760
    %510 = vmatmul.mubr.f32.gmra.mrb[0].mxu0 %v509
    %v511 = vpop.f32.mrb[0].mxu0
    %v512 = vadd.f32 %v429, %v511
    %v513 = vpop.f32.mrb[0].mxu0
    %514 = vdwg.mxu0
    %515 = vmatprep.subr.mxu0 0.0
    %v516 = vand.u32 %v97, 4294901760
    %517 = vmatpush1.msra.mxu0 %v516
    %518 = vmatprep.subr.mxu0 0.0
    %v519 = vand.u32 %v98, 4294901760
    %520 = vmatpush1.msra.mxu0 %v519
    %521 = vmatprep.subr.mxu0 0.0
    %v522 = vand.u32 %v99, 4294901760
    %523 = vmatpush1.msra.mxu0 %v522
    %524 = vmatprep.subr.mxu0 0.0
    %v525 = vand.u32 %v100, 4294901760
    %526 = vmatpush1.msra.mxu0 %v525
    %527 = vmatprep.subr.mxu0 0.0
    %528 = vmatpush1.msra.mxu0 0.0
    %529 = vmatprep.subr.mxu0 0.0
    %530 = vmatpush1.msra.mxu0 0.0
    %531 = vmatprep.subr.mxu0 0.0
    %532 = vmatpush1.msra.mxu0 0.0
    %533 = vmatprep.subr.mxu0 0.0
    %534 = vmatpush1.msra.mxu0 0.0
    %535 = vmatprep.subr.mxu0 0.0
    %536 = vmatpush1.msra.mxu0 0.0
    %537 = vmatprep.subr.mxu0 0.0
    %538 = vmatpush1.msra.mxu0 0.0
    %539 = vmatprep.subr.mxu0 0.0
    %540 = vmatpush1.msra.mxu0 0.0
    %541 = vmatprep.subr.mxu0 0.0
    %542 = vmatpush1.msra.mxu0 0.0
    %543 = vmatprep.subr.mxu0 0.0
    %544 = vmatpush1.msra.mxu0 0.0
    %545 = vmatprep.subr.mxu0 0.0
    %546 = vmatpush1.msra.mxu0 0.0
    %547 = vmatprep.subr.mxu0 0.0
    %548 = vmatpush1.msra.mxu0 0.0
    %549 = vmatprep.subr.mxu0 0.0
    %550 = vmatpush1.msra.mxu0 0.0
    %551 = vmatprep.subr.mxu0 0.0
    %552 = vmatpush1.msra.mxu0 0.0
    %553 = vmatprep.subr.mxu0 0.0
    %554 = vmatpush1.msra.mxu0 0.0
    %555 = vmatprep.subr.mxu0 0.0
    %556 = vmatpush1.msra.mxu0 0.0
    %557 = vmatprep.subr.mxu0 0.0
    %558 = vmatpush1.msra.mxu0 0.0
    %559 = vmatprep.subr.mxu0 0.0
    %560 = vmatpush1.msra.mxu0 0.0
    %561 = vmatprep.subr.mxu0 0.0
    %562 = vmatpush1.msra.mxu0 0.0
    %563 = vmatprep.subr.mxu0 0.0
    %564 = vmatpush1.msra.mxu0 0.0
    %565 = vmatprep.subr.mxu0 0.0
    %566 = vmatpush1.msra.mxu0 0.0
    %567 = vmatprep.subr.mxu0 0.0
    %568 = vmatpush1.msra.mxu0 0.0
    %569 = vmatprep.subr.mxu0 0.0
    %570 = vmatpush1.msra.mxu0 0.0
    %571 = vmatprep.subr.mxu0 0.0
    %572 = vmatpush1.msra.mxu0 0.0
    %573 = vmatprep.subr.mxu0 0.0
    %574 = vmatpush1.msra.mxu0 0.0
    %575 = vmatprep.subr.mxu0 0.0
    %576 = vmatpush1.msra.mxu0 0.0
    %577 = vmatprep.subr.mxu0 0.0
    %578 = vmatpush1.msra.mxu0 0.0
    %579 = vmatprep.subr.mxu0 0.0
    %580 = vmatpush1.msra.mxu0 0.0
    %581 = vmatprep.subr.mxu0 0.0
    %582 = vmatpush1.msra.mxu0 0.0
    %583 = vmatprep.mubr.f32.mxu0 0.0
    %v584 = vand.u32 %v103, 4294901760
    %585 = vmatmul.mubr.f32.gmra.mrb[0].mxu0 %v584
    %v586 = vpop.f32.mrb[0].mxu0
    %v587 = vadd.f32 %v512, %v586
    %v588 = vpop.f32.mrb[0].mxu0
    %589 = vdwg.mxu0
    %v590 = vld [vmem:[%s7] sm:$0xff]
    %v591 = vld [vmem:[%s7 + $0x8] sm:$0xff]
    %v592 = vld [vmem:[%s7 + $0x10] sm:$0xff]
    %v593 = vld [vmem:[%s7 + $0x18] sm:$0xff]
    %v595 = vsel %vm101, %v55, 0
    %v598 = vsel %vm101, %v56, 0
    %600 = vmatprep.subr.mxu0 0.0
    %v601 = vand.u32 %v590, 4294901760
    %602 = vmatpush1.msra.mxu0 %v601
    %603 = vmatprep.subr.mxu0 0.0
    %v604 = vand.u32 %v591, 4294901760
    %605 = vmatpush1.msra.mxu0 %v604
    %606 = vmatprep.subr.mxu0 0.0
    %v607 = vand.u32 %v592, 4294901760
    %608 = vmatpush1.msra.mxu0 %v607
    %609 = vmatprep.subr.mxu0 0.0
    %v610 = vand.u32 %v593, 4294901760
    %611 = vmatpush1.msra.mxu0 %v610
    %612 = vmatprep.subr.mxu0 0.0
    %613 = vmatpush1.msra.mxu0 0.0
    %614 = vmatprep.subr.mxu0 0.0
    %615 = vmatpush1.msra.mxu0 0.0
    %616 = vmatprep.subr.mxu0 0.0
    %617 = vmatpush1.msra.mxu0 0.0
    %618 = vmatprep.subr.mxu0 0.0
    %619 = vmatpush1.msra.mxu0 0.0
    %620 = vmatprep.subr.mxu0 0.0
    %621 = vmatpush1.msra.mxu0 0.0
    %622 = vmatprep.subr.mxu0 0.0
    %623 = vmatpush1.msra.mxu0 0.0
    %624 = vmatprep.subr.mxu0 0.0
    %625 = vmatpush1.msra.mxu0 0.0
    %626 = vmatprep.subr.mxu0 0.0
    %627 = vmatpush1.msra.mxu0 0.0
    %628 = vmatprep.subr.mxu0 0.0
    %629 = vmatpush1.msra.mxu0 0.0
    %630 = vmatprep.subr.mxu0 0.0
    %631 = vmatpush1.msra.mxu0 0.0
    %632 = vmatprep.subr.mxu0 0.0
    %633 = vmatpush1.msra.mxu0 0.0
    %634 = vmatprep.subr.mxu0 0.0
    %635 = vmatpush1.msra.mxu0 0.0
    %636 = vmatprep.subr.mxu0 0.0
    %637 = vmatpush1.msra.mxu0 0.0
    %638 = vmatprep.subr.mxu0 0.0
    %639 = vmatpush1.msra.mxu0 0.0
    %640 = vmatprep.subr.mxu0 0.0
    %641 = vmatpush1.msra.mxu0 0.0
    %642 = vmatprep.subr.mxu0 0.0
    %643 = vmatpush1.msra.mxu0 0.0
    %644 = vmatprep.subr.mxu0 0.0
    %645 = vmatpush1.msra.mxu0 0.0
    %646 = vmatprep.subr.mxu0 0.0
    %647 = vmatpush1.msra.mxu0 0.0
    %648 = vmatprep.subr.mxu0 0.0
    %649 = vmatpush1.msra.mxu0 0.0
    %650 = vmatprep.subr.mxu0 0.0
    %651 = vmatpush1.msra.mxu0 0.0
    %652 = vmatprep.subr.mxu0 0.0
    %653 = vmatpush1.msra.mxu0 0.0
    %654 = vmatprep.subr.mxu0 0.0
    %655 = vmatpush1.msra.mxu0 0.0
    %656 = vmatprep.subr.mxu0 0.0
    %657 = vmatpush1.msra.mxu0 0.0
    %658 = vmatprep.subr.mxu0 0.0
    %659 = vmatpush1.msra.mxu0 0.0
    %660 = vmatprep.subr.mxu0 0.0
    %661 = vmatpush1.msra.mxu0 0.0
    %662 = vmatprep.subr.mxu0 0.0
    %663 = vmatpush1.msra.mxu0 0.0
    %664 = vmatprep.subr.mxu0 0.0
    %665 = vmatpush1.msra.mxu0 0.0
    %666 = vmatprep.subr.mxu0 0.0
    %667 = vmatpush1.msra.mxu0 0.0
    %668 = vmatprep.mubr.f32.mxu0 0.0
    %v669 = vand.u32 %v595, 4294901760
    %v670 = vsub.f32 %v595, %v669
    %v671 = vand.u32 %v670, 4294901760
    %v672 = vsub.f32 %v670, %v671
    %v673 = vand.u32 %v672, 4294901760
    %674 = vmatmul.mubr.f32.gmra.mrb[0].mxu0 %v673
    %v675 = vpop.f32.mrb[0].mxu0
    %v676 = vadd.f32 0.0, %v675
    %v677 = vpop.f32.mrb[0].mxu0
    %678 = vmatprep.mubr.f32.mxu0 0.0
    %v679 = vand.u32 %v598, 4294901760
    %v680 = vsub.f32 %v598, %v679
    %v681 = vand.u32 %v680, 4294901760
    %v682 = vsub.f32 %v680, %v681
    %v683 = vand.u32 %v682, 4294901760
    %684 = vmatmul.mubr.f32.gmra.mrb[0].mxu0 %v683
    %v685 = vpop.f32.mrb[0].mxu0
    %v686 = vadd.f32 0.0, %v685
    %v687 = vpop.f32.mrb[0].mxu0
    %688 = vdwg.mxu0
    %689 = vmatprep.subr.mxu0 0.0
    %v690 = vand.u32 %v590, 4294901760
    %v691 = vsub.f32 %v590, %v690
    %v692 = vand.u32 %v691, 4294901760
    %v693 = vsub.f32 %v691, %v692
    %v694 = vand.u32 %v693, 4294901760
    %695 = vmatpush1.msra.mxu0 %v694
    %696 = vmatprep.subr.mxu0 0.0
    %v697 = vand.u32 %v591, 4294901760
    %v698 = vsub.f32 %v591, %v697
    %v699 = vand.u32 %v698, 4294901760
    %v700 = vsub.f32 %v698, %v699
    %v701 = vand.u32 %v700, 4294901760
    %702 = vmatpush1.msra.mxu0 %v701
    %703 = vmatprep.subr.mxu0 0.0
    %v704 = vand.u32 %v592, 4294901760
    %v705 = vsub.f32 %v592, %v704
    %v706 = vand.u32 %v705, 4294901760
    %v707 = vsub.f32 %v705, %v706
    %v708 = vand.u32 %v707, 4294901760
    %709 = vmatpush1.msra.mxu0 %v708
    %710 = vmatprep.subr.mxu0 0.0
    %v711 = vand.u32 %v593, 4294901760
    %v712 = vsub.f32 %v593, %v711
    %v713 = vand.u32 %v712, 4294901760
    %v714 = vsub.f32 %v712, %v713
    %v715 = vand.u32 %v714, 4294901760
    %716 = vmatpush1.msra.mxu0 %v715
    %717 = vmatprep.subr.mxu0 0.0
    %718 = vmatpush1.msra.mxu0 0.0
    %719 = vmatprep.subr.mxu0 0.0
    %720 = vmatpush1.msra.mxu0 0.0
    %721 = vmatprep.subr.mxu0 0.0
    %722 = vmatpush1.msra.mxu0 0.0
    %723 = vmatprep.subr.mxu0 0.0
    %724 = vmatpush1.msra.mxu0 0.0
    %725 = vmatprep.subr.mxu0 0.0
    %726 = vmatpush1.msra.mxu0 0.0
    %727 = vmatprep.subr.mxu0 0.0
    %728 = vmatpush1.msra.mxu0 0.0
    %729 = vmatprep.subr.mxu0 0.0
    %730 = vmatpush1.msra.mxu0 0.0
    %731 = vmatprep.subr.mxu0 0.0
    %732 = vmatpush1.msra.mxu0 0.0
    %733 = vmatprep.subr.mxu0 0.0
    %734 = vmatpush1.msra.mxu0 0.0
    %735 = vmatprep.subr.mxu0 0.0
    %736 = vmatpush1.msra.mxu0 0.0
    %737 = vmatprep.subr.mxu0 0.0
    %738 = vmatpush1.msra.mxu0 0.0
    %739 = vmatprep.subr.mxu0 0.0
    %740 = vmatpush1.msra.mxu0 0.0
    %741 = vmatprep.subr.mxu0 0.0
    %742 = vmatpush1.msra.mxu0 0.0
    %743 = vmatprep.subr.mxu0 0.0
    %744 = vmatpush1.msra.mxu0 0.0
    %745 = vmatprep.subr.mxu0 0.0
    %746 = vmatpush1.msra.mxu0 0.0
    %747 = vmatprep.subr.mxu0 0.0
    %748 = vmatpush1.msra.mxu0 0.0
    %749 = vmatprep.subr.mxu0 0.0
    %750 = vmatpush1.msra.mxu0 0.0
    %751 = vmatprep.subr.mxu0 0.0
    %752 = vmatpush1.msra.mxu0 0.0
    %753 = vmatprep.subr.mxu0 0.0
    %754 = vmatpush1.msra.mxu0 0.0
    %755 = vmatprep.subr.mxu0 0.0
    %756 = vmatpush1.msra.mxu0 0.0
    %757 = vmatprep.subr.mxu0 0.0
    %758 = vmatpush1.msra.mxu0 0.0
    %759 = vmatprep.subr.mxu0 0.0
    %760 = vmatpush1.msra.mxu0 0.0
    %761 = vmatprep.subr.mxu0 0.0
    %762 = vmatpush1.msra.mxu0 0.0
    %763 = vmatprep.subr.mxu0 0.0
    %764 = vmatpush1.msra.mxu0 0.0
    %765 = vmatprep.subr.mxu0 0.0
    %766 = vmatpush1.msra.mxu0 0.0
    %767 = vmatprep.subr.mxu0 0.0
    %768 = vmatpush1.msra.mxu0 0.0
    %769 = vmatprep.subr.mxu0 0.0
    %770 = vmatpush1.msra.mxu0 0.0
    %771 = vmatprep.subr.mxu0 0.0
    %772 = vmatpush1.msra.mxu0 0.0
    %773 = vmatprep.mubr.f32.mxu0 0.0
    %v774 = vand.u32 %v595, 4294901760
    %775 = vmatmul.mubr.f32.gmra.mrb[0].mxu0 %v774
    %v776 = vpop.f32.mrb[0].mxu0
    %v777 = vadd.f32 %v676, %v776
    %v778 = vpop.f32.mrb[0].mxu0
    %779 = vmatprep.mubr.f32.mxu0 0.0
    %v780 = vand.u32 %v598, 4294901760
    %781 = vmatmul.mubr.f32.gmra.mrb[0].mxu0 %v780
    %v782 = vpop.f32.mrb[0].mxu0
    %v783 = vadd.f32 %v686, %v782
    %v784 = vpop.f32.mrb[0].mxu0
    %785 = vdwg.mxu0
    %786 = vmatprep.subr.mxu0 0.0
    %v787 = vand.u32 %v590, 4294901760
    %v788 = vsub.f32 %v590, %v787
    %789 = vmatpush1.msra.mxu0 %v788
    %790 = vmatprep.subr.mxu0 0.0
    %v791 = vand.u32 %v591, 4294901760
    %v792 = vsub.f32 %v591, %v791
    %793 = vmatpush1.msra.mxu0 %v792
    %794 = vmatprep.subr.mxu0 0.0
    %v795 = vand.u32 %v592, 4294901760
    %v796 = vsub.f32 %v592, %v795
    %797 = vmatpush1.msra.mxu0 %v796
    %798 = vmatprep.subr.mxu0 0.0
    %v799 = vand.u32 %v593, 4294901760
    %v800 = vsub.f32 %v593, %v799
    %801 = vmatpush1.msra.mxu0 %v800
    %802 = vmatprep.subr.mxu0 0.0
    %803 = vmatpush1.msra.mxu0 0.0
    %804 = vmatprep.subr.mxu0 0.0
    %805 = vmatpush1.msra.mxu0 0.0
    %806 = vmatprep.subr.mxu0 0.0
    %807 = vmatpush1.msra.mxu0 0.0
    %808 = vmatprep.subr.mxu0 0.0
    %809 = vmatpush1.msra.mxu0 0.0
    %810 = vmatprep.subr.mxu0 0.0
    %811 = vmatpush1.msra.mxu0 0.0
    %812 = vmatprep.subr.mxu0 0.0
    %813 = vmatpush1.msra.mxu0 0.0
    %814 = vmatprep.subr.mxu0 0.0
    %815 = vmatpush1.msra.mxu0 0.0
    %816 = vmatprep.subr.mxu0 0.0
    %817 = vmatpush1.msra.mxu0 0.0
    %818 = vmatprep.subr.mxu0 0.0
    %819 = vmatpush1.msra.mxu0 0.0
    %820 = vmatprep.subr.mxu0 0.0
    %821 = vmatpush1.msra.mxu0 0.0
    %822 = vmatprep.subr.mxu0 0.0
    %823 = vmatpush1.msra.mxu0 0.0
    %824 = vmatprep.subr.mxu0 0.0
    %825 = vmatpush1.msra.mxu0 0.0
    %826 = vmatprep.subr.mxu0 0.0
    %827 = vmatpush1.msra.mxu0 0.0
    %828 = vmatprep.subr.mxu0 0.0
    %829 = vmatpush1.msra.mxu0 0.0
    %830 = vmatprep.subr.mxu0 0.0
    %831 = vmatpush1.msra.mxu0 0.0
    %832 = vmatprep.subr.mxu0 0.0
    %833 = vmatpush1.msra.mxu0 0.0
    %834 = vmatprep.subr.mxu0 0.0
    %835 = vmatpush1.msra.mxu0 0.0
    %836 = vmatprep.subr.mxu0 0.0
    %837 = vmatpush1.msra.mxu0 0.0
    %838 = vmatprep.subr.mxu0 0.0
    %839 = vmatpush1.msra.mxu0 0.0
    %840 = vmatprep.subr.mxu0 0.0
    %841 = vmatpush1.msra.mxu0 0.0
    %842 = vmatprep.subr.mxu0 0.0
    %843 = vmatpush1.msra.mxu0 0.0
    %844 = vmatprep.subr.mxu0 0.0
    %845 = vmatpush1.msra.mxu0 0.0
    %846 = vmatprep.subr.mxu0 0.0
    %847 = vmatpush1.msra.mxu0 0.0
    %848 = vmatprep.subr.mxu0 0.0
    %849 = vmatpush1.msra.mxu0 0.0
    %850 = vmatprep.subr.mxu0 0.0
    %851 = vmatpush1.msra.mxu0 0.0
    %852 = vmatprep.subr.mxu0 0.0
    %853 = vmatpush1.msra.mxu0 0.0
    %854 = vmatprep.subr.mxu0 0.0
    %855 = vmatpush1.msra.mxu0 0.0
    %856 = vmatprep.subr.mxu0 0.0
    %857 = vmatpush1.msra.mxu0 0.0
    %858 = vmatprep.mubr.f32.mxu0 0.0
    %v859 = vand.u32 %v595, 4294901760
    %v860 = vsub.f32 %v595, %v859
    %861 = vmatmul.mubr.f32.gmra.mrb[0].mxu0 %v860
    %v862 = vpop.f32.mrb[0].mxu0
    %v863 = vadd.f32 %v777, %v862
    %v864 = vpop.f32.mrb[0].mxu0
    %865 = vmatprep.mubr.f32.mxu0 0.0
    %v866 = vand.u32 %v598, 4294901760
    %v867 = vsub.f32 %v598, %v866
    %868 = vmatmul.mubr.f32.gmra.mrb[0].mxu0 %v867
    %v869 = vpop.f32.mrb[0].mxu0
    %v870 = vadd.f32 %v783, %v869
    %v871 = vpop.f32.mrb[0].mxu0
    %872 = vdwg.mxu0
    %873 = vmatprep.subr.mxu0 0.0
    %v874 = vand.u32 %v590, 4294901760
    %875 = vmatpush1.msra.mxu0 %v874
    %876 = vmatprep.subr.mxu0 0.0
    %v877 = vand.u32 %v591, 4294901760
    %878 = vmatpush1.msra.mxu0 %v877
    %879 = vmatprep.subr.mxu0 0.0
    %v880 = vand.u32 %v592, 4294901760
    %881 = vmatpush1.msra.mxu0 %v880
    %882 = vmatprep.subr.mxu0 0.0
    %v883 = vand.u32 %v593, 4294901760
    %884 = vmatpush1.msra.mxu0 %v883
    %885 = vmatprep.subr.mxu0 0.0
    %886 = vmatpush1.msra.mxu0 0.0
    %887 = vmatprep.subr.mxu0 0.0
    %888 = vmatpush1.msra.mxu0 0.0
    %889 = vmatprep.subr.mxu0 0.0
    %890 = vmatpush1.msra.mxu0 0.0
    %891 = vmatprep.subr.mxu0 0.0
    %892 = vmatpush1.msra.mxu0 0.0
    %893 = vmatprep.subr.mxu0 0.0
    %894 = vmatpush1.msra.mxu0 0.0
    %895 = vmatprep.subr.mxu0 0.0
    %896 = vmatpush1.msra.mxu0 0.0
    %897 = vmatprep.subr.mxu0 0.0
    %898 = vmatpush1.msra.mxu0 0.0
    %899 = vmatprep.subr.mxu0 0.0
    %900 = vmatpush1.msra.mxu0 0.0
    %901 = vmatprep.subr.mxu0 0.0
    %902 = vmatpush1.msra.mxu0 0.0
    %903 = vmatprep.subr.mxu0 0.0
    %904 = vmatpush1.msra.mxu0 0.0
    %905 = vmatprep.subr.mxu0 0.0
    %906 = vmatpush1.msra.mxu0 0.0
    %907 = vmatprep.subr.mxu0 0.0
    %908 = vmatpush1.msra.mxu0 0.0
    %909 = vmatprep.subr.mxu0 0.0
    %910 = vmatpush1.msra.mxu0 0.0
    %911 = vmatprep.subr.mxu0 0.0
    %912 = vmatpush1.msra.mxu0 0.0
    %913 = vmatprep.subr.mxu0 0.0
    %914 = vmatpush1.msra.mxu0 0.0
    %915 = vmatprep.subr.mxu0 0.0
    %916 = vmatpush1.msra.mxu0 0.0
    %917 = vmatprep.subr.mxu0 0.0
    %918 = vmatpush1.msra.mxu0 0.0
    %919 = vmatprep.subr.mxu0 0.0
    %920 = vmatpush1.msra.mxu0 0.0
    %921 = vmatprep.subr.mxu0 0.0
    %922 = vmatpush1.msra.mxu0 0.0
    %923 = vmatprep.subr.mxu0 0.0
    %924 = vmatpush1.msra.mxu0 0.0
    %925 = vmatprep.subr.mxu0 0.0
    %926 = vmatpush1.msra.mxu0 0.0
    %927 = vmatprep.subr.mxu0 0.0
    %928 = vmatpush1.msra.mxu0 0.0
    %929 = vmatprep.subr.mxu0 0.0
    %930 = vmatpush1.msra.mxu0 0.0
    %931 = vmatprep.subr.mxu0 0.0
    %932 = vmatpush1.msra.mxu0 0.0
    %933 = vmatprep.subr.mxu0 0.0
    %934 = vmatpush1.msra.mxu0 0.0
    %935 = vmatprep.subr.mxu0 0.0
    %936 = vmatpush1.msra.mxu0 0.0
    %937 = vmatprep.subr.mxu0 0.0
    %938 = vmatpush1.msra.mxu0 0.0
    %939 = vmatprep.subr.mxu0 0.0
    %940 = vmatpush1.msra.mxu0 0.0
    %941 = vmatprep.mubr.f32.mxu0 0.0
    %v942 = vand.u32 %v595, 4294901760
    %v943 = vsub.f32 %v595, %v942
    %v944 = vand.u32 %v943, 4294901760
    %945 = vmatmul.mubr.f32.gmra.mrb[0].mxu0 %v944
    %v946 = vpop.f32.mrb[0].mxu0
    %v947 = vadd.f32 %v863, %v946
    %v948 = vpop.f32.mrb[0].mxu0
    %949 = vmatprep.mubr.f32.mxu0 0.0
    %v950 = vand.u32 %v598, 4294901760
    %v951 = vsub.f32 %v598, %v950
    %v952 = vand.u32 %v951, 4294901760
    %953 = vmatmul.mubr.f32.gmra.mrb[0].mxu0 %v952
    %v954 = vpop.f32.mrb[0].mxu0
    %v955 = vadd.f32 %v870, %v954
    %v956 = vpop.f32.mrb[0].mxu0
    %957 = vdwg.mxu0
    %958 = vmatprep.subr.mxu0 0.0
    %v959 = vand.u32 %v590, 4294901760
    %v960 = vsub.f32 %v590, %v959
    %v961 = vand.u32 %v960, 4294901760
    %962 = vmatpush1.msra.mxu0 %v961
    %963 = vmatprep.subr.mxu0 0.0
    %v964 = vand.u32 %v591, 4294901760
    %v965 = vsub.f32 %v591, %v964
    %v966 = vand.u32 %v965, 4294901760
    %967 = vmatpush1.msra.mxu0 %v966
    %968 = vmatprep.subr.mxu0 0.0
    %v969 = vand.u32 %v592, 4294901760
    %v970 = vsub.f32 %v592, %v969
    %v971 = vand.u32 %v970, 4294901760
    %972 = vmatpush1.msra.mxu0 %v971
    %973 = vmatprep.subr.mxu0 0.0
    %v974 = vand.u32 %v593, 4294901760
    %v975 = vsub.f32 %v593, %v974
    %v976 = vand.u32 %v975, 4294901760
    %977 = vmatpush1.msra.mxu0 %v976
    %978 = vmatprep.subr.mxu0 0.0
    %979 = vmatpush1.msra.mxu0 0.0
    %980 = vmatprep.subr.mxu0 0.0
    %981 = vmatpush1.msra.mxu0 0.0
    %982 = vmatprep.subr.mxu0 0.0
    %983 = vmatpush1.msra.mxu0 0.0
    %984 = vmatprep.subr.mxu0 0.0
    %985 = vmatpush1.msra.mxu0 0.0
    %986 = vmatprep.subr.mxu0 0.0
    %987 = vmatpush1.msra.mxu0 0.0
    %988 = vmatprep.subr.mxu0 0.0
    %989 = vmatpush1.msra.mxu0 0.0
    %990 = vmatprep.subr.mxu0 0.0
    %991 = vmatpush1.msra.mxu0 0.0
    %992 = vmatprep.subr.mxu0 0.0
    %993 = vmatpush1.msra.mxu0 0.0
    %994 = vmatprep.subr.mxu0 0.0
    %995 = vmatpush1.msra.mxu0 0.0
    %996 = vmatprep.subr.mxu0 0.0
    %997 = vmatpush1.msra.mxu0 0.0
    %998 = vmatprep.subr.mxu0 0.0
    %999 = vmatpush1.msra.mxu0 0.0
    %1000 = vmatprep.subr.mxu0 0.0
    %1001 = vmatpush1.msra.mxu0 0.0
    %1002 = vmatprep.subr.mxu0 0.0
    %1003 = vmatpush1.msra.mxu0 0.0
    %1004 = vmatprep.subr.mxu0 0.0
    %1005 = vmatpush1.msra.mxu0 0.0
    %1006 = vmatprep.subr.mxu0 0.0
    %1007 = vmatpush1.msra.mxu0 0.0
    %1008 = vmatprep.subr.mxu0 0.0
    %1009 = vmatpush1.msra.mxu0 0.0
    %1010 = vmatprep.subr.mxu0 0.0
    %1011 = vmatpush1.msra.mxu0 0.0
    %1012 = vmatprep.subr.mxu0 0.0
    %1013 = vmatpush1.msra.mxu0 0.0
    %1014 = vmatprep.subr.mxu0 0.0
    %1015 = vmatpush1.msra.mxu0 0.0
    %1016 = vmatprep.subr.mxu0 0.0
    %1017 = vmatpush1.msra.mxu0 0.0
    %1018 = vmatprep.subr.mxu0 0.0
    %1019 = vmatpush1.msra.mxu0 0.0
    %1020 = vmatprep.subr.mxu0 0.0
    %1021 = vmatpush1.msra.mxu0 0.0
    %1022 = vmatprep.subr.mxu0 0.0
    %1023 = vmatpush1.msra.mxu0 0.0
    %1024 = vmatprep.subr.mxu0 0.0
    %1025 = vmatpush1.msra.mxu0 0.0
    %1026 = vmatprep.subr.mxu0 0.0
    %1027 = vmatpush1.msra.mxu0 0.0
    %1028 = vmatprep.subr.mxu0 0.0
    %1029 = vmatpush1.msra.mxu0 0.0
    %1030 = vmatprep.subr.mxu0 0.0
    %1031 = vmatpush1.msra.mxu0 0.0
    %1032 = vmatprep.subr.mxu0 0.0
    %1033 = vmatpush1.msra.mxu0 0.0
    %1034 = vmatprep.mubr.f32.mxu0 0.0
    %v1035 = vand.u32 %v595, 4294901760
    %1036 = vmatmul.mubr.f32.gmra.mrb[0].mxu0 %v1035
    %v1037 = vpop.f32.mrb[0].mxu0
    %v1038 = vadd.f32 %v947, %v1037
    %v1039 = vpop.f32.mrb[0].mxu0
    %1040 = vmatprep.mubr.f32.mxu0 0.0
    %v1041 = vand.u32 %v598, 4294901760
    %1042 = vmatmul.mubr.f32.gmra.mrb[0].mxu0 %v1041
    %v1043 = vpop.f32.mrb[0].mxu0
    %v1044 = vadd.f32 %v955, %v1043
    %v1045 = vpop.f32.mrb[0].mxu0
    %1046 = vdwg.mxu0
    %1047 = vmatprep.subr.mxu0 0.0
    %v1048 = vand.u32 %v590, 4294901760
    %1049 = vmatpush1.msra.mxu0 %v1048
    %1050 = vmatprep.subr.mxu0 0.0
    %v1051 = vand.u32 %v591, 4294901760
    %1052 = vmatpush1.msra.mxu0 %v1051
    %1053 = vmatprep.subr.mxu0 0.0
    %v1054 = vand.u32 %v592, 4294901760
    %1055 = vmatpush1.msra.mxu0 %v1054
    %1056 = vmatprep.subr.mxu0 0.0
    %v1057 = vand.u32 %v593, 4294901760
    %1058 = vmatpush1.msra.mxu0 %v1057
    %1059 = vmatprep.subr.mxu0 0.0
    %1060 = vmatpush1.msra.mxu0 0.0
    %1061 = vmatprep.subr.mxu0 0.0
    %1062 = vmatpush1.msra.mxu0 0.0
    %1063 = vmatprep.subr.mxu0 0.0
    %1064 = vmatpush1.msra.mxu0 0.0
    %1065 = vmatprep.subr.mxu0 0.0
    %1066 = vmatpush1.msra.mxu0 0.0
    %1067 = vmatprep.subr.mxu0 0.0
    %1068 = vmatpush1.msra.mxu0 0.0
    %1069 = vmatprep.subr.mxu0 0.0
    %1070 = vmatpush1.msra.mxu0 0.0
    %1071 = vmatprep.subr.mxu0 0.0
    %1072 = vmatpush1.msra.mxu0 0.0
    %1073 = vmatprep.subr.mxu0 0.0
    %1074 = vmatpush1.msra.mxu0 0.0
    %1075 = vmatprep.subr.mxu0 0.0
    %1076 = vmatpush1.msra.mxu0 0.0
    %1077 = vmatprep.subr.mxu0 0.0
    %1078 = vmatpush1.msra.mxu0 0.0
    %1079 = vmatprep.subr.mxu0 0.0
    %1080 = vmatpush1.msra.mxu0 0.0
    %1081 = vmatprep.subr.mxu0 0.0
    %1082 = vmatpush1.msra.mxu0 0.0
    %1083 = vmatprep.subr.mxu0 0.0
    %1084 = vmatpush1.msra.mxu0 0.0
    %1085 = vmatprep.subr.mxu0 0.0
    %1086 = vmatpush1.msra.mxu0 0.0
    %1087 = vmatprep.subr.mxu0 0.0
    %1088 = vmatpush1.msra.mxu0 0.0
    %1089 = vmatprep.subr.mxu0 0.0
    %1090 = vmatpush1.msra.mxu0 0.0
    %1091 = vmatprep.subr.mxu0 0.0
    %1092 = vmatpush1.msra.mxu0 0.0
    %1093 = vmatprep.subr.mxu0 0.0
    %1094 = vmatpush1.msra.mxu0 0.0
    %1095 = vmatprep.subr.mxu0 0.0
    %1096 = vmatpush1.msra.mxu0 0.0
    %1097 = vmatprep.subr.mxu0 0.0
    %1098 = vmatpush1.msra.mxu0 0.0
    %1099 = vmatprep.subr.mxu0 0.0
    %1100 = vmatpush1.msra.mxu0 0.0
    %1101 = vmatprep.subr.mxu0 0.0
    %1102 = vmatpush1.msra.mxu0 0.0
    %1103 = vmatprep.subr.mxu0 0.0
    %1104 = vmatpush1.msra.mxu0 0.0
    %1105 = vmatprep.subr.mxu0 0.0
    %1106 = vmatpush1.msra.mxu0 0.0
    %1107 = vmatprep.subr.mxu0 0.0
    %1108 = vmatpush1.msra.mxu0 0.0
    %1109 = vmatprep.subr.mxu0 0.0
    %1110 = vmatpush1.msra.mxu0 0.0
    %1111 = vmatprep.subr.mxu0 0.0
    %1112 = vmatpush1.msra.mxu0 0.0
    %1113 = vmatprep.subr.mxu0 0.0
    %1114 = vmatpush1.msra.mxu0 0.0
    %1115 = vmatprep.mubr.f32.mxu0 0.0
    %v1116 = vand.u32 %v595, 4294901760
    %1117 = vmatmul.mubr.f32.gmra.mrb[0].mxu0 %v1116
    %v1118 = vpop.f32.mrb[0].mxu0
    %v1119 = vadd.f32 %v1038, %v1118
    %v1120 = vpop.f32.mrb[0].mxu0
    %1121 = vmatprep.mubr.f32.mxu0 0.0
    %v1122 = vand.u32 %v598, 4294901760
    %1123 = vmatmul.mubr.f32.gmra.mrb[0].mxu0 %v1122
    %v1124 = vpop.f32.mrb[0].mxu0
    %v1125 = vadd.f32 %v1044, %v1124
    %v1126 = vpop.f32.mrb[0].mxu0
    %1127 = vdwg.mxu0
    %vm1128 = vcmask 64512
    %v1130 = vsel %vm1128, %v71, 0
    %v1133 = vsel %vm1128, %v72, 0
    %1135 = vmatprep.subr.mxu0 0.0
    %v1136 = vand.u32 %v587, 4294901760
    %1137 = vmatpush1.msra.mxu0 %v1136
    %1138 = vmatprep.subr.mxu0 0.0
    %1139 = vmatpush1.msra.mxu0 0.0
    %1140 = vmatprep.subr.mxu0 0.0
    %1141 = vmatpush1.msra.mxu0 0.0
    %1142 = vmatprep.subr.mxu0 0.0
    %1143 = vmatpush1.msra.mxu0 0.0
    %1144 = vmatprep.subr.mxu0 0.0
    %1145 = vmatpush1.msra.mxu0 0.0
    %1146 = vmatprep.subr.mxu0 0.0
    %1147 = vmatpush1.msra.mxu0 0.0
    %1148 = vmatprep.subr.mxu0 0.0
    %1149 = vmatpush1.msra.mxu0 0.0
    %1150 = vmatprep.subr.mxu0 0.0
    %1151 = vmatpush1.msra.mxu0 0.0
    %1152 = vmatprep.subr.mxu0 0.0
    %1153 = vmatpush1.msra.mxu0 0.0
    %1154 = vmatprep.subr.mxu0 0.0
    %1155 = vmatpush1.msra.mxu0 0.0
    %1156 = vmatprep.subr.mxu0 0.0
    %1157 = vmatpush1.msra.mxu0 0.0
    %1158 = vmatprep.subr.mxu0 0.0
    %1159 = vmatpush1.msra.mxu0 0.0
    %1160 = vmatprep.subr.mxu0 0.0
    %1161 = vmatpush1.msra.mxu0 0.0
    %1162 = vmatprep.subr.mxu0 0.0
    %1163 = vmatpush1.msra.mxu0 0.0
    %1164 = vmatprep.subr.mxu0 0.0
    %1165 = vmatpush1.msra.mxu0 0.0
    %1166 = vmatprep.subr.mxu0 0.0
    %1167 = vmatpush1.msra.mxu0 0.0
    %1168 = vmatprep.subr.mxu0 0.0
    %1169 = vmatpush1.msra.mxu0 0.0
    %1170 = vmatprep.subr.mxu0 0.0
    %1171 = vmatpush1.msra.mxu0 0.0
    %1172 = vmatprep.subr.mxu0 0.0
    %1173 = vmatpush1.msra.mxu0 0.0
    %1174 = vmatprep.subr.mxu0 0.0
    %1175 = vmatpush1.msra.mxu0 0.0
    %1176 = vmatprep.subr.mxu0 0.0
    %1177 = vmatpush1.msra.mxu0 0.0
    %1178 = vmatprep.subr.mxu0 0.0
    %1179 = vmatpush1.msra.mxu0 0.0
    %1180 = vmatprep.subr.mxu0 0.0
    %1181 = vmatpush1.msra.mxu0 0.0
    %1182 = vmatprep.subr.mxu0 0.0
    %1183 = vmatpush1.msra.mxu0 0.0
    %1184 = vmatprep.subr.mxu0 0.0
    %1185 = vmatpush1.msra.mxu0 0.0
    %1186 = vmatprep.subr.mxu0 0.0
    %1187 = vmatpush1.msra.mxu0 0.0
    %1188 = vmatprep.subr.mxu0 0.0
    %1189 = vmatpush1.msra.mxu0 0.0
    %1190 = vmatprep.subr.mxu0 0.0
    %1191 = vmatpush1.msra.mxu0 0.0
    %1192 = vmatprep.subr.mxu0 0.0
    %1193 = vmatpush1.msra.mxu0 0.0
    %1194 = vmatprep.subr.mxu0 0.0
    %1195 = vmatpush1.msra.mxu0 0.0
    %1196 = vmatprep.subr.mxu0 0.0
    %1197 = vmatpush1.msra.mxu0 0.0
    %1198 = vmatprep.subr.mxu0 0.0
    %1199 = vmatpush1.msra.mxu0 0.0
    %1200 = vmatprep.mubr.f32.mxu0 0.0
    %v1201 = vand.u32 %v1130, 4294901760
    %v1202 = vsub.f32 %v1130, %v1201
    %v1203 = vand.u32 %v1202, 4294901760
    %v1204 = vsub.f32 %v1202, %v1203
    %v1205 = vand.u32 %v1204, 4294901760
    %1206 = vmatmul.mubr.f32.gmra.mrb[0].mxu0 %v1205
    %v1207 = vpop.f32.mrb[0].mxu0
    %v1208 = vadd.f32 0.0, %v1207
    %v1209 = vpop.f32.mrb[0].mxu0
    %1210 = vmatprep.mubr.f32.mxu0 0.0
    %v1211 = vand.u32 %v1133, 4294901760
    %v1212 = vsub.f32 %v1133, %v1211
    %v1213 = vand.u32 %v1212, 4294901760
    %v1214 = vsub.f32 %v1212, %v1213
    %v1215 = vand.u32 %v1214, 4294901760
    %1216 = vmatmul.mubr.f32.gmra.mrb[0].mxu0 %v1215
    %v1217 = vpop.f32.mrb[0].mxu0
    %v1218 = vadd.f32 0.0, %v1217
    %v1219 = vpop.f32.mrb[0].mxu0
    %1220 = vdwg.mxu0
    %1221 = vmatprep.subr.mxu0 0.0
    %v1222 = vand.u32 %v587, 4294901760
    %v1223 = vsub.f32 %v587, %v1222
    %v1224 = vand.u32 %v1223, 4294901760
    %v1225 = vsub.f32 %v1223, %v1224
    %v1226 = vand.u32 %v1225, 4294901760
    %1227 = vmatpush1.msra.mxu0 %v1226
    %1228 = vmatprep.subr.mxu0 0.0
    %1229 = vmatpush1.msra.mxu0 0.0
    %1230 = vmatprep.subr.mxu0 0.0
    %1231 = vmatpush1.msra.mxu0 0.0
    %1232 = vmatprep.subr.mxu0 0.0
    %1233 = vmatpush1.msra.mxu0 0.0
    %1234 = vmatprep.subr.mxu0 0.0
    %1235 = vmatpush1.msra.mxu0 0.0
    %1236 = vmatprep.subr.mxu0 0.0
    %1237 = vmatpush1.msra.mxu0 0.0
    %1238 = vmatprep.subr.mxu0 0.0
    %1239 = vmatpush1.msra.mxu0 0.0
    %1240 = vmatprep.subr.mxu0 0.0
    %1241 = vmatpush1.msra.mxu0 0.0
    %1242 = vmatprep.subr.mxu0 0.0
    %1243 = vmatpush1.msra.mxu0 0.0
    %1244 = vmatprep.subr.mxu0 0.0
    %1245 = vmatpush1.msra.mxu0 0.0
    %1246 = vmatprep.subr.mxu0 0.0
    %1247 = vmatpush1.msra.mxu0 0.0
    %1248 = vmatprep.subr.mxu0 0.0
    %1249 = vmatpush1.msra.mxu0 0.0
    %1250 = vmatprep.subr.mxu0 0.0
    %1251 = vmatpush1.msra.mxu0 0.0
    %1252 = vmatprep.subr.mxu0 0.0
    %1253 = vmatpush1.msra.mxu0 0.0
    %1254 = vmatprep.subr.mxu0 0.0
    %1255 = vmatpush1.msra.mxu0 0.0
    %1256 = vmatprep.subr.mxu0 0.0
    %1257 = vmatpush1.msra.mxu0 0.0
    %1258 = vmatprep.subr.mxu0 0.0
    %1259 = vmatpush1.msra.mxu0 0.0
    %1260 = vmatprep.subr.mxu0 0.0
    %1261 = vmatpush1.msra.mxu0 0.0
    %1262 = vmatprep.subr.mxu0 0.0
    %1263 = vmatpush1.msra.mxu0 0.0
    %1264 = vmatprep.subr.mxu0 0.0
    %1265 = vmatpush1.msra.mxu0 0.0
    %1266 = vmatprep.subr.mxu0 0.0
    %1267 = vmatpush1.msra.mxu0 0.0
    %1268 = vmatprep.subr.mxu0 0.0
    %1269 = vmatpush1.msra.mxu0 0.0
    %1270 = vmatprep.subr.mxu0 0.0
    %1271 = vmatpush1.msra.mxu0 0.0
    %1272 = vmatprep.subr.mxu0 0.0
    %1273 = vmatpush1.msra.mxu0 0.0
    %1274 = vmatprep.subr.mxu0 0.0
    %1275 = vmatpush1.msra.mxu0 0.0
    %1276 = vmatprep.subr.mxu0 0.0
    %1277 = vmatpush1.msra.mxu0 0.0
    %1278 = vmatprep.subr.mxu0 0.0
    %1279 = vmatpush1.msra.mxu0 0.0
    %1280 = vmatprep.subr.mxu0 0.0
    %1281 = vmatpush1.msra.mxu0 0.0
    %1282 = vmatprep.subr.mxu0 0.0
    %1283 = vmatpush1.msra.mxu0 0.0
    %1284 = vmatprep.subr.mxu0 0.0
    %1285 = vmatpush1.msra.mxu0 0.0
    %1286 = vmatprep.subr.mxu0 0.0
    %1287 = vmatpush1.msra.mxu0 0.0
    %1288 = vmatprep.subr.mxu0 0.0
    %1289 = vmatpush1.msra.mxu0 0.0
    %1290 = vmatprep.mubr.f32.mxu0 0.0
    %v1291 = vand.u32 %v1130, 4294901760
    %1292 = vmatmul.mubr.f32.gmra.mrb[0].mxu0 %v1291
    %v1293 = vpop.f32.mrb[0].mxu0
    %v1294 = vadd.f32 %v1208, %v1293
    %v1295 = vpop.f32.mrb[0].mxu0
    %1296 = vmatprep.mubr.f32.mxu0 0.0
    %v1297 = vand.u32 %v1133, 4294901760
    %1298 = vmatmul.mubr.f32.gmra.mrb[0].mxu0 %v1297
    %v1299 = vpop.f32.mrb[0].mxu0
    %v1300 = vadd.f32 %v1218, %v1299
    %v1301 = vpop.f32.mrb[0].mxu0
    %1302 = vdwg.mxu0
    %1303 = vmatprep.subr.mxu0 0.0
    %v1304 = vand.u32 %v587, 4294901760
    %v1305 = vsub.f32 %v587, %v1304
    %1306 = vmatpush1.msra.mxu0 %v1305
    %1307 = vmatprep.subr.mxu0 0.0
    %1308 = vmatpush1.msra.mxu0 0.0
    %1309 = vmatprep.subr.mxu0 0.0
    %1310 = vmatpush1.msra.mxu0 0.0
    %1311 = vmatprep.subr.mxu0 0.0
    %1312 = vmatpush1.msra.mxu0 0.0
    %1313 = vmatprep.subr.mxu0 0.0
    %1314 = vmatpush1.msra.mxu0 0.0
    %1315 = vmatprep.subr.mxu0 0.0
    %1316 = vmatpush1.msra.mxu0 0.0
    %1317 = vmatprep.subr.mxu0 0.0
    %1318 = vmatpush1.msra.mxu0 0.0
    %1319 = vmatprep.subr.mxu0 0.0
    %1320 = vmatpush1.msra.mxu0 0.0
    %1321 = vmatprep.subr.mxu0 0.0
    %1322 = vmatpush1.msra.mxu0 0.0
    %1323 = vmatprep.subr.mxu0 0.0
    %1324 = vmatpush1.msra.mxu0 0.0
    %1325 = vmatprep.subr.mxu0 0.0
    %1326 = vmatpush1.msra.mxu0 0.0
    %1327 = vmatprep.subr.mxu0 0.0
    %1328 = vmatpush1.msra.mxu0 0.0
    %1329 = vmatprep.subr.mxu0 0.0
    %1330 = vmatpush1.msra.mxu0 0.0
    %1331 = vmatprep.subr.mxu0 0.0
    %1332 = vmatpush1.msra.mxu0 0.0
    %1333 = vmatprep.subr.mxu0 0.0
    %1334 = vmatpush1.msra.mxu0 0.0
    %1335 = vmatprep.subr.mxu0 0.0
    %1336 = vmatpush1.msra.mxu0 0.0
    %1337 = vmatprep.subr.mxu0 0.0
    %1338 = vmatpush1.msra.mxu0 0.0
    %1339 = vmatprep.subr.mxu0 0.0
    %1340 = vmatpush1.msra.mxu0 0.0
    %1341 = vmatprep.subr.mxu0 0.0
    %1342 = vmatpush1.msra.mxu0 0.0
    %1343 = vmatprep.subr.mxu0 0.0
    %1344 = vmatpush1.msra.mxu0 0.0
    %1345 = vmatprep.subr.mxu0 0.0
    %1346 = vmatpush1.msra.mxu0 0.0
    %1347 = vmatprep.subr.mxu0 0.0
    %1348 = vmatpush1.msra.mxu0 0.0
    %1349 = vmatprep.subr.mxu0 0.0
    %1350 = vmatpush1.msra.mxu0 0.0
    %1351 = vmatprep.subr.mxu0 0.0
    %1352 = vmatpush1.msra.mxu0 0.0
    %1353 = vmatprep.subr.mxu0 0.0
    %1354 = vmatpush1.msra.mxu0 0.0
    %1355 = vmatprep.subr.mxu0 0.0
    %1356 = vmatpush1.msra.mxu0 0.0
    %1357 = vmatprep.subr.mxu0 0.0
    %1358 = vmatpush1.msra.mxu0 0.0
    %1359 = vmatprep.subr.mxu0 0.0
    %1360 = vmatpush1.msra.mxu0 0.0
    %1361 = vmatprep.subr.mxu0 0.0
    %1362 = vmatpush1.msra.mxu0 0.0
    %1363 = vmatprep.subr.mxu0 0.0
    %1364 = vmatpush1.msra.mxu0 0.0
    %1365 = vmatprep.subr.mxu0 0.0
    %1366 = vmatpush1.msra.mxu0 0.0
    %1367 = vmatprep.subr.mxu0 0.0
    %1368 = vmatpush1.msra.mxu0 0.0
    %1369 = vmatprep.mubr.f32.mxu0 0.0
    %v1370 = vand.u32 %v1130, 4294901760
    %v1371 = vsub.f32 %v1130, %v1370
    %1372 = vmatmul.mubr.f32.gmra.mrb[0].mxu0 %v1371
    %v1373 = vpop.f32.mrb[0].mxu0
    %v1374 = vadd.f32 %v1294, %v1373
    %v1375 = vpop.f32.mrb[0].mxu0
    %1376 = vmatprep.mubr.f32.mxu0 0.0
    %v1377 = vand.u32 %v1133, 4294901760
    %v1378 = vsub.f32 %v1133, %v1377
    %1379 = vmatmul.mubr.f32.gmra.mrb[0].mxu0 %v1378
    %v1380 = vpop.f32.mrb[0].mxu0
    %v1381 = vadd.f32 %v1300, %v1380
    %v1382 = vpop.f32.mrb[0].mxu0
    %1383 = vdwg.mxu0
    %1384 = vmatprep.subr.mxu0 0.0
    %v1385 = vand.u32 %v587, 4294901760
    %1386 = vmatpush1.msra.mxu0 %v1385
    %1387 = vmatprep.subr.mxu0 0.0
    %1388 = vmatpush1.msra.mxu0 0.0
    %1389 = vmatprep.subr.mxu0 0.0
    %1390 = vmatpush1.msra.mxu0 0.0
    %1391 = vmatprep.subr.mxu0 0.0
    %1392 = vmatpush1.msra.mxu0 0.0
    %1393 = vmatprep.subr.mxu0 0.0
    %1394 = vmatpush1.msra.mxu0 0.0
    %1395 = vmatprep.subr.mxu0 0.0
    %1396 = vmatpush1.msra.mxu0 0.0
    %1397 = vmatprep.subr.mxu0 0.0
    %1398 = vmatpush1.msra.mxu0 0.0
    %1399 = vmatprep.subr.mxu0 0.0
    %1400 = vmatpush1.msra.mxu0 0.0
    %1401 = vmatprep.subr.mxu0 0.0
    %1402 = vmatpush1.msra.mxu0 0.0
    %1403 = vmatprep.subr.mxu0 0.0
    %1404 = vmatpush1.msra.mxu0 0.0
    %1405 = vmatprep.subr.mxu0 0.0
    %1406 = vmatpush1.msra.mxu0 0.0
    %1407 = vmatprep.subr.mxu0 0.0
    %1408 = vmatpush1.msra.mxu0 0.0
    %1409 = vmatprep.subr.mxu0 0.0
    %1410 = vmatpush1.msra.mxu0 0.0
    %1411 = vmatprep.subr.mxu0 0.0
    %1412 = vmatpush1.msra.mxu0 0.0
    %1413 = vmatprep.subr.mxu0 0.0
    %1414 = vmatpush1.msra.mxu0 0.0
    %1415 = vmatprep.subr.mxu0 0.0
    %1416 = vmatpush1.msra.mxu0 0.0
    %1417 = vmatprep.subr.mxu0 0.0
    %1418 = vmatpush1.msra.mxu0 0.0
    %1419 = vmatprep.subr.mxu0 0.0
    %1420 = vmatpush1.msra.mxu0 0.0
    %1421 = vmatprep.subr.mxu0 0.0
    %1422 = vmatpush1.msra.mxu0 0.0
    %1423 = vmatprep.subr.mxu0 0.0
    %1424 = vmatpush1.msra.mxu0 0.0
    %1425 = vmatprep.subr.mxu0 0.0
    %1426 = vmatpush1.msra.mxu0 0.0
    %1427 = vmatprep.subr.mxu0 0.0
    %1428 = vmatpush1.msra.mxu0 0.0
    %1429 = vmatprep.subr.mxu0 0.0
    %1430 = vmatpush1.msra.mxu0 0.0
    %1431 = vmatprep.subr.mxu0 0.0
    %1432 = vmatpush1.msra.mxu0 0.0
    %1433 = vmatprep.subr.mxu0 0.0
    %1434 = vmatpush1.msra.mxu0 0.0
    %1435 = vmatprep.subr.mxu0 0.0
    %1436 = vmatpush1.msra.mxu0 0.0
    %1437 = vmatprep.subr.mxu0 0.0
    %1438 = vmatpush1.msra.mxu0 0.0
    %1439 = vmatprep.subr.mxu0 0.0
    %1440 = vmatpush1.msra.mxu0 0.0
    %1441 = vmatprep.subr.mxu0 0.0
    %1442 = vmatpush1.msra.mxu0 0.0
    %1443 = vmatprep.subr.mxu0 0.0
    %1444 = vmatpush1.msra.mxu0 0.0
    %1445 = vmatprep.subr.mxu0 0.0
    %1446 = vmatpush1.msra.mxu0 0.0
    %1447 = vmatprep.subr.mxu0 0.0
    %1448 = vmatpush1.msra.mxu0 0.0
    %1449 = vmatprep.mubr.f32.mxu0 0.0
    %v1450 = vand.u32 %v1130, 4294901760
    %v1451 = vsub.f32 %v1130, %v1450
    %v1452 = vand.u32 %v1451, 4294901760
    %1453 = vmatmul.mubr.f32.gmra.mrb[0].mxu0 %v1452
    %v1454 = vpop.f32.mrb[0].mxu0
    %v1455 = vadd.f32 %v1374, %v1454
    %v1456 = vpop.f32.mrb[0].mxu0
    %1457 = vmatprep.mubr.f32.mxu0 0.0
    %v1458 = vand.u32 %v1133, 4294901760
    %v1459 = vsub.f32 %v1133, %v1458
    %v1460 = vand.u32 %v1459, 4294901760
    %1461 = vmatmul.mubr.f32.gmra.mrb[0].mxu0 %v1460
    %v1462 = vpop.f32.mrb[0].mxu0
    %v1463 = vadd.f32 %v1381, %v1462
    %v1464 = vpop.f32.mrb[0].mxu0
    %1465 = vdwg.mxu0
    %1466 = vmatprep.subr.mxu0 0.0
    %v1467 = vand.u32 %v587, 4294901760
    %v1468 = vsub.f32 %v587, %v1467
    %v1469 = vand.u32 %v1468, 4294901760
    %1470 = vmatpush1.msra.mxu0 %v1469
    %1471 = vmatprep.subr.mxu0 0.0
    %1472 = vmatpush1.msra.mxu0 0.0
    %1473 = vmatprep.subr.mxu0 0.0
    %1474 = vmatpush1.msra.mxu0 0.0
    %1475 = vmatprep.subr.mxu0 0.0
    %1476 = vmatpush1.msra.mxu0 0.0
    %1477 = vmatprep.subr.mxu0 0.0
    %1478 = vmatpush1.msra.mxu0 0.0
    %1479 = vmatprep.subr.mxu0 0.0
    %1480 = vmatpush1.msra.mxu0 0.0
    %1481 = vmatprep.subr.mxu0 0.0
    %1482 = vmatpush1.msra.mxu0 0.0
    %1483 = vmatprep.subr.mxu0 0.0
    %1484 = vmatpush1.msra.mxu0 0.0
    %1485 = vmatprep.subr.mxu0 0.0
    %1486 = vmatpush1.msra.mxu0 0.0
    %1487 = vmatprep.subr.mxu0 0.0
    %1488 = vmatpush1.msra.mxu0 0.0
    %1489 = vmatprep.subr.mxu0 0.0
    %1490 = vmatpush1.msra.mxu0 0.0
    %1491 = vmatprep.subr.mxu0 0.0
    %1492 = vmatpush1.msra.mxu0 0.0
    %1493 = vmatprep.subr.mxu0 0.0
    %1494 = vmatpush1.msra.mxu0 0.0
    %1495 = vmatprep.subr.mxu0 0.0
    %1496 = vmatpush1.msra.mxu0 0.0
    %1497 = vmatprep.subr.mxu0 0.0
    %1498 = vmatpush1.msra.mxu0 0.0
    %1499 = vmatprep.subr.mxu0 0.0
    %1500 = vmatpush1.msra.mxu0 0.0
    %1501 = vmatprep.subr.mxu0 0.0
    %1502 = vmatpush1.msra.mxu0 0.0
    %1503 = vmatprep.subr.mxu0 0.0
    %1504 = vmatpush1.msra.mxu0 0.0
    %1505 = vmatprep.subr.mxu0 0.0
    %1506 = vmatpush1.msra.mxu0 0.0
    %1507 = vmatprep.subr.mxu0 0.0
    %1508 = vmatpush1.msra.mxu0 0.0
    %1509 = vmatprep.subr.mxu0 0.0
    %1510 = vmatpush1.msra.mxu0 0.0
    %1511 = vmatprep.subr.mxu0 0.0
    %1512 = vmatpush1.msra.mxu0 0.0
    %1513 = vmatprep.subr.mxu0 0.0
    %1514 = vmatpush1.msra.mxu0 0.0
    %1515 = vmatprep.subr.mxu0 0.0
    %1516 = vmatpush1.msra.mxu0 0.0
    %1517 = vmatprep.subr.mxu0 0.0
    %1518 = vmatpush1.msra.mxu0 0.0
    %1519 = vmatprep.subr.mxu0 0.0
    %1520 = vmatpush1.msra.mxu0 0.0
    %1521 = vmatprep.subr.mxu0 0.0
    %1522 = vmatpush1.msra.mxu0 0.0
    %1523 = vmatprep.subr.mxu0 0.0
    %1524 = vmatpush1.msra.mxu0 0.0
    %1525 = vmatprep.subr.mxu0 0.0
    %1526 = vmatpush1.msra.mxu0 0.0
    %1527 = vmatprep.subr.mxu0 0.0
    %1528 = vmatpush1.msra.mxu0 0.0
    %1529 = vmatprep.subr.mxu0 0.0
    %1530 = vmatpush1.msra.mxu0 0.0
    %1531 = vmatprep.subr.mxu0 0.0
    %1532 = vmatpush1.msra.mxu0 0.0
    %1533 = vmatprep.mubr.f32.mxu0 0.0
    %v1534 = vand.u32 %v1130, 4294901760
    %1535 = vmatmul.mubr.f32.gmra.mrb[0].mxu0 %v1534
    %v1536 = vpop.f32.mrb[0].mxu0
    %v1537 = vadd.f32 %v1455, %v1536
    %v1538 = vpop.f32.mrb[0].mxu0
    %1539 = vmatprep.mubr.f32.mxu0 0.0
    %v1540 = vand.u32 %v1133, 4294901760
    %1541 = vmatmul.mubr.f32.gmra.mrb[0].mxu0 %v1540
    %v1542 = vpop.f32.mrb[0].mxu0
    %v1543 = vadd.f32 %v1463, %v1542
    %v1544 = vpop.f32.mrb[0].mxu0
    %1545 = vdwg.mxu0
    %1546 = vmatprep.subr.mxu0 0.0
    %v1547 = vand.u32 %v587, 4294901760
    %1548 = vmatpush1.msra.mxu0 %v1547
    %1549 = vmatprep.subr.mxu0 0.0
    %1550 = vmatpush1.msra.mxu0 0.0
    %1551 = vmatprep.subr.mxu0 0.0
    %1552 = vmatpush1.msra.mxu0 0.0
    %1553 = vmatprep.subr.mxu0 0.0
    %1554 = vmatpush1.msra.mxu0 0.0
    %1555 = vmatprep.subr.mxu0 0.0
    %1556 = vmatpush1.msra.mxu0 0.0
    %1557 = vmatprep.subr.mxu0 0.0
    %1558 = vmatpush1.msra.mxu0 0.0
    %1559 = vmatprep.subr.mxu0 0.0
    %1560 = vmatpush1.msra.mxu0 0.0
    %1561 = vmatprep.subr.mxu0 0.0
    %1562 = vmatpush1.msra.mxu0 0.0
    %1563 = vmatprep.subr.mxu0 0.0
    %1564 = vmatpush1.msra.mxu0 0.0
    %1565 = vmatprep.subr.mxu0 0.0
    %1566 = vmatpush1.msra.mxu0 0.0
    %1567 = vmatprep.subr.mxu0 0.0
    %1568 = vmatpush1.msra.mxu0 0.0
    %1569 = vmatprep.subr.mxu0 0.0
    %1570 = vmatpush1.msra.mxu0 0.0
    %1571 = vmatprep.subr.mxu0 0.0
    %1572 = vmatpush1.msra.mxu0 0.0
    %1573 = vmatprep.subr.mxu0 0.0
    %1574 = vmatpush1.msra.mxu0 0.0
    %1575 = vmatprep.subr.mxu0 0.0
    %1576 = vmatpush1.msra.mxu0 0.0
    %1577 = vmatprep.subr.mxu0 0.0
    %1578 = vmatpush1.msra.mxu0 0.0
    %1579 = vmatprep.subr.mxu0 0.0
    %1580 = vmatpush1.msra.mxu0 0.0
    %1581 = vmatprep.subr.mxu0 0.0
    %1582 = vmatpush1.msra.mxu0 0.0
    %1583 = vmatprep.subr.mxu0 0.0
    %1584 = vmatpush1.msra.mxu0 0.0
    %1585 = vmatprep.subr.mxu0 0.0
    %1586 = vmatpush1.msra.mxu0 0.0
    %1587 = vmatprep.subr.mxu0 0.0
    %1588 = vmatpush1.msra.mxu0 0.0
    %1589 = vmatprep.subr.mxu0 0.0
    %1590 = vmatpush1.msra.mxu0 0.0
    %1591 = vmatprep.subr.mxu0 0.0
    %1592 = vmatpush1.msra.mxu0 0.0
    %1593 = vmatprep.subr.mxu0 0.0
    %1594 = vmatpush1.msra.mxu0 0.0
    %1595 = vmatprep.subr.mxu0 0.0
    %1596 = vmatpush1.msra.mxu0 0.0
    %1597 = vmatprep.subr.mxu0 0.0
    %1598 = vmatpush1.msra.mxu0 0.0
    %1599 = vmatprep.subr.mxu0 0.0
    %1600 = vmatpush1.msra.mxu0 0.0
    %1601 = vmatprep.subr.mxu0 0.0
    %1602 = vmatpush1.msra.mxu0 0.0
    %1603 = vmatprep.subr.mxu0 0.0
    %1604 = vmatpush1.msra.mxu0 0.0
    %1605 = vmatprep.subr.mxu0 0.0
    %1606 = vmatpush1.msra.mxu0 0.0
    %1607 = vmatprep.subr.mxu0 0.0
    %1608 = vmatpush1.msra.mxu0 0.0
    %1609 = vmatprep.subr.mxu0 0.0
    %1610 = vmatpush1.msra.mxu0 0.0
    %1611 = vmatprep.mubr.f32.mxu0 0.0
    %v1612 = vand.u32 %v1130, 4294901760
    %1613 = vmatmul.mubr.f32.gmra.mrb[0].mxu0 %v1612
    %v1614 = vpop.f32.mrb[0].mxu0
    %v1615 = vadd.f32 %v1537, %v1614
    %v1616 = vpop.f32.mrb[0].mxu0
    %1617 = vmatprep.mubr.f32.mxu0 0.0
    %v1618 = vand.u32 %v1133, 4294901760
    %1619 = vmatmul.mubr.f32.gmra.mrb[0].mxu0 %v1618
    %v1620 = vpop.f32.mrb[0].mxu0
    %v1621 = vadd.f32 %v1543, %v1620
    %v1622 = vpop.f32.mrb[0].mxu0
    %1623 = vdwg.mxu0
    %1625 = vrot.lane.b32.xlu0 %v587, 96
    %v1626 = vpop.permute.xlu0 %1625
    %v1629 = vsel %vm1128, %v85, 0
    %v1632 = vsel %vm1128, %v86, 0
    %1634 = vmatprep.subr.mxu0 0.0
    %v1635 = vand.u32 %v1626, 4294901760
    %1636 = vmatpush1.msra.mxu0 %v1635
    %1637 = vmatprep.subr.mxu0 0.0
    %1638 = vmatpush1.msra.mxu0 0.0
    %1639 = vmatprep.subr.mxu0 0.0
    %1640 = vmatpush1.msra.mxu0 0.0
    %1641 = vmatprep.subr.mxu0 0.0
    %1642 = vmatpush1.msra.mxu0 0.0
    %1643 = vmatprep.subr.mxu0 0.0
    %1644 = vmatpush1.msra.mxu0 0.0
    %1645 = vmatprep.subr.mxu0 0.0
    %1646 = vmatpush1.msra.mxu0 0.0
    %1647 = vmatprep.subr.mxu0 0.0
    %1648 = vmatpush1.msra.mxu0 0.0
    %1649 = vmatprep.subr.mxu0 0.0
    %1650 = vmatpush1.msra.mxu0 0.0
    %1651 = vmatprep.subr.mxu0 0.0
    %1652 = vmatpush1.msra.mxu0 0.0
    %1653 = vmatprep.subr.mxu0 0.0
    %1654 = vmatpush1.msra.mxu0 0.0
    %1655 = vmatprep.subr.mxu0 0.0
    %1656 = vmatpush1.msra.mxu0 0.0
    %1657 = vmatprep.subr.mxu0 0.0
    %1658 = vmatpush1.msra.mxu0 0.0
    %1659 = vmatprep.subr.mxu0 0.0
    %1660 = vmatpush1.msra.mxu0 0.0
    %1661 = vmatprep.subr.mxu0 0.0
    %1662 = vmatpush1.msra.mxu0 0.0
    %1663 = vmatprep.subr.mxu0 0.0
    %1664 = vmatpush1.msra.mxu0 0.0
    %1665 = vmatprep.subr.mxu0 0.0
    %1666 = vmatpush1.msra.mxu0 0.0
    %1667 = vmatprep.subr.mxu0 0.0
    %1668 = vmatpush1.msra.mxu0 0.0
    %1669 = vmatprep.subr.mxu0 0.0
    %1670 = vmatpush1.msra.mxu0 0.0
    %1671 = vmatprep.subr.mxu0 0.0
    %1672 = vmatpush1.msra.mxu0 0.0
    %1673 = vmatprep.subr.mxu0 0.0
    %1674 = vmatpush1.msra.mxu0 0.0
    %1675 = vmatprep.subr.mxu0 0.0
    %1676 = vmatpush1.msra.mxu0 0.0
    %1677 = vmatprep.subr.mxu0 0.0
    %1678 = vmatpush1.msra.mxu0 0.0
    %1679 = vmatprep.subr.mxu0 0.0
    %1680 = vmatpush1.msra.mxu0 0.0
    %1681 = vmatprep.subr.mxu0 0.0
    %1682 = vmatpush1.msra.mxu0 0.0
    %1683 = vmatprep.subr.mxu0 0.0
    %1684 = vmatpush1.msra.mxu0 0.0
    %1685 = vmatprep.subr.mxu0 0.0
    %1686 = vmatpush1.msra.mxu0 0.0
    %1687 = vmatprep.subr.mxu0 0.0
    %1688 = vmatpush1.msra.mxu0 0.0
    %1689 = vmatprep.subr.mxu0 0.0
    %1690 = vmatpush1.msra.mxu0 0.0
    %1691 = vmatprep.subr.mxu0 0.0
    %1692 = vmatpush1.msra.mxu0 0.0
    %1693 = vmatprep.subr.mxu0 0.0
    %1694 = vmatpush1.msra.mxu0 0.0
    %1695 = vmatprep.subr.mxu0 0.0
    %1696 = vmatpush1.msra.mxu0 0.0
    %1697 = vmatprep.subr.mxu0 0.0
    %1698 = vmatpush1.msra.mxu0 0.0
    %1699 = vmatprep.mubr.f32.mxu0 0.0
    %v1700 = vand.u32 %v1629, 4294901760
    %v1701 = vsub.f32 %v1629, %v1700
    %v1702 = vand.u32 %v1701, 4294901760
    %v1703 = vsub.f32 %v1701, %v1702
    %v1704 = vand.u32 %v1703, 4294901760
    %1705 = vmatmul.mubr.f32.gmra.mrb[0].mxu0 %v1704
    %v1706 = vpop.f32.mrb[0].mxu0
    %v1707 = vadd.f32 0.0, %v1706
    %v1708 = vpop.f32.mrb[0].mxu0
    %1709 = vmatprep.mubr.f32.mxu0 0.0
    %v1710 = vand.u32 %v1632, 4294901760
    %v1711 = vsub.f32 %v1632, %v1710
    %v1712 = vand.u32 %v1711, 4294901760
    %v1713 = vsub.f32 %v1711, %v1712
    %v1714 = vand.u32 %v1713, 4294901760
    %1715 = vmatmul.mubr.f32.gmra.mrb[0].mxu0 %v1714
    %v1716 = vpop.f32.mrb[0].mxu0
    %v1717 = vadd.f32 0.0, %v1716
    %v1718 = vpop.f32.mrb[0].mxu0
    %1719 = vdwg.mxu0
    %1720 = vmatprep.subr.mxu0 0.0
    %v1721 = vand.u32 %v1626, 4294901760
    %v1722 = vsub.f32 %v1626, %v1721
    %v1723 = vand.u32 %v1722, 4294901760
    %v1724 = vsub.f32 %v1722, %v1723
    %v1725 = vand.u32 %v1724, 4294901760
    %1726 = vmatpush1.msra.mxu0 %v1725
    %1727 = vmatprep.subr.mxu0 0.0
    %1728 = vmatpush1.msra.mxu0 0.0
    %1729 = vmatprep.subr.mxu0 0.0
    %1730 = vmatpush1.msra.mxu0 0.0
    %1731 = vmatprep.subr.mxu0 0.0
    %1732 = vmatpush1.msra.mxu0 0.0
    %1733 = vmatprep.subr.mxu0 0.0
    %1734 = vmatpush1.msra.mxu0 0.0
    %1735 = vmatprep.subr.mxu0 0.0
    %1736 = vmatpush1.msra.mxu0 0.0
    %1737 = vmatprep.subr.mxu0 0.0
    %1738 = vmatpush1.msra.mxu0 0.0
    %1739 = vmatprep.subr.mxu0 0.0
    %1740 = vmatpush1.msra.mxu0 0.0
    %1741 = vmatprep.subr.mxu0 0.0
    %1742 = vmatpush1.msra.mxu0 0.0
    %1743 = vmatprep.subr.mxu0 0.0
    %1744 = vmatpush1.msra.mxu0 0.0
    %1745 = vmatprep.subr.mxu0 0.0
    %1746 = vmatpush1.msra.mxu0 0.0
    %1747 = vmatprep.subr.mxu0 0.0
    %1748 = vmatpush1.msra.mxu0 0.0
    %1749 = vmatprep.subr.mxu0 0.0
    %1750 = vmatpush1.msra.mxu0 0.0
    %1751 = vmatprep.subr.mxu0 0.0
    %1752 = vmatpush1.msra.mxu0 0.0
    %1753 = vmatprep.subr.mxu0 0.0
    %1754 = vmatpush1.msra.mxu0 0.0
    %1755 = vmatprep.subr.mxu0 0.0
    %1756 = vmatpush1.msra.mxu0 0.0
    %1757 = vmatprep.subr.mxu0 0.0
    %1758 = vmatpush1.msra.mxu0 0.0
    %1759 = vmatprep.subr.mxu0 0.0
    %1760 = vmatpush1.msra.mxu0 0.0
    %1761 = vmatprep.subr.mxu0 0.0
    %1762 = vmatpush1.msra.mxu0 0.0
    %1763 = vmatprep.subr.mxu0 0.0
    %1764 = vmatpush1.msra.mxu0 0.0
    %1765 = vmatprep.subr.mxu0 0.0
    %1766 = vmatpush1.msra.mxu0 0.0
    %1767 = vmatprep.subr.mxu0 0.0
    %1768 = vmatpush1.msra.mxu0 0.0
    %1769 = vmatprep.subr.mxu0 0.0
    %1770 = vmatpush1.msra.mxu0 0.0
    %1771 = vmatprep.subr.mxu0 0.0
    %1772 = vmatpush1.msra.mxu0 0.0
    %1773 = vmatprep.subr.mxu0 0.0
    %1774 = vmatpush1.msra.mxu0 0.0
    %1775 = vmatprep.subr.mxu0 0.0
    %1776 = vmatpush1.msra.mxu0 0.0
    %1777 = vmatprep.subr.mxu0 0.0
    %1778 = vmatpush1.msra.mxu0 0.0
    %1779 = vmatprep.subr.mxu0 0.0
    %1780 = vmatpush1.msra.mxu0 0.0
    %1781 = vmatprep.subr.mxu0 0.0
    %1782 = vmatpush1.msra.mxu0 0.0
    %1783 = vmatprep.subr.mxu0 0.0
    %1784 = vmatpush1.msra.mxu0 0.0
    %1785 = vmatprep.subr.mxu0 0.0
    %1786 = vmatpush1.msra.mxu0 0.0
    %1787 = vmatprep.subr.mxu0 0.0
    %1788 = vmatpush1.msra.mxu0 0.0
    %1789 = vmatprep.mubr.f32.mxu0 0.0
    %v1790 = vand.u32 %v1629, 4294901760
    %1791 = vmatmul.mubr.f32.gmra.mrb[0].mxu0 %v1790
    %v1792 = vpop.f32.mrb[0].mxu0
    %v1793 = vadd.f32 %v1707, %v1792
    %v1794 = vpop.f32.mrb[0].mxu0
    %1795 = vmatprep.mubr.f32.mxu0 0.0
    %v1796 = vand.u32 %v1632, 4294901760
    %1797 = vmatmul.mubr.f32.gmra.mrb[0].mxu0 %v1796
    %v1798 = vpop.f32.mrb[0].mxu0
    %v1799 = vadd.f32 %v1717, %v1798
    %v1800 = vpop.f32.mrb[0].mxu0
    %1801 = vdwg.mxu0
    %1802 = vmatprep.subr.mxu0 0.0
    %v1803 = vand.u32 %v1626, 4294901760
    %v1804 = vsub.f32 %v1626, %v1803
    %1805 = vmatpush1.msra.mxu0 %v1804
    %1806 = vmatprep.subr.mxu0 0.0
    %1807 = vmatpush1.msra.mxu0 0.0
    %1808 = vmatprep.subr.mxu0 0.0
    %1809 = vmatpush1.msra.mxu0 0.0
    %1810 = vmatprep.subr.mxu0 0.0
    %1811 = vmatpush1.msra.mxu0 0.0
    %1812 = vmatprep.subr.mxu0 0.0
    %1813 = vmatpush1.msra.mxu0 0.0
    %1814 = vmatprep.subr.mxu0 0.0
    %1815 = vmatpush1.msra.mxu0 0.0
    %1816 = vmatprep.subr.mxu0 0.0
    %1817 = vmatpush1.msra.mxu0 0.0
    %1818 = vmatprep.subr.mxu0 0.0
    %1819 = vmatpush1.msra.mxu0 0.0
    %1820 = vmatprep.subr.mxu0 0.0
    %1821 = vmatpush1.msra.mxu0 0.0
    %1822 = vmatprep.subr.mxu0 0.0
    %1823 = vmatpush1.msra.mxu0 0.0
    %1824 = vmatprep.subr.mxu0 0.0
    %1825 = vmatpush1.msra.mxu0 0.0
    %1826 = vmatprep.subr.mxu0 0.0
    %1827 = vmatpush1.msra.mxu0 0.0
    %1828 = vmatprep.subr.mxu0 0.0
    %1829 = vmatpush1.msra.mxu0 0.0
    %1830 = vmatprep.subr.mxu0 0.0
    %1831 = vmatpush1.msra.mxu0 0.0
    %1832 = vmatprep.subr.mxu0 0.0
    %1833 = vmatpush1.msra.mxu0 0.0
    %1834 = vmatprep.subr.mxu0 0.0
    %1835 = vmatpush1.msra.mxu0 0.0
    %1836 = vmatprep.subr.mxu0 0.0
    %1837 = vmatpush1.msra.mxu0 0.0
    %1838 = vmatprep.subr.mxu0 0.0
    %1839 = vmatpush1.msra.mxu0 0.0
    %1840 = vmatprep.subr.mxu0 0.0
    %1841 = vmatpush1.msra.mxu0 0.0
    %1842 = vmatprep.subr.mxu0 0.0
    %1843 = vmatpush1.msra.mxu0 0.0
    %1844 = vmatprep.subr.mxu0 0.0
    %1845 = vmatpush1.msra.mxu0 0.0
    %1846 = vmatprep.subr.mxu0 0.0
    %1847 = vmatpush1.msra.mxu0 0.0
    %1848 = vmatprep.subr.mxu0 0.0
    %1849 = vmatpush1.msra.mxu0 0.0
    %1850 = vmatprep.subr.mxu0 0.0
    %1851 = vmatpush1.msra.mxu0 0.0
    %1852 = vmatprep.subr.mxu0 0.0
    %1853 = vmatpush1.msra.mxu0 0.0
    %1854 = vmatprep.subr.mxu0 0.0
    %1855 = vmatpush1.msra.mxu0 0.0
    %1856 = vmatprep.subr.mxu0 0.0
    %1857 = vmatpush1.msra.mxu0 0.0
    %1858 = vmatprep.subr.mxu0 0.0
    %1859 = vmatpush1.msra.mxu0 0.0
    %1860 = vmatprep.subr.mxu0 0.0
    %1861 = vmatpush1.msra.mxu0 0.0
    %1862 = vmatprep.subr.mxu0 0.0
    %1863 = vmatpush1.msra.mxu0 0.0
    %1864 = vmatprep.subr.mxu0 0.0
    %1865 = vmatpush1.msra.mxu0 0.0
    %1866 = vmatprep.subr.mxu0 0.0
    %1867 = vmatpush1.msra.mxu0 0.0
    %1868 = vmatprep.mubr.f32.mxu0 0.0
    %v1869 = vand.u32 %v1629, 4294901760
    %v1870 = vsub.f32 %v1629, %v1869
    %1871 = vmatmul.mubr.f32.gmra.mrb[0].mxu0 %v1870
    %v1872 = vpop.f32.mrb[0].mxu0
    %v1873 = vadd.f32 %v1793, %v1872
    %v1874 = vpop.f32.mrb[0].mxu0
    %1875 = vmatprep.mubr.f32.mxu0 0.0
    %v1876 = vand.u32 %v1632, 4294901760
    %v1877 = vsub.f32 %v1632, %v1876
    %1878 = vmatmul.mubr.f32.gmra.mrb[0].mxu0 %v1877
    %v1879 = vpop.f32.mrb[0].mxu0
    %v1880 = vadd.f32 %v1799, %v1879
    %v1881 = vpop.f32.mrb[0].mxu0
    %1882 = vdwg.mxu0
    %1883 = vmatprep.subr.mxu0 0.0
    %v1884 = vand.u32 %v1626, 4294901760
    %1885 = vmatpush1.msra.mxu0 %v1884
    %1886 = vmatprep.subr.mxu0 0.0
    %1887 = vmatpush1.msra.mxu0 0.0
    %1888 = vmatprep.subr.mxu0 0.0
    %1889 = vmatpush1.msra.mxu0 0.0
    %1890 = vmatprep.subr.mxu0 0.0
    %1891 = vmatpush1.msra.mxu0 0.0
    %1892 = vmatprep.subr.mxu0 0.0
    %1893 = vmatpush1.msra.mxu0 0.0
    %1894 = vmatprep.subr.mxu0 0.0
    %1895 = vmatpush1.msra.mxu0 0.0
    %1896 = vmatprep.subr.mxu0 0.0
    %1897 = vmatpush1.msra.mxu0 0.0
    %1898 = vmatprep.subr.mxu0 0.0
    %1899 = vmatpush1.msra.mxu0 0.0
    %1900 = vmatprep.subr.mxu0 0.0
    %1901 = vmatpush1.msra.mxu0 0.0
    %1902 = vmatprep.subr.mxu0 0.0
    %1903 = vmatpush1.msra.mxu0 0.0
    %1904 = vmatprep.subr.mxu0 0.0
    %1905 = vmatpush1.msra.mxu0 0.0
    %1906 = vmatprep.subr.mxu0 0.0
    %1907 = vmatpush1.msra.mxu0 0.0
    %1908 = vmatprep.subr.mxu0 0.0
    %1909 = vmatpush1.msra.mxu0 0.0
    %1910 = vmatprep.subr.mxu0 0.0
    %1911 = vmatpush1.msra.mxu0 0.0
    %1912 = vmatprep.subr.mxu0 0.0
    %1913 = vmatpush1.msra.mxu0 0.0
    %1914 = vmatprep.subr.mxu0 0.0
    %1915 = vmatpush1.msra.mxu0 0.0
    %1916 = vmatprep.subr.mxu0 0.0
    %1917 = vmatpush1.msra.mxu0 0.0
    %1918 = vmatprep.subr.mxu0 0.0
    %1919 = vmatpush1.msra.mxu0 0.0
    %1920 = vmatprep.subr.mxu0 0.0
    %1921 = vmatpush1.msra.mxu0 0.0
    %1922 = vmatprep.subr.mxu0 0.0
    %1923 = vmatpush1.msra.mxu0 0.0
    %1924 = vmatprep.subr.mxu0 0.0
    %1925 = vmatpush1.msra.mxu0 0.0
    %1926 = vmatprep.subr.mxu0 0.0
    %1927 = vmatpush1.msra.mxu0 0.0
    %1928 = vmatprep.subr.mxu0 0.0
    %1929 = vmatpush1.msra.mxu0 0.0
    %1930 = vmatprep.subr.mxu0 0.0
    %1931 = vmatpush1.msra.mxu0 0.0
    %1932 = vmatprep.subr.mxu0 0.0
    %1933 = vmatpush1.msra.mxu0 0.0
    %1934 = vmatprep.subr.mxu0 0.0
    %1935 = vmatpush1.msra.mxu0 0.0
    %1936 = vmatprep.subr.mxu0 0.0
    %1937 = vmatpush1.msra.mxu0 0.0
    %1938 = vmatprep.subr.mxu0 0.0
    %1939 = vmatpush1.msra.mxu0 0.0
    %1940 = vmatprep.subr.mxu0 0.0
    %1941 = vmatpush1.msra.mxu0 0.0
    %1942 = vmatprep.subr.mxu0 0.0
    %1943 = vmatpush1.msra.mxu0 0.0
    %1944 = vmatprep.subr.mxu0 0.0
    %1945 = vmatpush1.msra.mxu0 0.0
    %1946 = vmatprep.subr.mxu0 0.0
    %1947 = vmatpush1.msra.mxu0 0.0
    %1948 = vmatprep.mubr.f32.mxu0 0.0
    %v1949 = vand.u32 %v1629, 4294901760
    %v1950 = vsub.f32 %v1629, %v1949
    %v1951 = vand.u32 %v1950, 4294901760
    %1952 = vmatmul.mubr.f32.gmra.mrb[0].mxu0 %v1951
    %v1953 = vpop.f32.mrb[0].mxu0
    %v1954 = vadd.f32 %v1873, %v1953
    %v1955 = vpop.f32.mrb[0].mxu0
    %1956 = vmatprep.mubr.f32.mxu0 0.0
    %v1957 = vand.u32 %v1632, 4294901760
    %v1958 = vsub.f32 %v1632, %v1957
    %v1959 = vand.u32 %v1958, 4294901760
    %1960 = vmatmul.mubr.f32.gmra.mrb[0].mxu0 %v1959
    %v1961 = vpop.f32.mrb[0].mxu0
    %v1962 = vadd.f32 %v1880, %v1961
    %v1963 = vpop.f32.mrb[0].mxu0
    %1964 = vdwg.mxu0
    %1965 = vmatprep.subr.mxu0 0.0
    %v1966 = vand.u32 %v1626, 4294901760
    %v1967 = vsub.f32 %v1626, %v1966
    %v1968 = vand.u32 %v1967, 4294901760
    %1969 = vmatpush1.msra.mxu0 %v1968
    %1970 = vmatprep.subr.mxu0 0.0
    %1971 = vmatpush1.msra.mxu0 0.0
    %1972 = vmatprep.subr.mxu0 0.0
    %1973 = vmatpush1.msra.mxu0 0.0
    %1974 = vmatprep.subr.mxu0 0.0
    %1975 = vmatpush1.msra.mxu0 0.0
    %1976 = vmatprep.subr.mxu0 0.0
    %1977 = vmatpush1.msra.mxu0 0.0
    %1978 = vmatprep.subr.mxu0 0.0
    %1979 = vmatpush1.msra.mxu0 0.0
    %1980 = vmatprep.subr.mxu0 0.0
    %1981 = vmatpush1.msra.mxu0 0.0
    %1982 = vmatprep.subr.mxu0 0.0
    %1983 = vmatpush1.msra.mxu0 0.0
    %1984 = vmatprep.subr.mxu0 0.0
    %1985 = vmatpush1.msra.mxu0 0.0
    %1986 = vmatprep.subr.mxu0 0.0
    %1987 = vmatpush1.msra.mxu0 0.0
    %1988 = vmatprep.subr.mxu0 0.0
    %1989 = vmatpush1.msra.mxu0 0.0
    %1990 = vmatprep.subr.mxu0 0.0
    %1991 = vmatpush1.msra.mxu0 0.0
    %1992 = vmatprep.subr.mxu0 0.0
    %1993 = vmatpush1.msra.mxu0 0.0
    %1994 = vmatprep.subr.mxu0 0.0
    %1995 = vmatpush1.msra.mxu0 0.0
    %1996 = vmatprep.subr.mxu0 0.0
    %1997 = vmatpush1.msra.mxu0 0.0
    %1998 = vmatprep.subr.mxu0 0.0
    %1999 = vmatpush1.msra.mxu0 0.0
    %2000 = vmatprep.subr.mxu0 0.0
    %2001 = vmatpush1.msra.mxu0 0.0
    %2002 = vmatprep.subr.mxu0 0.0
    %2003 = vmatpush1.msra.mxu0 0.0
    %2004 = vmatprep.subr.mxu0 0.0
    %2005 = vmatpush1.msra.mxu0 0.0
    %2006 = vmatprep.subr.mxu0 0.0
    %2007 = vmatpush1.msra.mxu0 0.0
    %2008 = vmatprep.subr.mxu0 0.0
    %2009 = vmatpush1.msra.mxu0 0.0
    %2010 = vmatprep.subr.mxu0 0.0
    %2011 = vmatpush1.msra.mxu0 0.0
    %2012 = vmatprep.subr.mxu0 0.0
    %2013 = vmatpush1.msra.mxu0 0.0
    %2014 = vmatprep.subr.mxu0 0.0
    %2015 = vmatpush1.msra.mxu0 0.0
    %2016 = vmatprep.subr.mxu0 0.0
    %2017 = vmatpush1.msra.mxu0 0.0
    %2018 = vmatprep.subr.mxu0 0.0
    %2019 = vmatpush1.msra.mxu0 0.0
    %2020 = vmatprep.subr.mxu0 0.0
    %2021 = vmatpush1.msra.mxu0 0.0
    %2022 = vmatprep.subr.mxu0 0.0
    %2023 = vmatpush1.msra.mxu0 0.0
    %2024 = vmatprep.subr.mxu0 0.0
    %2025 = vmatpush1.msra.mxu0 0.0
    %2026 = vmatprep.subr.mxu0 0.0
    %2027 = vmatpush1.msra.mxu0 0.0
    %2028 = vmatprep.subr.mxu0 0.0
    %2029 = vmatpush1.msra.mxu0 0.0
    %2030 = vmatprep.subr.mxu0 0.0
    %2031 = vmatpush1.msra.mxu0 0.0
    %2032 = vmatprep.mubr.f32.mxu0 0.0
    %v2033 = vand.u32 %v1629, 4294901760
    %2034 = vmatmul.mubr.f32.gmra.mrb[0].mxu0 %v2033
    %v2035 = vpop.f32.mrb[0].mxu0
    %v2036 = vadd.f32 %v1954, %v2035
    %v2037 = vpop.f32.mrb[0].mxu0
    %2038 = vmatprep.mubr.f32.mxu0 0.0
    %v2039 = vand.u32 %v1632, 4294901760
    %2040 = vmatmul.mubr.f32.gmra.mrb[0].mxu0 %v2039
    %v2041 = vpop.f32.mrb[0].mxu0
    %v2042 = vadd.f32 %v1962, %v2041
    %v2043 = vpop.f32.mrb[0].mxu0
    %2044 = vdwg.mxu0
    %2045 = vmatprep.subr.mxu0 0.0
    %v2046 = vand.u32 %v1626, 4294901760
    %2047 = vmatpush1.msra.mxu0 %v2046
    %2048 = vmatprep.subr.mxu0 0.0
    %2049 = vmatpush1.msra.mxu0 0.0
    %2050 = vmatprep.subr.mxu0 0.0
    %2051 = vmatpush1.msra.mxu0 0.0
    %2052 = vmatprep.subr.mxu0 0.0
    %2053 = vmatpush1.msra.mxu0 0.0
    %2054 = vmatprep.subr.mxu0 0.0
    %2055 = vmatpush1.msra.mxu0 0.0
    %2056 = vmatprep.subr.mxu0 0.0
    %2057 = vmatpush1.msra.mxu0 0.0
    %2058 = vmatprep.subr.mxu0 0.0
    %2059 = vmatpush1.msra.mxu0 0.0
    %2060 = vmatprep.subr.mxu0 0.0
    %2061 = vmatpush1.msra.mxu0 0.0
    %2062 = vmatprep.subr.mxu0 0.0
    %2063 = vmatpush1.msra.mxu0 0.0
    %2064 = vmatprep.subr.mxu0 0.0
    %2065 = vmatpush1.msra.mxu0 0.0
    %2066 = vmatprep.subr.mxu0 0.0
    %2067 = vmatpush1.msra.mxu0 0.0
    %2068 = vmatprep.subr.mxu0 0.0
    %2069 = vmatpush1.msra.mxu0 0.0
    %2070 = vmatprep.subr.mxu0 0.0
    %2071 = vmatpush1.msra.mxu0 0.0
    %2072 = vmatprep.subr.mxu0 0.0
    %2073 = vmatpush1.msra.mxu0 0.0
    %2074 = vmatprep.subr.mxu0 0.0
    %2075 = vmatpush1.msra.mxu0 0.0
    %2076 = vmatprep.subr.mxu0 0.0
    %2077 = vmatpush1.msra.mxu0 0.0
    %2078 = vmatprep.subr.mxu0 0.0
    %2079 = vmatpush1.msra.mxu0 0.0
    %2080 = vmatprep.subr.mxu0 0.0
    %2081 = vmatpush1.msra.mxu0 0.0
    %2082 = vmatprep.subr.mxu0 0.0
    %2083 = vmatpush1.msra.mxu0 0.0
    %2084 = vmatprep.subr.mxu0 0.0
    %2085 = vmatpush1.msra.mxu0 0.0
    %2086 = vmatprep.subr.mxu0 0.0
    %2087 = vmatpush1.msra.mxu0 0.0
    %2088 = vmatprep.subr.mxu0 0.0
    %2089 = vmatpush1.msra.mxu0 0.0
    %2090 = vmatprep.subr.mxu0 0.0
    %2091 = vmatpush1.msra.mxu0 0.0
    %2092 = vmatprep.subr.mxu0 0.0
    %2093 = vmatpush1.msra.mxu0 0.0
    %2094 = vmatprep.subr.mxu0 0.0
    %2095 = vmatpush1.msra.mxu0 0.0
    %2096 = vmatprep.subr.mxu0 0.0
    %2097 = vmatpush1.msra.mxu0 0.0
    %2098 = vmatprep.subr.mxu0 0.0
    %2099 = vmatpush1.msra.mxu0 0.0
    %2100 = vmatprep.subr.mxu0 0.0
    %2101 = vmatpush1.msra.mxu0 0.0
    %2102 = vmatprep.subr.mxu0 0.0
    %2103 = vmatpush1.msra.mxu0 0.0
    %2104 = vmatprep.subr.mxu0 0.0
    %2105 = vmatpush1.msra.mxu0 0.0
    %2106 = vmatprep.subr.mxu0 0.0
    %2107 = vmatpush1.msra.mxu0 0.0
    %2108 = vmatprep.subr.mxu0 0.0
    %2109 = vmatpush1.msra.mxu0 0.0
    %2110 = vmatprep.mubr.f32.mxu0 0.0
    %v2111 = vand.u32 %v1629, 4294901760
    %2112 = vmatmul.mubr.f32.gmra.mrb[0].mxu0 %v2111
    %v2113 = vpop.f32.mrb[0].mxu0
    %v2114 = vadd.f32 %v2036, %v2113
    %v2115 = vpop.f32.mrb[0].mxu0
    %2116 = vmatprep.mubr.f32.mxu0 0.0
    %v2117 = vand.u32 %v1632, 4294901760
    %2118 = vmatmul.mubr.f32.gmra.mrb[0].mxu0 %v2117
    %v2119 = vpop.f32.mrb[0].mxu0
    %v2120 = vadd.f32 %v2042, %v2119
    %v2121 = vpop.f32.mrb[0].mxu0
    %2122 = vdwg.mxu0
    %v2123 = vmul.f32 %v1615, %v2114
    %v2124 = vmul.f32 %v1621, %v2120
    %v2125 = vld [vmem:[%s9] sm:$0xff]
    %v2126 = vld [vmem:[%s9 + $0x8] sm:$0xff]
    %v2127 = vld [vmem:[%s9 + $0x10] sm:$0xff]
    %v2128 = vld [vmem:[%s9 + $0x18] sm:$0xff]
    %v2129 = vld [vmem:[%s2] sm:$0xff]
    %v2130 = vld [vmem:[%s2 + $0x8] sm:$0xff]
    %v2131 = vld [vmem:[%s8] sm:$0x1]
    %2133 = vset.pattern.permute.xlu0 0
    %2134 = vperm.xlu0 %2133, %v2129
    %v2135 = vpop.permute.xlu0 %2134
    %2138 = vset.pattern.permute.xlu0 0
    %2139 = vperm.xlu0 %2138, %v2130
    %v2140 = vpop.permute.xlu0 %2139
    %v2143 = vlaneseq
    %v2144 = vshrl.u32 %v2143, 7
    %v2145 = vsub.s32 0, %v2144
    %v2146 = vrot.slane %v2131, %v2145
    %v2148 = vmul.f32 %v2135, %v2146
    %v2149 = vmul.f32 %v2140, %v2146
    %v2151 = vsel %vm101, %v2123, 0
    %v2154 = vsel %vm101, %v2124, 0
    %2156 = vmatprep.subr.mxu0 0.0
    %v2157 = vand.u32 %v2125, 4294901760
    %2158 = vmatpush1.msra.mxu0 %v2157
    %2159 = vmatprep.subr.mxu0 0.0
    %v2160 = vand.u32 %v2126, 4294901760
    %2161 = vmatpush1.msra.mxu0 %v2160
    %2162 = vmatprep.subr.mxu0 0.0
    %v2163 = vand.u32 %v2127, 4294901760
    %2164 = vmatpush1.msra.mxu0 %v2163
    %2165 = vmatprep.subr.mxu0 0.0
    %v2166 = vand.u32 %v2128, 4294901760
    %2167 = vmatpush1.msra.mxu0 %v2166
    %2168 = vmatprep.subr.mxu0 0.0
    %2169 = vmatpush1.msra.mxu0 0.0
    %2170 = vmatprep.subr.mxu0 0.0
    %2171 = vmatpush1.msra.mxu0 0.0
    %2172 = vmatprep.subr.mxu0 0.0
    %2173 = vmatpush1.msra.mxu0 0.0
    %2174 = vmatprep.subr.mxu0 0.0
    %2175 = vmatpush1.msra.mxu0 0.0
    %2176 = vmatprep.subr.mxu0 0.0
    %2177 = vmatpush1.msra.mxu0 0.0
    %2178 = vmatprep.subr.mxu0 0.0
    %2179 = vmatpush1.msra.mxu0 0.0
    %2180 = vmatprep.subr.mxu0 0.0
    %2181 = vmatpush1.msra.mxu0 0.0
    %2182 = vmatprep.subr.mxu0 0.0
    %2183 = vmatpush1.msra.mxu0 0.0
    %2184 = vmatprep.subr.mxu0 0.0
    %2185 = vmatpush1.msra.mxu0 0.0
    %2186 = vmatprep.subr.mxu0 0.0
    %2187 = vmatpush1.msra.mxu0 0.0
    %2188 = vmatprep.subr.mxu0 0.0
    %2189 = vmatpush1.msra.mxu0 0.0
    %2190 = vmatprep.subr.mxu0 0.0
    %2191 = vmatpush1.msra.mxu0 0.0
    %2192 = vmatprep.subr.mxu0 0.0
    %2193 = vmatpush1.msra.mxu0 0.0
    %2194 = vmatprep.subr.mxu0 0.0
    %2195 = vmatpush1.msra.mxu0 0.0
    %2196 = vmatprep.subr.mxu0 0.0
    %2197 = vmatpush1.msra.mxu0 0.0
    %2198 = vmatprep.subr.mxu0 0.0
    %2199 = vmatpush1.msra.mxu0 0.0
    %2200 = vmatprep.subr.mxu0 0.0
    %2201 = vmatpush1.msra.mxu0 0.0
    %2202 = vmatprep.subr.mxu0 0.0
    %2203 = vmatpush1.msra.mxu0 0.0
    %2204 = vmatprep.subr.mxu0 0.0
    %2205 = vmatpush1.msra.mxu0 0.0
    %2206 = vmatprep.subr.mxu0 0.0
    %2207 = vmatpush1.msra.mxu0 0.0
    %2208 = vmatprep.subr.mxu0 0.0
    %2209 = vmatpush1.msra.mxu0 0.0
    %2210 = vmatprep.subr.mxu0 0.0
    %2211 = vmatpush1.msra.mxu0 0.0
    %2212 = vmatprep.subr.mxu0 0.0
    %2213 = vmatpush1.msra.mxu0 0.0
    %2214 = vmatprep.subr.mxu0 0.0
    %2215 = vmatpush1.msra.mxu0 0.0
    %2216 = vmatprep.subr.mxu0 0.0
    %2217 = vmatpush1.msra.mxu0 0.0
    %2218 = vmatprep.subr.mxu0 0.0
    %2219 = vmatpush1.msra.mxu0 0.0
    %2220 = vmatprep.subr.mxu0 0.0
    %2221 = vmatpush1.msra.mxu0 0.0
    %2222 = vmatprep.subr.mxu0 0.0
    %2223 = vmatpush1.msra.mxu0 0.0
    %2224 = vmatprep.mubr.f32.mxu0 0.0
    %v2225 = vand.u32 %v2151, 4294901760
    %v2226 = vsub.f32 %v2151, %v2225
    %v2227 = vand.u32 %v2226, 4294901760
    %v2228 = vsub.f32 %v2226, %v2227
    %v2229 = vand.u32 %v2228, 4294901760
    %2230 = vmatmul.mubr.f32.gmra.mrb[0].mxu0 %v2229
    %v2231 = vpop.f32.mrb[0].mxu0
    %v2232 = vadd.f32 %v2148, %v2231
    %v2233 = vpop.f32.mrb[0].mxu0
    %2234 = vmatprep.mubr.f32.mxu0 0.0
    %v2235 = vand.u32 %v2154, 4294901760
    %v2236 = vsub.f32 %v2154, %v2235
    %v2237 = vand.u32 %v2236, 4294901760
    %v2238 = vsub.f32 %v2236, %v2237
    %v2239 = vand.u32 %v2238, 4294901760
    %2240 = vmatmul.mubr.f32.gmra.mrb[0].mxu0 %v2239
    %v2241 = vpop.f32.mrb[0].mxu0
    %v2242 = vadd.f32 %v2149, %v2241
    %v2243 = vpop.f32.mrb[0].mxu0
    %2244 = vdwg.mxu0
    %2245 = vmatprep.subr.mxu0 0.0
    %v2246 = vand.u32 %v2125, 4294901760
    %v2247 = vsub.f32 %v2125, %v2246
    %v2248 = vand.u32 %v2247, 4294901760
    %v2249 = vsub.f32 %v2247, %v2248
    %v2250 = vand.u32 %v2249, 4294901760
    %2251 = vmatpush1.msra.mxu0 %v2250
    %2252 = vmatprep.subr.mxu0 0.0
    %v2253 = vand.u32 %v2126, 4294901760
    %v2254 = vsub.f32 %v2126, %v2253
    %v2255 = vand.u32 %v2254, 4294901760
    %v2256 = vsub.f32 %v2254, %v2255
    %v2257 = vand.u32 %v2256, 4294901760
    %2258 = vmatpush1.msra.mxu0 %v2257
    %2259 = vmatprep.subr.mxu0 0.0
    %v2260 = vand.u32 %v2127, 4294901760
    %v2261 = vsub.f32 %v2127, %v2260
    %v2262 = vand.u32 %v2261, 4294901760
    %v2263 = vsub.f32 %v2261, %v2262
    %v2264 = vand.u32 %v2263, 4294901760
    %2265 = vmatpush1.msra.mxu0 %v2264
    %2266 = vmatprep.subr.mxu0 0.0
    %v2267 = vand.u32 %v2128, 4294901760
    %v2268 = vsub.f32 %v2128, %v2267
    %v2269 = vand.u32 %v2268, 4294901760
    %v2270 = vsub.f32 %v2268, %v2269
    %v2271 = vand.u32 %v2270, 4294901760
    %2272 = vmatpush1.msra.mxu0 %v2271
    %2273 = vmatprep.subr.mxu0 0.0
    %2274 = vmatpush1.msra.mxu0 0.0
    %2275 = vmatprep.subr.mxu0 0.0
    %2276 = vmatpush1.msra.mxu0 0.0
    %2277 = vmatprep.subr.mxu0 0.0
    %2278 = vmatpush1.msra.mxu0 0.0
    %2279 = vmatprep.subr.mxu0 0.0
    %2280 = vmatpush1.msra.mxu0 0.0
    %2281 = vmatprep.subr.mxu0 0.0
    %2282 = vmatpush1.msra.mxu0 0.0
    %2283 = vmatprep.subr.mxu0 0.0
    %2284 = vmatpush1.msra.mxu0 0.0
    %2285 = vmatprep.subr.mxu0 0.0
    %2286 = vmatpush1.msra.mxu0 0.0
    %2287 = vmatprep.subr.mxu0 0.0
    %2288 = vmatpush1.msra.mxu0 0.0
    %2289 = vmatprep.subr.mxu0 0.0
    %2290 = vmatpush1.msra.mxu0 0.0
    %2291 = vmatprep.subr.mxu0 0.0
    %2292 = vmatpush1.msra.mxu0 0.0
    %2293 = vmatprep.subr.mxu0 0.0
    %2294 = vmatpush1.msra.mxu0 0.0
    %2295 = vmatprep.subr.mxu0 0.0
    %2296 = vmatpush1.msra.mxu0 0.0
    %2297 = vmatprep.subr.mxu0 0.0
    %2298 = vmatpush1.msra.mxu0 0.0
    %2299 = vmatprep.subr.mxu0 0.0
    %2300 = vmatpush1.msra.mxu0 0.0
    %2301 = vmatprep.subr.mxu0 0.0
    %2302 = vmatpush1.msra.mxu0 0.0
    %2303 = vmatprep.subr.mxu0 0.0
    %2304 = vmatpush1.msra.mxu0 0.0
    %2305 = vmatprep.subr.mxu0 0.0
    %2306 = vmatpush1.msra.mxu0 0.0
    %2307 = vmatprep.subr.mxu0 0.0
    %2308 = vmatpush1.msra.mxu0 0.0
    %2309 = vmatprep.subr.mxu0 0.0
    %2310 = vmatpush1.msra.mxu0 0.0
    %2311 = vmatprep.subr.mxu0 0.0
    %2312 = vmatpush1.msra.mxu0 0.0
    %2313 = vmatprep.subr.mxu0 0.0
    %2314 = vmatpush1.msra.mxu0 0.0
    %2315 = vmatprep.subr.mxu0 0.0
    %2316 = vmatpush1.msra.mxu0 0.0
    %2317 = vmatprep.subr.mxu0 0.0
    %2318 = vmatpush1.msra.mxu0 0.0
    %2319 = vmatprep.subr.mxu0 0.0
    %2320 = vmatpush1.msra.mxu0 0.0
    %2321 = vmatprep.subr.mxu0 0.0
    %2322 = vmatpush1.msra.mxu0 0.0
    %2323 = vmatprep.subr.mxu0 0.0
    %2324 = vmatpush1.msra.mxu0 0.0
    %2325 = vmatprep.subr.mxu0 0.0
    %2326 = vmatpush1.msra.mxu0 0.0
    %2327 = vmatprep.subr.mxu0 0.0
    %2328 = vmatpush1.msra.mxu0 0.0
    %2329 = vmatprep.mubr.f32.mxu0 0.0
    %v2330 = vand.u32 %v2151, 4294901760
    %2331 = vmatmul.mubr.f32.gmra.mrb[0].mxu0 %v2330
    %v2332 = vpop.f32.mrb[0].mxu0
    %v2333 = vadd.f32 %v2232, %v2332
    %v2334 = vpop.f32.mrb[0].mxu0
    %2335 = vmatprep.mubr.f32.mxu0 0.0
    %v2336 = vand.u32 %v2154, 4294901760
    %2337 = vmatmul.mubr.f32.gmra.mrb[0].mxu0 %v2336
    %v2338 = vpop.f32.mrb[0].mxu0
    %v2339 = vadd.f32 %v2242, %v2338
    %v2340 = vpop.f32.mrb[0].mxu0
    %2341 = vdwg.mxu0
    %2342 = vmatprep.subr.mxu0 0.0
    %v2343 = vand.u32 %v2125, 4294901760
    %v2344 = vsub.f32 %v2125, %v2343
    %2345 = vmatpush1.msra.mxu0 %v2344
    %2346 = vmatprep.subr.mxu0 0.0
    %v2347 = vand.u32 %v2126, 4294901760
    %v2348 = vsub.f32 %v2126, %v2347
    %2349 = vmatpush1.msra.mxu0 %v2348
    %2350 = vmatprep.subr.mxu0 0.0
    %v2351 = vand.u32 %v2127, 4294901760
    %v2352 = vsub.f32 %v2127, %v2351
    %2353 = vmatpush1.msra.mxu0 %v2352
    %2354 = vmatprep.subr.mxu0 0.0
    %v2355 = vand.u32 %v2128, 4294901760
    %v2356 = vsub.f32 %v2128, %v2355
    %2357 = vmatpush1.msra.mxu0 %v2356
    %2358 = vmatprep.subr.mxu0 0.0
    %2359 = vmatpush1.msra.mxu0 0.0
    %2360 = vmatprep.subr.mxu0 0.0
    %2361 = vmatpush1.msra.mxu0 0.0
    %2362 = vmatprep.subr.mxu0 0.0
    %2363 = vmatpush1.msra.mxu0 0.0
    %2364 = vmatprep.subr.mxu0 0.0
    %2365 = vmatpush1.msra.mxu0 0.0
    %2366 = vmatprep.subr.mxu0 0.0
    %2367 = vmatpush1.msra.mxu0 0.0
    %2368 = vmatprep.subr.mxu0 0.0
    %2369 = vmatpush1.msra.mxu0 0.0
    %2370 = vmatprep.subr.mxu0 0.0
    %2371 = vmatpush1.msra.mxu0 0.0
    %2372 = vmatprep.subr.mxu0 0.0
    %2373 = vmatpush1.msra.mxu0 0.0
    %2374 = vmatprep.subr.mxu0 0.0
    %2375 = vmatpush1.msra.mxu0 0.0
    %2376 = vmatprep.subr.mxu0 0.0
    %2377 = vmatpush1.msra.mxu0 0.0
    %2378 = vmatprep.subr.mxu0 0.0
    %2379 = vmatpush1.msra.mxu0 0.0
    %2380 = vmatprep.subr.mxu0 0.0
    %2381 = vmatpush1.msra.mxu0 0.0
    %2382 = vmatprep.subr.mxu0 0.0
    %2383 = vmatpush1.msra.mxu0 0.0
    %2384 = vmatprep.subr.mxu0 0.0
    %2385 = vmatpush1.msra.mxu0 0.0
    %2386 = vmatprep.subr.mxu0 0.0
    %2387 = vmatpush1.msra.mxu0 0.0
    %2388 = vmatprep.subr.mxu0 0.0
    %2389 = vmatpush1.msra.mxu0 0.0
    %2390 = vmatprep.subr.mxu0 0.0
    %2391 = vmatpush1.msra.mxu0 0.0
    %2392 = vmatprep.subr.mxu0 0.0
    %2393 = vmatpush1.msra.mxu0 0.0
    %2394 = vmatprep.subr.mxu0 0.0
    %2395 = vmatpush1.msra.mxu0 0.0
    %2396 = vmatprep.subr.mxu0 0.0
    %2397 = vmatpush1.msra.mxu0 0.0
    %2398 = vmatprep.subr.mxu0 0.0
    %2399 = vmatpush1.msra.mxu0 0.0
    %2400 = vmatprep.subr.mxu0 0.0
    %2401 = vmatpush1.msra.mxu0 0.0
    %2402 = vmatprep.subr.mxu0 0.0
    %2403 = vmatpush1.msra.mxu0 0.0
    %2404 = vmatprep.subr.mxu0 0.0
    %2405 = vmatpush1.msra.mxu0 0.0
    %2406 = vmatprep.subr.mxu0 0.0
    %2407 = vmatpush1.msra.mxu0 0.0
    %2408 = vmatprep.subr.mxu0 0.0
    %2409 = vmatpush1.msra.mxu0 0.0
    %2410 = vmatprep.subr.mxu0 0.0
    %2411 = vmatpush1.msra.mxu0 0.0
    %2412 = vmatprep.subr.mxu0 0.0
    %2413 = vmatpush1.msra.mxu0 0.0
    %2414 = vmatprep.mubr.f32.mxu0 0.0
    %v2415 = vand.u32 %v2151, 4294901760
    %v2416 = vsub.f32 %v2151, %v2415
    %2417 = vmatmul.mubr.f32.gmra.mrb[0].mxu0 %v2416
    %v2418 = vpop.f32.mrb[0].mxu0
    %v2419 = vadd.f32 %v2333, %v2418
    %v2420 = vpop.f32.mrb[0].mxu0
    %2421 = vmatprep.mubr.f32.mxu0 0.0
    %v2422 = vand.u32 %v2154, 4294901760
    %v2423 = vsub.f32 %v2154, %v2422
    %2424 = vmatmul.mubr.f32.gmra.mrb[0].mxu0 %v2423
    %v2425 = vpop.f32.mrb[0].mxu0
    %v2426 = vadd.f32 %v2339, %v2425
    %v2427 = vpop.f32.mrb[0].mxu0
    %2428 = vdwg.mxu0
    %2429 = vmatprep.subr.mxu0 0.0
    %v2430 = vand.u32 %v2125, 4294901760
    %2431 = vmatpush1.msra.mxu0 %v2430
    %2432 = vmatprep.subr.mxu0 0.0
    %v2433 = vand.u32 %v2126, 4294901760
    %2434 = vmatpush1.msra.mxu0 %v2433
    %2435 = vmatprep.subr.mxu0 0.0
    %v2436 = vand.u32 %v2127, 4294901760
    %2437 = vmatpush1.msra.mxu0 %v2436
    %2438 = vmatprep.subr.mxu0 0.0
    %v2439 = vand.u32 %v2128, 4294901760
    %2440 = vmatpush1.msra.mxu0 %v2439
    %2441 = vmatprep.subr.mxu0 0.0
    %2442 = vmatpush1.msra.mxu0 0.0
    %2443 = vmatprep.subr.mxu0 0.0
    %2444 = vmatpush1.msra.mxu0 0.0
    %2445 = vmatprep.subr.mxu0 0.0
    %2446 = vmatpush1.msra.mxu0 0.0
    %2447 = vmatprep.subr.mxu0 0.0
    %2448 = vmatpush1.msra.mxu0 0.0
    %2449 = vmatprep.subr.mxu0 0.0
    %2450 = vmatpush1.msra.mxu0 0.0
    %2451 = vmatprep.subr.mxu0 0.0
    %2452 = vmatpush1.msra.mxu0 0.0
    %2453 = vmatprep.subr.mxu0 0.0
    %2454 = vmatpush1.msra.mxu0 0.0
    %2455 = vmatprep.subr.mxu0 0.0
    %2456 = vmatpush1.msra.mxu0 0.0
    %2457 = vmatprep.subr.mxu0 0.0
    %2458 = vmatpush1.msra.mxu0 0.0
    %2459 = vmatprep.subr.mxu0 0.0
    %2460 = vmatpush1.msra.mxu0 0.0
    %2461 = vmatprep.subr.mxu0 0.0
    %2462 = vmatpush1.msra.mxu0 0.0
    %2463 = vmatprep.subr.mxu0 0.0
    %2464 = vmatpush1.msra.mxu0 0.0
    %2465 = vmatprep.subr.mxu0 0.0
    %2466 = vmatpush1.msra.mxu0 0.0
    %2467 = vmatprep.subr.mxu0 0.0
    %2468 = vmatpush1.msra.mxu0 0.0
    %2469 = vmatprep.subr.mxu0 0.0
    %2470 = vmatpush1.msra.mxu0 0.0
    %2471 = vmatprep.subr.mxu0 0.0
    %2472 = vmatpush1.msra.mxu0 0.0
    %2473 = vmatprep.subr.mxu0 0.0
    %2474 = vmatpush1.msra.mxu0 0.0
    %2475 = vmatprep.subr.mxu0 0.0
    %2476 = vmatpush1.msra.mxu0 0.0
    %2477 = vmatprep.subr.mxu0 0.0
    %2478 = vmatpush1.msra.mxu0 0.0
    %2479 = vmatprep.subr.mxu0 0.0
    %2480 = vmatpush1.msra.mxu0 0.0
    %2481 = vmatprep.subr.mxu0 0.0
    %2482 = vmatpush1.msra.mxu0 0.0
    %2483 = vmatprep.subr.mxu0 0.0
    %2484 = vmatpush1.msra.mxu0 0.0
    %2485 = vmatprep.subr.mxu0 0.0
    %2486 = vmatpush1.msra.mxu0 0.0
    %2487 = vmatprep.subr.mxu0 0.0
    %2488 = vmatpush1.msra.mxu0 0.0
    %2489 = vmatprep.subr.mxu0 0.0
    %2490 = vmatpush1.msra.mxu0 0.0
    %2491 = vmatprep.subr.mxu0 0.0
    %2492 = vmatpush1.msra.mxu0 0.0
    %2493 = vmatprep.subr.mxu0 0.0
    %2494 = vmatpush1.msra.mxu0 0.0
    %2495 = vmatprep.subr.mxu0 0.0
    %2496 = vmatpush1.msra.mxu0 0.0
    %2497 = vmatprep.mubr.f32.mxu0 0.0
    %v2498 = vand.u32 %v2151, 4294901760
    %v2499 = vsub.f32 %v2151, %v2498
    %v2500 = vand.u32 %v2499, 4294901760
    %2501 = vmatmul.mubr.f32.gmra.mrb[0].mxu0 %v2500
    %v2502 = vpop.f32.mrb[0].mxu0
    %v2503 = vadd.f32 %v2419, %v2502
    %v2504 = vpop.f32.mrb[0].mxu0
    %2505 = vmatprep.mubr.f32.mxu0 0.0
    %v2506 = vand.u32 %v2154, 4294901760
    %v2507 = vsub.f32 %v2154, %v2506
    %v2508 = vand.u32 %v2507, 4294901760
    %2509 = vmatmul.mubr.f32.gmra.mrb[0].mxu0 %v2508
    %v2510 = vpop.f32.mrb[0].mxu0
    %v2511 = vadd.f32 %v2426, %v2510
    %v2512 = vpop.f32.mrb[0].mxu0
    %2513 = vdwg.mxu0
    %2514 = vmatprep.subr.mxu0 0.0
    %v2515 = vand.u32 %v2125, 4294901760
    %v2516 = vsub.f32 %v2125, %v2515
    %v2517 = vand.u32 %v2516, 4294901760
    %2518 = vmatpush1.msra.mxu0 %v2517
    %2519 = vmatprep.subr.mxu0 0.0
    %v2520 = vand.u32 %v2126, 4294901760
    %v2521 = vsub.f32 %v2126, %v2520
    %v2522 = vand.u32 %v2521, 4294901760
    %2523 = vmatpush1.msra.mxu0 %v2522
    %2524 = vmatprep.subr.mxu0 0.0
    %v2525 = vand.u32 %v2127, 4294901760
    %v2526 = vsub.f32 %v2127, %v2525
    %v2527 = vand.u32 %v2526, 4294901760
    %2528 = vmatpush1.msra.mxu0 %v2527
    %2529 = vmatprep.subr.mxu0 0.0
    %v2530 = vand.u32 %v2128, 4294901760
    %v2531 = vsub.f32 %v2128, %v2530
    %v2532 = vand.u32 %v2531, 4294901760
    %2533 = vmatpush1.msra.mxu0 %v2532
    %2534 = vmatprep.subr.mxu0 0.0
    %2535 = vmatpush1.msra.mxu0 0.0
    %2536 = vmatprep.subr.mxu0 0.0
    %2537 = vmatpush1.msra.mxu0 0.0
    %2538 = vmatprep.subr.mxu0 0.0
    %2539 = vmatpush1.msra.mxu0 0.0
    %2540 = vmatprep.subr.mxu0 0.0
    %2541 = vmatpush1.msra.mxu0 0.0
    %2542 = vmatprep.subr.mxu0 0.0
    %2543 = vmatpush1.msra.mxu0 0.0
    %2544 = vmatprep.subr.mxu0 0.0
    %2545 = vmatpush1.msra.mxu0 0.0
    %2546 = vmatprep.subr.mxu0 0.0
    %2547 = vmatpush1.msra.mxu0 0.0
    %2548 = vmatprep.subr.mxu0 0.0
    %2549 = vmatpush1.msra.mxu0 0.0
    %2550 = vmatprep.subr.mxu0 0.0
    %2551 = vmatpush1.msra.mxu0 0.0
    %2552 = vmatprep.subr.mxu0 0.0
    %2553 = vmatpush1.msra.mxu0 0.0
    %2554 = vmatprep.subr.mxu0 0.0
    %2555 = vmatpush1.msra.mxu0 0.0
    %2556 = vmatprep.subr.mxu0 0.0
    %2557 = vmatpush1.msra.mxu0 0.0
    %2558 = vmatprep.subr.mxu0 0.0
    %2559 = vmatpush1.msra.mxu0 0.0
    %2560 = vmatprep.subr.mxu0 0.0
    %2561 = vmatpush1.msra.mxu0 0.0
    %2562 = vmatprep.subr.mxu0 0.0
    %2563 = vmatpush1.msra.mxu0 0.0
    %2564 = vmatprep.subr.mxu0 0.0
    %2565 = vmatpush1.msra.mxu0 0.0
    %2566 = vmatprep.subr.mxu0 0.0
    %2567 = vmatpush1.msra.mxu0 0.0
    %2568 = vmatprep.subr.mxu0 0.0
    %2569 = vmatpush1.msra.mxu0 0.0
    %2570 = vmatprep.subr.mxu0 0.0
    %2571 = vmatpush1.msra.mxu0 0.0
    %2572 = vmatprep.subr.mxu0 0.0
    %2573 = vmatpush1.msra.mxu0 0.0
    %2574 = vmatprep.subr.mxu0 0.0
    %2575 = vmatpush1.msra.mxu0 0.0
    %2576 = vmatprep.subr.mxu0 0.0
    %2577 = vmatpush1.msra.mxu0 0.0
    %2578 = vmatprep.subr.mxu0 0.0
    %2579 = vmatpush1.msra.mxu0 0.0
    %2580 = vmatprep.subr.mxu0 0.0
    %2581 = vmatpush1.msra.mxu0 0.0
    %2582 = vmatprep.subr.mxu0 0.0
    %2583 = vmatpush1.msra.mxu0 0.0
    %2584 = vmatprep.subr.mxu0 0.0
    %2585 = vmatpush1.msra.mxu0 0.0
    %2586 = vmatprep.subr.mxu0 0.0
    %2587 = vmatpush1.msra.mxu0 0.0
    %2588 = vmatprep.subr.mxu0 0.0
    %2589 = vmatpush1.msra.mxu0 0.0
    %2590 = vmatprep.mubr.f32.mxu0 0.0
    %v2591 = vand.u32 %v2151, 4294901760
    %2592 = vmatmul.mubr.f32.gmra.mrb[0].mxu0 %v2591
    %v2593 = vpop.f32.mrb[0].mxu0
    %v2594 = vadd.f32 %v2503, %v2593
    %v2595 = vpop.f32.mrb[0].mxu0
    %2596 = vmatprep.mubr.f32.mxu0 0.0
    %v2597 = vand.u32 %v2154, 4294901760
    %2598 = vmatmul.mubr.f32.gmra.mrb[0].mxu0 %v2597
    %v2599 = vpop.f32.mrb[0].mxu0
    %v2600 = vadd.f32 %v2511, %v2599
    %v2601 = vpop.f32.mrb[0].mxu0
    %2602 = vdwg.mxu0
    %2603 = vmatprep.subr.mxu0 0.0
    %v2604 = vand.u32 %v2125, 4294901760
    %2605 = vmatpush1.msra.mxu0 %v2604
    %2606 = vmatprep.subr.mxu0 0.0
    %v2607 = vand.u32 %v2126, 4294901760
    %2608 = vmatpush1.msra.mxu0 %v2607
    %2609 = vmatprep.subr.mxu0 0.0
    %v2610 = vand.u32 %v2127, 4294901760
    %2611 = vmatpush1.msra.mxu0 %v2610
    %2612 = vmatprep.subr.mxu0 0.0
    %v2613 = vand.u32 %v2128, 4294901760
    %2614 = vmatpush1.msra.mxu0 %v2613
    %2615 = vmatprep.subr.mxu0 0.0
    %2616 = vmatpush1.msra.mxu0 0.0
    %2617 = vmatprep.subr.mxu0 0.0
    %2618 = vmatpush1.msra.mxu0 0.0
    %2619 = vmatprep.subr.mxu0 0.0
    %2620 = vmatpush1.msra.mxu0 0.0
    %2621 = vmatprep.subr.mxu0 0.0
    %2622 = vmatpush1.msra.mxu0 0.0
    %2623 = vmatprep.subr.mxu0 0.0
    %2624 = vmatpush1.msra.mxu0 0.0
    %2625 = vmatprep.subr.mxu0 0.0
    %2626 = vmatpush1.msra.mxu0 0.0
    %2627 = vmatprep.subr.mxu0 0.0
    %2628 = vmatpush1.msra.mxu0 0.0
    %2629 = vmatprep.subr.mxu0 0.0
    %2630 = vmatpush1.msra.mxu0 0.0
    %2631 = vmatprep.subr.mxu0 0.0
    %2632 = vmatpush1.msra.mxu0 0.0
    %2633 = vmatprep.subr.mxu0 0.0
    %2634 = vmatpush1.msra.mxu0 0.0
    %2635 = vmatprep.subr.mxu0 0.0
    %2636 = vmatpush1.msra.mxu0 0.0
    %2637 = vmatprep.subr.mxu0 0.0
    %2638 = vmatpush1.msra.mxu0 0.0
    %2639 = vmatprep.subr.mxu0 0.0
    %2640 = vmatpush1.msra.mxu0 0.0
    %2641 = vmatprep.subr.mxu0 0.0
    %2642 = vmatpush1.msra.mxu0 0.0
    %2643 = vmatprep.subr.mxu0 0.0
    %2644 = vmatpush1.msra.mxu0 0.0
    %2645 = vmatprep.subr.mxu0 0.0
    %2646 = vmatpush1.msra.mxu0 0.0
    %2647 = vmatprep.subr.mxu0 0.0
    %2648 = vmatpush1.msra.mxu0 0.0
    %2649 = vmatprep.subr.mxu0 0.0
    %2650 = vmatpush1.msra.mxu0 0.0
    %2651 = vmatprep.subr.mxu0 0.0
    %2652 = vmatpush1.msra.mxu0 0.0
    %2653 = vmatprep.subr.mxu0 0.0
    %2654 = vmatpush1.msra.mxu0 0.0
    %2655 = vmatprep.subr.mxu0 0.0
    %2656 = vmatpush1.msra.mxu0 0.0
    %2657 = vmatprep.subr.mxu0 0.0
    %2658 = vmatpush1.msra.mxu0 0.0
    %2659 = vmatprep.subr.mxu0 0.0
    %2660 = vmatpush1.msra.mxu0 0.0
    %2661 = vmatprep.subr.mxu0 0.0
    %2662 = vmatpush1.msra.mxu0 0.0
    %2663 = vmatprep.subr.mxu0 0.0
    %2664 = vmatpush1.msra.mxu0 0.0
    %2665 = vmatprep.subr.mxu0 0.0
    %2666 = vmatpush1.msra.mxu0 0.0
    %2667 = vmatprep.subr.mxu0 0.0
    %2668 = vmatpush1.msra.mxu0 0.0
    %2669 = vmatprep.subr.mxu0 0.0
    %2670 = vmatpush1.msra.mxu0 0.0
    %2671 = vmatprep.mubr.f32.mxu0 0.0
    %v2672 = vand.u32 %v2151, 4294901760
    %2673 = vmatmul.mubr.f32.gmra.mrb[0].mxu0 %v2672
    %v2674 = vpop.f32.mrb[0].mxu0
    %v2675 = vadd.f32 %v2594, %v2674
    %v2676 = vpop.f32.mrb[0].mxu0
    %2677 = vmatprep.mubr.f32.mxu0 0.0
    %v2678 = vand.u32 %v2154, 4294901760
    %2679 = vmatmul.mubr.f32.gmra.mrb[0].mxu0 %v2678
    %v2680 = vpop.f32.mrb[0].mxu0
    %v2681 = vadd.f32 %v2600, %v2680
    %v2682 = vpop.f32.mrb[0].mxu0
    %2683 = vdwg.mxu0
    %vm2684 = vcmask 31744
    %v2685 = vsel %vm2684, %v2675, -inf
    %v2686 = vsel %vm2684, %v2681, -inf
    %v2687 = vmax.f32 %v2685, %v2686
    %v2688 = vrot.slane %v2687, 4
    %v2689 = vmax.f32 %v2687, %v2688
    %v2690 = vrot.slane %v2689, 2
    %v2691 = vmax.f32 %v2689, %v2690
    %v2692 = vrot.slane %v2691, 1
    %v2693 = vmax.f32 %v2691, %v2692
    %v2694 = vsub.f32 %v2675, %v2693
    %v2695 = vsub.f32 %v2681, %v2693
    %v2696 = vmul.f32 %v2694, 1.442695
    %v2697 = vpow.pop %v2696
    %v2698 = vmul.f32 %v2695, 1.442695
    %v2699 = vpow.pop %v2698
    %vm2700 = vcmask 130048
    %v2702 = vsel %vm2700, %v96, 0
    %2704 = vmatprep.subr.mxu0 0.0
    %v2705 = vand.u32 %v2697, 4294901760
    %2706 = vmatpush1.msra.mxu0 %v2705
    %2707 = vmatprep.subr.mxu0 0.0
    %v2708 = vand.u32 %v2699, 4294901760
    %2709 = vmatpush1.msra.mxu0 %v2708
    %2710 = vmatprep.subr.mxu0 0.0
    %2711 = vmatpush1.msra.mxu0 0.0
    %2712 = vmatprep.subr.mxu0 0.0
    %2713 = vmatpush1.msra.mxu0 0.0
    %2714 = vmatprep.subr.mxu0 0.0
    %2715 = vmatpush1.msra.mxu0 0.0
    %2716 = vmatprep.subr.mxu0 0.0
    %2717 = vmatpush1.msra.mxu0 0.0
    %2718 = vmatprep.subr.mxu0 0.0
    %2719 = vmatpush1.msra.mxu0 0.0
    %2720 = vmatprep.subr.mxu0 0.0
    %2721 = vmatpush1.msra.mxu0 0.0
    %2722 = vmatprep.subr.mxu0 0.0
    %2723 = vmatpush1.msra.mxu0 0.0
    %2724 = vmatprep.subr.mxu0 0.0
    %2725 = vmatpush1.msra.mxu0 0.0
    %2726 = vmatprep.subr.mxu0 0.0
    %2727 = vmatpush1.msra.mxu0 0.0
    %2728 = vmatprep.subr.mxu0 0.0
    %2729 = vmatpush1.msra.mxu0 0.0
    %2730 = vmatprep.subr.mxu0 0.0
    %2731 = vmatpush1.msra.mxu0 0.0
    %2732 = vmatprep.subr.mxu0 0.0
    %2733 = vmatpush1.msra.mxu0 0.0
    %2734 = vmatprep.subr.mxu0 0.0
    %2735 = vmatpush1.msra.mxu0 0.0
    %2736 = vmatprep.subr.mxu0 0.0
    %2737 = vmatpush1.msra.mxu0 0.0
    %2738 = vmatprep.subr.mxu0 0.0
    %2739 = vmatpush1.msra.mxu0 0.0
    %2740 = vmatprep.subr.mxu0 0.0
    %2741 = vmatpush1.msra.mxu0 0.0
    %2742 = vmatprep.subr.mxu0 0.0
    %2743 = vmatpush1.msra.mxu0 0.0
    %2744 = vmatprep.subr.mxu0 0.0
    %2745 = vmatpush1.msra.mxu0 0.0
    %2746 = vmatprep.subr.mxu0 0.0
    %2747 = vmatpush1.msra.mxu0 0.0
    %2748 = vmatprep.subr.mxu0 0.0
    %2749 = vmatpush1.msra.mxu0 0.0
    %2750 = vmatprep.subr.mxu0 0.0
    %2751 = vmatpush1.msra.mxu0 0.0
    %2752 = vmatprep.subr.mxu0 0.0
    %2753 = vmatpush1.msra.mxu0 0.0
    %2754 = vmatprep.subr.mxu0 0.0
    %2755 = vmatpush1.msra.mxu0 0.0
    %2756 = vmatprep.subr.mxu0 0.0
    %2757 = vmatpush1.msra.mxu0 0.0
    %2758 = vmatprep.subr.mxu0 0.0
    %2759 = vmatpush1.msra.mxu0 0.0
    %2760 = vmatprep.subr.mxu0 0.0
    %2761 = vmatpush1.msra.mxu0 0.0
    %2762 = vmatprep.subr.mxu0 0.0
    %2763 = vmatpush1.msra.mxu0 0.0
    %2764 = vmatprep.subr.mxu0 0.0
    %2765 = vmatpush1.msra.mxu0 0.0
    %2766 = vmatprep.subr.mxu0 0.0
    %2767 = vmatpush1.msra.mxu0 0.0
    %2768 = vmatprep.subr.mxu0 0.0
    %2769 = vmatpush1.msra.mxu0 0.0
    %2770 = vmatprep.mubr.f32.mxu0 0.0
    %v2771 = vand.u32 %v2702, 4294901760
    %v2772 = vsub.f32 %v2702, %v2771
    %v2773 = vand.u32 %v2772, 4294901760
    %v2774 = vsub.f32 %v2772, %v2773
    %v2775 = vand.u32 %v2774, 4294901760
    %2776 = vmatmul.mubr.f32.gmra.mrb[0].mxu0 %v2775
    %v2777 = vpop.f32.mrb[0].mxu0
    %v2778 = vadd.f32 0.0, %v2777
    %v2779 = vpop.f32.mrb[0].mxu0
    %2780 = vdwg.mxu0
    %2781 = vmatprep.subr.mxu0 0.0
    %v2782 = vand.u32 %v2697, 4294901760
    %v2783 = vsub.f32 %v2697, %v2782
    %v2784 = vand.u32 %v2783, 4294901760
    %v2785 = vsub.f32 %v2783, %v2784
    %v2786 = vand.u32 %v2785, 4294901760
    %2787 = vmatpush1.msra.mxu0 %v2786
    %2788 = vmatprep.subr.mxu0 0.0
    %v2789 = vand.u32 %v2699, 4294901760
    %v2790 = vsub.f32 %v2699, %v2789
    %v2791 = vand.u32 %v2790, 4294901760
    %v2792 = vsub.f32 %v2790, %v2791
    %v2793 = vand.u32 %v2792, 4294901760
    %2794 = vmatpush1.msra.mxu0 %v2793
    %2795 = vmatprep.subr.mxu0 0.0
    %2796 = vmatpush1.msra.mxu0 0.0
    %2797 = vmatprep.subr.mxu0 0.0
    %2798 = vmatpush1.msra.mxu0 0.0
    %2799 = vmatprep.subr.mxu0 0.0
    %2800 = vmatpush1.msra.mxu0 0.0
    %2801 = vmatprep.subr.mxu0 0.0
    %2802 = vmatpush1.msra.mxu0 0.0
    %2803 = vmatprep.subr.mxu0 0.0
    %2804 = vmatpush1.msra.mxu0 0.0
    %2805 = vmatprep.subr.mxu0 0.0
    %2806 = vmatpush1.msra.mxu0 0.0
    %2807 = vmatprep.subr.mxu0 0.0
    %2808 = vmatpush1.msra.mxu0 0.0
    %2809 = vmatprep.subr.mxu0 0.0
    %2810 = vmatpush1.msra.mxu0 0.0
    %2811 = vmatprep.subr.mxu0 0.0
    %2812 = vmatpush1.msra.mxu0 0.0
    %2813 = vmatprep.subr.mxu0 0.0
    %2814 = vmatpush1.msra.mxu0 0.0
    %2815 = vmatprep.subr.mxu0 0.0
    %2816 = vmatpush1.msra.mxu0 0.0
    %2817 = vmatprep.subr.mxu0 0.0
    %2818 = vmatpush1.msra.mxu0 0.0
    %2819 = vmatprep.subr.mxu0 0.0
    %2820 = vmatpush1.msra.mxu0 0.0
    %2821 = vmatprep.subr.mxu0 0.0
    %2822 = vmatpush1.msra.mxu0 0.0
    %2823 = vmatprep.subr.mxu0 0.0
    %2824 = vmatpush1.msra.mxu0 0.0
    %2825 = vmatprep.subr.mxu0 0.0
    %2826 = vmatpush1.msra.mxu0 0.0
    %2827 = vmatprep.subr.mxu0 0.0
    %2828 = vmatpush1.msra.mxu0 0.0
    %2829 = vmatprep.subr.mxu0 0.0
    %2830 = vmatpush1.msra.mxu0 0.0
    %2831 = vmatprep.subr.mxu0 0.0
    %2832 = vmatpush1.msra.mxu0 0.0
    %2833 = vmatprep.subr.mxu0 0.0
    %2834 = vmatpush1.msra.mxu0 0.0
    %2835 = vmatprep.subr.mxu0 0.0
    %2836 = vmatpush1.msra.mxu0 0.0
    %2837 = vmatprep.subr.mxu0 0.0
    %2838 = vmatpush1.msra.mxu0 0.0
    %2839 = vmatprep.subr.mxu0 0.0
    %2840 = vmatpush1.msra.mxu0 0.0
    %2841 = vmatprep.subr.mxu0 0.0
    %2842 = vmatpush1.msra.mxu0 0.0
    %2843 = vmatprep.subr.mxu0 0.0
    %2844 = vmatpush1.msra.mxu0 0.0
    %2845 = vmatprep.subr.mxu0 0.0
    %2846 = vmatpush1.msra.mxu0 0.0
    %2847 = vmatprep.subr.mxu0 0.0
    %2848 = vmatpush1.msra.mxu0 0.0
    %2849 = vmatprep.subr.mxu0 0.0
    %2850 = vmatpush1.msra.mxu0 0.0
    %2851 = vmatprep.subr.mxu0 0.0
    %2852 = vmatpush1.msra.mxu0 0.0
    %2853 = vmatprep.subr.mxu0 0.0
    %2854 = vmatpush1.msra.mxu0 0.0
    %2855 = vmatprep.mubr.f32.mxu0 0.0
    %v2856 = vand.u32 %v2702, 4294901760
    %2857 = vmatmul.mubr.f32.gmra.mrb[0].mxu0 %v2856
    %v2858 = vpop.f32.mrb[0].mxu0
    %v2859 = vadd.f32 %v2778, %v2858
    %v2860 = vpop.f32.mrb[0].mxu0
    %2861 = vdwg.mxu0
    %2862 = vmatprep.subr.mxu0 0.0
    %v2863 = vand.u32 %v2697, 4294901760
    %v2864 = vsub.f32 %v2697, %v2863
    %2865 = vmatpush1.msra.mxu0 %v2864
    %2866 = vmatprep.subr.mxu0 0.0
    %v2867 = vand.u32 %v2699, 4294901760
    %v2868 = vsub.f32 %v2699, %v2867
    %2869 = vmatpush1.msra.mxu0 %v2868
    %2870 = vmatprep.subr.mxu0 0.0
    %2871 = vmatpush1.msra.mxu0 0.0
    %2872 = vmatprep.subr.mxu0 0.0
    %2873 = vmatpush1.msra.mxu0 0.0
    %2874 = vmatprep.subr.mxu0 0.0
    %2875 = vmatpush1.msra.mxu0 0.0
    %2876 = vmatprep.subr.mxu0 0.0
    %2877 = vmatpush1.msra.mxu0 0.0
    %2878 = vmatprep.subr.mxu0 0.0
    %2879 = vmatpush1.msra.mxu0 0.0
    %2880 = vmatprep.subr.mxu0 0.0
    %2881 = vmatpush1.msra.mxu0 0.0
    %2882 = vmatprep.subr.mxu0 0.0
    %2883 = vmatpush1.msra.mxu0 0.0
    %2884 = vmatprep.subr.mxu0 0.0
    %2885 = vmatpush1.msra.mxu0 0.0
    %2886 = vmatprep.subr.mxu0 0.0
    %2887 = vmatpush1.msra.mxu0 0.0
    %2888 = vmatprep.subr.mxu0 0.0
    %2889 = vmatpush1.msra.mxu0 0.0
    %2890 = vmatprep.subr.mxu0 0.0
    %2891 = vmatpush1.msra.mxu0 0.0
    %2892 = vmatprep.subr.mxu0 0.0
    %2893 = vmatpush1.msra.mxu0 0.0
    %2894 = vmatprep.subr.mxu0 0.0
    %2895 = vmatpush1.msra.mxu0 0.0
    %2896 = vmatprep.subr.mxu0 0.0
    %2897 = vmatpush1.msra.mxu0 0.0
    %2898 = vmatprep.subr.mxu0 0.0
    %2899 = vmatpush1.msra.mxu0 0.0
    %2900 = vmatprep.subr.mxu0 0.0
    %2901 = vmatpush1.msra.mxu0 0.0
    %2902 = vmatprep.subr.mxu0 0.0
    %2903 = vmatpush1.msra.mxu0 0.0
    %2904 = vmatprep.subr.mxu0 0.0
    %2905 = vmatpush1.msra.mxu0 0.0
    %2906 = vmatprep.subr.mxu0 0.0
    %2907 = vmatpush1.msra.mxu0 0.0
    %2908 = vmatprep.subr.mxu0 0.0
    %2909 = vmatpush1.msra.mxu0 0.0
    %2910 = vmatprep.subr.mxu0 0.0
    %2911 = vmatpush1.msra.mxu0 0.0
    %2912 = vmatprep.subr.mxu0 0.0
    %2913 = vmatpush1.msra.mxu0 0.0
    %2914 = vmatprep.subr.mxu0 0.0
    %2915 = vmatpush1.msra.mxu0 0.0
    %2916 = vmatprep.subr.mxu0 0.0
    %2917 = vmatpush1.msra.mxu0 0.0
    %2918 = vmatprep.subr.mxu0 0.0
    %2919 = vmatpush1.msra.mxu0 0.0
    %2920 = vmatprep.subr.mxu0 0.0
    %2921 = vmatpush1.msra.mxu0 0.0
    %2922 = vmatprep.subr.mxu0 0.0
    %2923 = vmatpush1.msra.mxu0 0.0
    %2924 = vmatprep.subr.mxu0 0.0
    %2925 = vmatpush1.msra.mxu0 0.0
    %2926 = vmatprep.subr.mxu0 0.0
    %2927 = vmatpush1.msra.mxu0 0.0
    %2928 = vmatprep.subr.mxu0 0.0
    %2929 = vmatpush1.msra.mxu0 0.0
    %2930 = vmatprep.mubr.f32.mxu0 0.0
    %v2931 = vand.u32 %v2702, 4294901760
    %v2932 = vsub.f32 %v2702, %v2931
    %2933 = vmatmul.mubr.f32.gmra.mrb[0].mxu0 %v2932
    %v2934 = vpop.f32.mrb[0].mxu0
    %v2935 = vadd.f32 %v2859, %v2934
    %v2936 = vpop.f32.mrb[0].mxu0
    %2937 = vdwg.mxu0
    %2938 = vmatprep.subr.mxu0 0.0
    %v2939 = vand.u32 %v2697, 4294901760
    %2940 = vmatpush1.msra.mxu0 %v2939
    %2941 = vmatprep.subr.mxu0 0.0
    %v2942 = vand.u32 %v2699, 4294901760
    %2943 = vmatpush1.msra.mxu0 %v2942
    %2944 = vmatprep.subr.mxu0 0.0
    %2945 = vmatpush1.msra.mxu0 0.0
    %2946 = vmatprep.subr.mxu0 0.0
    %2947 = vmatpush1.msra.mxu0 0.0
    %2948 = vmatprep.subr.mxu0 0.0
    %2949 = vmatpush1.msra.mxu0 0.0
    %2950 = vmatprep.subr.mxu0 0.0
    %2951 = vmatpush1.msra.mxu0 0.0
    %2952 = vmatprep.subr.mxu0 0.0
    %2953 = vmatpush1.msra.mxu0 0.0
    %2954 = vmatprep.subr.mxu0 0.0
    %2955 = vmatpush1.msra.mxu0 0.0
    %2956 = vmatprep.subr.mxu0 0.0
    %2957 = vmatpush1.msra.mxu0 0.0
    %2958 = vmatprep.subr.mxu0 0.0
    %2959 = vmatpush1.msra.mxu0 0.0
    %2960 = vmatprep.subr.mxu0 0.0
    %2961 = vmatpush1.msra.mxu0 0.0
    %2962 = vmatprep.subr.mxu0 0.0
    %2963 = vmatpush1.msra.mxu0 0.0
    %2964 = vmatprep.subr.mxu0 0.0
    %2965 = vmatpush1.msra.mxu0 0.0
    %2966 = vmatprep.subr.mxu0 0.0
    %2967 = vmatpush1.msra.mxu0 0.0
    %2968 = vmatprep.subr.mxu0 0.0
    %2969 = vmatpush1.msra.mxu0 0.0
    %2970 = vmatprep.subr.mxu0 0.0
    %2971 = vmatpush1.msra.mxu0 0.0
    %2972 = vmatprep.subr.mxu0 0.0
    %2973 = vmatpush1.msra.mxu0 0.0
    %2974 = vmatprep.subr.mxu0 0.0
    %2975 = vmatpush1.msra.mxu0 0.0
    %2976 = vmatprep.subr.mxu0 0.0
    %2977 = vmatpush1.msra.mxu0 0.0
    %2978 = vmatprep.subr.mxu0 0.0
    %2979 = vmatpush1.msra.mxu0 0.0
    %2980 = vmatprep.subr.mxu0 0.0
    %2981 = vmatpush1.msra.mxu0 0.0
    %2982 = vmatprep.subr.mxu0 0.0
    %2983 = vmatpush1.msra.mxu0 0.0
    %2984 = vmatprep.subr.mxu0 0.0
    %2985 = vmatpush1.msra.mxu0 0.0
    %2986 = vmatprep.subr.mxu0 0.0
    %2987 = vmatpush1.msra.mxu0 0.0
    %2988 = vmatprep.subr.mxu0 0.0
    %2989 = vmatpush1.msra.mxu0 0.0
    %2990 = vmatprep.subr.mxu0 0.0
    %2991 = vmatpush1.msra.mxu0 0.0
    %2992 = vmatprep.subr.mxu0 0.0
    %2993 = vmatpush1.msra.mxu0 0.0
    %2994 = vmatprep.subr.mxu0 0.0
    %2995 = vmatpush1.msra.mxu0 0.0
    %2996 = vmatprep.subr.mxu0 0.0
    %2997 = vmatpush1.msra.mxu0 0.0
    %2998 = vmatprep.subr.mxu0 0.0
    %2999 = vmatpush1.msra.mxu0 0.0
    %3000 = vmatprep.subr.mxu0 0.0
    %3001 = vmatpush1.msra.mxu0 0.0
    %3002 = vmatprep.subr.mxu0 0.0
    %3003 = vmatpush1.msra.mxu0 0.0
    %3004 = vmatprep.mubr.f32.mxu0 0.0
    %v3005 = vand.u32 %v2702, 4294901760
    %v3006 = vsub.f32 %v2702, %v3005
    %v3007 = vand.u32 %v3006, 4294901760
    %3008 = vmatmul.mubr.f32.gmra.mrb[0].mxu0 %v3007
    %v3009 = vpop.f32.mrb[0].mxu0
    %v3010 = vadd.f32 %v2935, %v3009
    %v3011 = vpop.f32.mrb[0].mxu0
    %3012 = vdwg.mxu0
    %3013 = vmatprep.subr.mxu0 0.0
    %v3014 = vand.u32 %v2697, 4294901760
    %v3015 = vsub.f32 %v2697, %v3014
    %v3016 = vand.u32 %v3015, 4294901760
    %3017 = vmatpush1.msra.mxu0 %v3016
    %3018 = vmatprep.subr.mxu0 0.0
    %v3019 = vand.u32 %v2699, 4294901760
    %v3020 = vsub.f32 %v2699, %v3019
    %v3021 = vand.u32 %v3020, 4294901760
    %3022 = vmatpush1.msra.mxu0 %v3021
    %3023 = vmatprep.subr.mxu0 0.0
    %3024 = vmatpush1.msra.mxu0 0.0
    %3025 = vmatprep.subr.mxu0 0.0
    %3026 = vmatpush1.msra.mxu0 0.0
    %3027 = vmatprep.subr.mxu0 0.0
    %3028 = vmatpush1.msra.mxu0 0.0
    %3029 = vmatprep.subr.mxu0 0.0
    %3030 = vmatpush1.msra.mxu0 0.0
    %3031 = vmatprep.subr.mxu0 0.0
    %3032 = vmatpush1.msra.mxu0 0.0
    %3033 = vmatprep.subr.mxu0 0.0
    %3034 = vmatpush1.msra.mxu0 0.0
    %3035 = vmatprep.subr.mxu0 0.0
    %3036 = vmatpush1.msra.mxu0 0.0
    %3037 = vmatprep.subr.mxu0 0.0
    %3038 = vmatpush1.msra.mxu0 0.0
    %3039 = vmatprep.subr.mxu0 0.0
    %3040 = vmatpush1.msra.mxu0 0.0
    %3041 = vmatprep.subr.mxu0 0.0
    %3042 = vmatpush1.msra.mxu0 0.0
    %3043 = vmatprep.subr.mxu0 0.0
    %3044 = vmatpush1.msra.mxu0 0.0
    %3045 = vmatprep.subr.mxu0 0.0
    %3046 = vmatpush1.msra.mxu0 0.0
    %3047 = vmatprep.subr.mxu0 0.0
    %3048 = vmatpush1.msra.mxu0 0.0
    %3049 = vmatprep.subr.mxu0 0.0
    %3050 = vmatpush1.msra.mxu0 0.0
    %3051 = vmatprep.subr.mxu0 0.0
    %3052 = vmatpush1.msra.mxu0 0.0
    %3053 = vmatprep.subr.mxu0 0.0
    %3054 = vmatpush1.msra.mxu0 0.0
    %3055 = vmatprep.subr.mxu0 0.0
    %3056 = vmatpush1.msra.mxu0 0.0
    %3057 = vmatprep.subr.mxu0 0.0
    %3058 = vmatpush1.msra.mxu0 0.0
    %3059 = vmatprep.subr.mxu0 0.0
    %3060 = vmatpush1.msra.mxu0 0.0
    %3061 = vmatprep.subr.mxu0 0.0
    %3062 = vmatpush1.msra.mxu0 0.0
    %3063 = vmatprep.subr.mxu0 0.0
    %3064 = vmatpush1.msra.mxu0 0.0
    %3065 = vmatprep.subr.mxu0 0.0
    %3066 = vmatpush1.msra.mxu0 0.0
    %3067 = vmatprep.subr.mxu0 0.0
    %3068 = vmatpush1.msra.mxu0 0.0
    %3069 = vmatprep.subr.mxu0 0.0
    %3070 = vmatpush1.msra.mxu0 0.0
    %3071 = vmatprep.subr.mxu0 0.0
    %3072 = vmatpush1.msra.mxu0 0.0
    %3073 = vmatprep.subr.mxu0 0.0
    %3074 = vmatpush1.msra.mxu0 0.0
    %3075 = vmatprep.subr.mxu0 0.0
    %3076 = vmatpush1.msra.mxu0 0.0
    %3077 = vmatprep.subr.mxu0 0.0
    %3078 = vmatpush1.msra.mxu0 0.0
    %3079 = vmatprep.subr.mxu0 0.0
    %3080 = vmatpush1.msra.mxu0 0.0
    %3081 = vmatprep.subr.mxu0 0.0
    %3082 = vmatpush1.msra.mxu0 0.0
    %3083 = vmatprep.mubr.f32.mxu0 0.0
    %v3084 = vand.u32 %v2702, 4294901760
    %3085 = vmatmul.mubr.f32.gmra.mrb[0].mxu0 %v3084
    %v3086 = vpop.f32.mrb[0].mxu0
    %v3087 = vadd.f32 %v3010, %v3086
    %v3088 = vpop.f32.mrb[0].mxu0
    %3089 = vdwg.mxu0
    %3090 = vmatprep.subr.mxu0 0.0
    %v3091 = vand.u32 %v2697, 4294901760
    %3092 = vmatpush1.msra.mxu0 %v3091
    %3093 = vmatprep.subr.mxu0 0.0
    %v3094 = vand.u32 %v2699, 4294901760
    %3095 = vmatpush1.msra.mxu0 %v3094
    %3096 = vmatprep.subr.mxu0 0.0
    %3097 = vmatpush1.msra.mxu0 0.0
    %3098 = vmatprep.subr.mxu0 0.0
    %3099 = vmatpush1.msra.mxu0 0.0
    %3100 = vmatprep.subr.mxu0 0.0
    %3101 = vmatpush1.msra.mxu0 0.0
    %3102 = vmatprep.subr.mxu0 0.0
    %3103 = vmatpush1.msra.mxu0 0.0
    %3104 = vmatprep.subr.mxu0 0.0
    %3105 = vmatpush1.msra.mxu0 0.0
    %3106 = vmatprep.subr.mxu0 0.0
    %3107 = vmatpush1.msra.mxu0 0.0
    %3108 = vmatprep.subr.mxu0 0.0
    %3109 = vmatpush1.msra.mxu0 0.0
    %3110 = vmatprep.subr.mxu0 0.0
    %3111 = vmatpush1.msra.mxu0 0.0
    %3112 = vmatprep.subr.mxu0 0.0
    %3113 = vmatpush1.msra.mxu0 0.0
    %3114 = vmatprep.subr.mxu0 0.0
    %3115 = vmatpush1.msra.mxu0 0.0
    %3116 = vmatprep.subr.mxu0 0.0
    %3117 = vmatpush1.msra.mxu0 0.0
    %3118 = vmatprep.subr.mxu0 0.0
    %3119 = vmatpush1.msra.mxu0 0.0
    %3120 = vmatprep.subr.mxu0 0.0
    %3121 = vmatpush1.msra.mxu0 0.0
    %3122 = vmatprep.subr.mxu0 0.0
    %3123 = vmatpush1.msra.mxu0 0.0
    %3124 = vmatprep.subr.mxu0 0.0
    %3125 = vmatpush1.msra.mxu0 0.0
    %3126 = vmatprep.subr.mxu0 0.0
    %3127 = vmatpush1.msra.mxu0 0.0
    %3128 = vmatprep.subr.mxu0 0.0
    %3129 = vmatpush1.msra.mxu0 0.0
    %3130 = vmatprep.subr.mxu0 0.0
    %3131 = vmatpush1.msra.mxu0 0.0
    %3132 = vmatprep.subr.mxu0 0.0
    %3133 = vmatpush1.msra.mxu0 0.0
    %3134 = vmatprep.subr.mxu0 0.0
    %3135 = vmatpush1.msra.mxu0 0.0
    %3136 = vmatprep.subr.mxu0 0.0
    %3137 = vmatpush1.msra.mxu0 0.0
    %3138 = vmatprep.subr.mxu0 0.0
    %3139 = vmatpush1.msra.mxu0 0.0
    %3140 = vmatprep.subr.mxu0 0.0
    %3141 = vmatpush1.msra.mxu0 0.0
    %3142 = vmatprep.subr.mxu0 0.0
    %3143 = vmatpush1.msra.mxu0 0.0
    %3144 = vmatprep.subr.mxu0 0.0
    %3145 = vmatpush1.msra.mxu0 0.0
    %3146 = vmatprep.subr.mxu0 0.0
    %3147 = vmatpush1.msra.mxu0 0.0
    %3148 = vmatprep.subr.mxu0 0.0
    %3149 = vmatpush1.msra.mxu0 0.0
    %3150 = vmatprep.subr.mxu0 0.0
    %3151 = vmatpush1.msra.mxu0 0.0
    %3152 = vmatprep.subr.mxu0 0.0
    %3153 = vmatpush1.msra.mxu0 0.0
    %3154 = vmatprep.subr.mxu0 0.0
    %3155 = vmatpush1.msra.mxu0 0.0
    %3156 = vmatprep.mubr.f32.mxu0 0.0
    %v3157 = vand.u32 %v2702, 4294901760
    %3158 = vmatmul.mubr.f32.gmra.mrb[0].mxu0 %v3157
    %v3159 = vpop.f32.mrb[0].mxu0
    %v3160 = vadd.f32 %v3087, %v3159
    %v3161 = vpop.f32.mrb[0].mxu0
    %3162 = vdwg.mxu0
    %3163 = vmatprep.subr.mxu0 0.0
    %v3164 = vand.u32 %v3160, 4294901760
    %3165 = vmatpush1.msra.mxu0 %v3164
    %3166 = vmatprep.subr.mxu0 0.0
    %3167 = vmatpush1.msra.mxu0 0.0
    %3168 = vmatprep.subr.mxu0 0.0
    %3169 = vmatpush1.msra.mxu0 0.0
    %3170 = vmatprep.subr.mxu0 0.0
    %3171 = vmatpush1.msra.mxu0 0.0
    %3172 = vmatprep.subr.mxu0 0.0
    %3173 = vmatpush1.msra.mxu0 0.0
    %3174 = vmatprep.subr.mxu0 0.0
    %3175 = vmatpush1.msra.mxu0 0.0
    %3176 = vmatprep.subr.mxu0 0.0
    %3177 = vmatpush1.msra.mxu0 0.0
    %3178 = vmatprep.subr.mxu0 0.0
    %3179 = vmatpush1.msra.mxu0 0.0
    %3180 = vmatprep.subr.mxu0 0.0
    %3181 = vmatpush1.msra.mxu0 0.0
    %3182 = vmatprep.subr.mxu0 0.0
    %3183 = vmatpush1.msra.mxu0 0.0
    %3184 = vmatprep.subr.mxu0 0.0
    %3185 = vmatpush1.msra.mxu0 0.0
    %3186 = vmatprep.subr.mxu0 0.0
    %3187 = vmatpush1.msra.mxu0 0.0
    %3188 = vmatprep.subr.mxu0 0.0
    %3189 = vmatpush1.msra.mxu0 0.0
    %3190 = vmatprep.subr.mxu0 0.0
    %3191 = vmatpush1.msra.mxu0 0.0
    %3192 = vmatprep.subr.mxu0 0.0
    %3193 = vmatpush1.msra.mxu0 0.0
    %3194 = vmatprep.subr.mxu0 0.0
    %3195 = vmatpush1.msra.mxu0 0.0
    %3196 = vmatprep.subr.mxu0 0.0
    %3197 = vmatpush1.msra.mxu0 0.0
    %3198 = vmatprep.subr.mxu0 0.0
    %3199 = vmatpush1.msra.mxu0 0.0
    %3200 = vmatprep.subr.mxu0 0.0
    %3201 = vmatpush1.msra.mxu0 0.0
    %3202 = vmatprep.subr.mxu0 0.0
    %3203 = vmatpush1.msra.mxu0 0.0
    %3204 = vmatprep.subr.mxu0 0.0
    %3205 = vmatpush1.msra.mxu0 0.0
    %3206 = vmatprep.subr.mxu0 0.0
    %3207 = vmatpush1.msra.mxu0 0.0
    %3208 = vmatprep.subr.mxu0 0.0
    %3209 = vmatpush1.msra.mxu0 0.0
    %3210 = vmatprep.subr.mxu0 0.0
    %3211 = vmatpush1.msra.mxu0 0.0
    %3212 = vmatprep.subr.mxu0 0.0
    %3213 = vmatpush1.msra.mxu0 0.0
    %3214 = vmatprep.subr.mxu0 0.0
    %3215 = vmatpush1.msra.mxu0 0.0
    %3216 = vmatprep.subr.mxu0 0.0
    %3217 = vmatpush1.msra.mxu0 0.0
    %3218 = vmatprep.subr.mxu0 0.0
    %3219 = vmatpush1.msra.mxu0 0.0
    %3220 = vmatprep.subr.mxu0 0.0
    %3221 = vmatpush1.msra.mxu0 0.0
    %3222 = vmatprep.subr.mxu0 0.0
    %3223 = vmatpush1.msra.mxu0 0.0
    %3224 = vmatprep.subr.mxu0 0.0
    %3225 = vmatpush1.msra.mxu0 0.0
    %3226 = vmatprep.subr.mxu0 0.0
    %3227 = vmatpush1.msra.mxu0 0.0
    %3228 = vmatprep.mubr.f32.mxu0 0.0
    %v3229 = vand.u32 %v1629, 4294901760
    %v3230 = vsub.f32 %v1629, %v3229
    %v3231 = vand.u32 %v3230, 4294901760
    %v3232 = vsub.f32 %v3230, %v3231
    %v3233 = vand.u32 %v3232, 4294901760
    %3234 = vmatmul.mubr.f32.gmra.mrb[0].mxu0 %v3233
    %v3235 = vpop.f32.mrb[0].mxu0
    %v3236 = vadd.f32 0.0, %v3235
    %v3237 = vpop.f32.mrb[0].mxu0
    %3238 = vmatprep.mubr.f32.mxu0 0.0
    %v3239 = vand.u32 %v1632, 4294901760
    %v3240 = vsub.f32 %v1632, %v3239
    %v3241 = vand.u32 %v3240, 4294901760
    %v3242 = vsub.f32 %v3240, %v3241
    %v3243 = vand.u32 %v3242, 4294901760
    %3244 = vmatmul.mubr.f32.gmra.mrb[0].mxu0 %v3243
    %v3245 = vpop.f32.mrb[0].mxu0
    %v3246 = vadd.f32 0.0, %v3245
    %v3247 = vpop.f32.mrb[0].mxu0
    %3248 = vdwg.mxu0
    %3249 = vmatprep.subr.mxu0 0.0
    %v3250 = vand.u32 %v3160, 4294901760
    %v3251 = vsub.f32 %v3160, %v3250
    %v3252 = vand.u32 %v3251, 4294901760
    %v3253 = vsub.f32 %v3251, %v3252
    %v3254 = vand.u32 %v3253, 4294901760
    %3255 = vmatpush1.msra.mxu0 %v3254
    %3256 = vmatprep.subr.mxu0 0.0
    %3257 = vmatpush1.msra.mxu0 0.0
    %3258 = vmatprep.subr.mxu0 0.0
    %3259 = vmatpush1.msra.mxu0 0.0
    %3260 = vmatprep.subr.mxu0 0.0
    %3261 = vmatpush1.msra.mxu0 0.0
    %3262 = vmatprep.subr.mxu0 0.0
    %3263 = vmatpush1.msra.mxu0 0.0
    %3264 = vmatprep.subr.mxu0 0.0
    %3265 = vmatpush1.msra.mxu0 0.0
    %3266 = vmatprep.subr.mxu0 0.0
    %3267 = vmatpush1.msra.mxu0 0.0
    %3268 = vmatprep.subr.mxu0 0.0
    %3269 = vmatpush1.msra.mxu0 0.0
    %3270 = vmatprep.subr.mxu0 0.0
    %3271 = vmatpush1.msra.mxu0 0.0
    %3272 = vmatprep.subr.mxu0 0.0
    %3273 = vmatpush1.msra.mxu0 0.0
    %3274 = vmatprep.subr.mxu0 0.0
    %3275 = vmatpush1.msra.mxu0 0.0
    %3276 = vmatprep.subr.mxu0 0.0
    %3277 = vmatpush1.msra.mxu0 0.0
    %3278 = vmatprep.subr.mxu0 0.0
    %3279 = vmatpush1.msra.mxu0 0.0
    %3280 = vmatprep.subr.mxu0 0.0
    %3281 = vmatpush1.msra.mxu0 0.0
    %3282 = vmatprep.subr.mxu0 0.0
    %3283 = vmatpush1.msra.mxu0 0.0
    %3284 = vmatprep.subr.mxu0 0.0
    %3285 = vmatpush1.msra.mxu0 0.0
    %3286 = vmatprep.subr.mxu0 0.0
    %3287 = vmatpush1.msra.mxu0 0.0
    %3288 = vmatprep.subr.mxu0 0.0
    %3289 = vmatpush1.msra.mxu0 0.0
    %3290 = vmatprep.subr.mxu0 0.0
    %3291 = vmatpush1.msra.mxu0 0.0
    %3292 = vmatprep.subr.mxu0 0.0
    %3293 = vmatpush1.msra.mxu0 0.0
    %3294 = vmatprep.subr.mxu0 0.0
    %3295 = vmatpush1.msra.mxu0 0.0
    %3296 = vmatprep.subr.mxu0 0.0
    %3297 = vmatpush1.msra.mxu0 0.0
    %3298 = vmatprep.subr.mxu0 0.0
    %3299 = vmatpush1.msra.mxu0 0.0
    %3300 = vmatprep.subr.mxu0 0.0
    %3301 = vmatpush1.msra.mxu0 0.0
    %3302 = vmatprep.subr.mxu0 0.0
    %3303 = vmatpush1.msra.mxu0 0.0
    %3304 = vmatprep.subr.mxu0 0.0
    %3305 = vmatpush1.msra.mxu0 0.0
    %3306 = vmatprep.subr.mxu0 0.0
    %3307 = vmatpush1.msra.mxu0 0.0
    %3308 = vmatprep.subr.mxu0 0.0
    %3309 = vmatpush1.msra.mxu0 0.0
    %3310 = vmatprep.subr.mxu0 0.0
    %3311 = vmatpush1.msra.mxu0 0.0
    %3312 = vmatprep.subr.mxu0 0.0
    %3313 = vmatpush1.msra.mxu0 0.0
    %3314 = vmatprep.subr.mxu0 0.0
    %3315 = vmatpush1.msra.mxu0 0.0
    %3316 = vmatprep.subr.mxu0 0.0
    %3317 = vmatpush1.msra.mxu0 0.0
    %3318 = vmatprep.mubr.f32.mxu0 0.0
    %v3319 = vand.u32 %v1629, 4294901760
    %3320 = vmatmul.mubr.f32.gmra.mrb[0].mxu0 %v3319
    %v3321 = vpop.f32.mrb[0].mxu0
    %v3322 = vadd.f32 %v3236, %v3321
    %v3323 = vpop.f32.mrb[0].mxu0
    %3324 = vmatprep.mubr.f32.mxu0 0.0
    %v3325 = vand.u32 %v1632, 4294901760
    %3326 = vmatmul.mubr.f32.gmra.mrb[0].mxu0 %v3325
    %v3327 = vpop.f32.mrb[0].mxu0
    %v3328 = vadd.f32 %v3246, %v3327
    %v3329 = vpop.f32.mrb[0].mxu0
    %3330 = vdwg.mxu0
    %3331 = vmatprep.subr.mxu0 0.0
    %v3332 = vand.u32 %v3160, 4294901760
    %v3333 = vsub.f32 %v3160, %v3332
    %3334 = vmatpush1.msra.mxu0 %v3333
    %3335 = vmatprep.subr.mxu0 0.0
    %3336 = vmatpush1.msra.mxu0 0.0
    %3337 = vmatprep.subr.mxu0 0.0
    %3338 = vmatpush1.msra.mxu0 0.0
    %3339 = vmatprep.subr.mxu0 0.0
    %3340 = vmatpush1.msra.mxu0 0.0
    %3341 = vmatprep.subr.mxu0 0.0
    %3342 = vmatpush1.msra.mxu0 0.0
    %3343 = vmatprep.subr.mxu0 0.0
    %3344 = vmatpush1.msra.mxu0 0.0
    %3345 = vmatprep.subr.mxu0 0.0
    %3346 = vmatpush1.msra.mxu0 0.0
    %3347 = vmatprep.subr.mxu0 0.0
    %3348 = vmatpush1.msra.mxu0 0.0
    %3349 = vmatprep.subr.mxu0 0.0
    %3350 = vmatpush1.msra.mxu0 0.0
    %3351 = vmatprep.subr.mxu0 0.0
    %3352 = vmatpush1.msra.mxu0 0.0
    %3353 = vmatprep.subr.mxu0 0.0
    %3354 = vmatpush1.msra.mxu0 0.0
    %3355 = vmatprep.subr.mxu0 0.0
    %3356 = vmatpush1.msra.mxu0 0.0
    %3357 = vmatprep.subr.mxu0 0.0
    %3358 = vmatpush1.msra.mxu0 0.0
    %3359 = vmatprep.subr.mxu0 0.0
    %3360 = vmatpush1.msra.mxu0 0.0
    %3361 = vmatprep.subr.mxu0 0.0
    %3362 = vmatpush1.msra.mxu0 0.0
    %3363 = vmatprep.subr.mxu0 0.0
    %3364 = vmatpush1.msra.mxu0 0.0
    %3365 = vmatprep.subr.mxu0 0.0
    %3366 = vmatpush1.msra.mxu0 0.0
    %3367 = vmatprep.subr.mxu0 0.0
    %3368 = vmatpush1.msra.mxu0 0.0
    %3369 = vmatprep.subr.mxu0 0.0
    %3370 = vmatpush1.msra.mxu0 0.0
    %3371 = vmatprep.subr.mxu0 0.0
    %3372 = vmatpush1.msra.mxu0 0.0
    %3373 = vmatprep.subr.mxu0 0.0
    %3374 = vmatpush1.msra.mxu0 0.0
    %3375 = vmatprep.subr.mxu0 0.0
    %3376 = vmatpush1.msra.mxu0 0.0
    %3377 = vmatprep.subr.mxu0 0.0
    %3378 = vmatpush1.msra.mxu0 0.0
    %3379 = vmatprep.subr.mxu0 0.0
    %3380 = vmatpush1.msra.mxu0 0.0
    %3381 = vmatprep.subr.mxu0 0.0
    %3382 = vmatpush1.msra.mxu0 0.0
    %3383 = vmatprep.subr.mxu0 0.0
    %3384 = vmatpush1.msra.mxu0 0.0
    %3385 = vmatprep.subr.mxu0 0.0
    %3386 = vmatpush1.msra.mxu0 0.0
    %3387 = vmatprep.subr.mxu0 0.0
    %3388 = vmatpush1.msra.mxu0 0.0
    %3389 = vmatprep.subr.mxu0 0.0
    %3390 = vmatpush1.msra.mxu0 0.0
    %3391 = vmatprep.subr.mxu0 0.0
    %3392 = vmatpush1.msra.mxu0 0.0
    %3393 = vmatprep.subr.mxu0 0.0
    %3394 = vmatpush1.msra.mxu0 0.0
    %3395 = vmatprep.subr.mxu0 0.0
    %3396 = vmatpush1.msra.mxu0 0.0
    %3397 = vmatprep.mubr.f32.mxu0 0.0
    %v3398 = vand.u32 %v1629, 4294901760
    %v3399 = vsub.f32 %v1629, %v3398
    %3400 = vmatmul.mubr.f32.gmra.mrb[0].mxu0 %v3399
    %v3401 = vpop.f32.mrb[0].mxu0
    %v3402 = vadd.f32 %v3322, %v3401
    %v3403 = vpop.f32.mrb[0].mxu0
    %3404 = vmatprep.mubr.f32.mxu0 0.0
    %v3405 = vand.u32 %v1632, 4294901760
    %v3406 = vsub.f32 %v1632, %v3405
    %3407 = vmatmul.mubr.f32.gmra.mrb[0].mxu0 %v3406
    %v3408 = vpop.f32.mrb[0].mxu0
    %v3409 = vadd.f32 %v3328, %v3408
    %v3410 = vpop.f32.mrb[0].mxu0
    %3411 = vdwg.mxu0
    %3412 = vmatprep.subr.mxu0 0.0
    %v3413 = vand.u32 %v3160, 4294901760
    %3414 = vmatpush1.msra.mxu0 %v3413
    %3415 = vmatprep.subr.mxu0 0.0
    %3416 = vmatpush1.msra.mxu0 0.0
    %3417 = vmatprep.subr.mxu0 0.0
    %3418 = vmatpush1.msra.mxu0 0.0
    %3419 = vmatprep.subr.mxu0 0.0
    %3420 = vmatpush1.msra.mxu0 0.0
    %3421 = vmatprep.subr.mxu0 0.0
    %3422 = vmatpush1.msra.mxu0 0.0
    %3423 = vmatprep.subr.mxu0 0.0
    %3424 = vmatpush1.msra.mxu0 0.0
    %3425 = vmatprep.subr.mxu0 0.0
    %3426 = vmatpush1.msra.mxu0 0.0
    %3427 = vmatprep.subr.mxu0 0.0
    %3428 = vmatpush1.msra.mxu0 0.0
    %3429 = vmatprep.subr.mxu0 0.0
    %3430 = vmatpush1.msra.mxu0 0.0
    %3431 = vmatprep.subr.mxu0 0.0
    %3432 = vmatpush1.msra.mxu0 0.0
    %3433 = vmatprep.subr.mxu0 0.0
    %3434 = vmatpush1.msra.mxu0 0.0
    %3435 = vmatprep.subr.mxu0 0.0
    %3436 = vmatpush1.msra.mxu0 0.0
    %3437 = vmatprep.subr.mxu0 0.0
    %3438 = vmatpush1.msra.mxu0 0.0
    %3439 = vmatprep.subr.mxu0 0.0
    %3440 = vmatpush1.msra.mxu0 0.0
    %3441 = vmatprep.subr.mxu0 0.0
    %3442 = vmatpush1.msra.mxu0 0.0
    %3443 = vmatprep.subr.mxu0 0.0
    %3444 = vmatpush1.msra.mxu0 0.0
    %3445 = vmatprep.subr.mxu0 0.0
    %3446 = vmatpush1.msra.mxu0 0.0
    %3447 = vmatprep.subr.mxu0 0.0
    %3448 = vmatpush1.msra.mxu0 0.0
    %3449 = vmatprep.subr.mxu0 0.0
    %3450 = vmatpush1.msra.mxu0 0.0
    %3451 = vmatprep.subr.mxu0 0.0
    %3452 = vmatpush1.msra.mxu0 0.0
    %3453 = vmatprep.subr.mxu0 0.0
    %3454 = vmatpush1.msra.mxu0 0.0
    %3455 = vmatprep.subr.mxu0 0.0
    %3456 = vmatpush1.msra.mxu0 0.0
    %3457 = vmatprep.subr.mxu0 0.0
    %3458 = vmatpush1.msra.mxu0 0.0
    %3459 = vmatprep.subr.mxu0 0.0
    %3460 = vmatpush1.msra.mxu0 0.0
    %3461 = vmatprep.subr.mxu0 0.0
    %3462 = vmatpush1.msra.mxu0 0.0
    %3463 = vmatprep.subr.mxu0 0.0
    %3464 = vmatpush1.msra.mxu0 0.0
    %3465 = vmatprep.subr.mxu0 0.0
    %3466 = vmatpush1.msra.mxu0 0.0
    %3467 = vmatprep.subr.mxu0 0.0
    %3468 = vmatpush1.msra.mxu0 0.0
    %3469 = vmatprep.subr.mxu0 0.0
    %3470 = vmatpush1.msra.mxu0 0.0
    %3471 = vmatprep.subr.mxu0 0.0
    %3472 = vmatpush1.msra.mxu0 0.0
    %3473 = vmatprep.subr.mxu0 0.0
    %3474 = vmatpush1.msra.mxu0 0.0
    %3475 = vmatprep.subr.mxu0 0.0
    %3476 = vmatpush1.msra.mxu0 0.0
    %3477 = vmatprep.mubr.f32.mxu0 0.0
    %v3478 = vand.u32 %v1629, 4294901760
    %v3479 = vsub.f32 %v1629, %v3478
    %v3480 = vand.u32 %v3479, 4294901760
    %3481 = vmatmul.mubr.f32.gmra.mrb[0].mxu0 %v3480
    %v3482 = vpop.f32.mrb[0].mxu0
    %v3483 = vadd.f32 %v3402, %v3482
    %v3484 = vpop.f32.mrb[0].mxu0
    %3485 = vmatprep.mubr.f32.mxu0 0.0
    %v3486 = vand.u32 %v1632, 4294901760
    %v3487 = vsub.f32 %v1632, %v3486
    %v3488 = vand.u32 %v3487, 4294901760
    %3489 = vmatmul.mubr.f32.gmra.mrb[0].mxu0 %v3488
    %v3490 = vpop.f32.mrb[0].mxu0
    %v3491 = vadd.f32 %v3409, %v3490
    %v3492 = vpop.f32.mrb[0].mxu0
    %3493 = vdwg.mxu0
    %3494 = vmatprep.subr.mxu0 0.0
    %v3495 = vand.u32 %v3160, 4294901760
    %v3496 = vsub.f32 %v3160, %v3495
    %v3497 = vand.u32 %v3496, 4294901760
    %3498 = vmatpush1.msra.mxu0 %v3497
    %3499 = vmatprep.subr.mxu0 0.0
    %3500 = vmatpush1.msra.mxu0 0.0
    %3501 = vmatprep.subr.mxu0 0.0
    %3502 = vmatpush1.msra.mxu0 0.0
    %3503 = vmatprep.subr.mxu0 0.0
    %3504 = vmatpush1.msra.mxu0 0.0
    %3505 = vmatprep.subr.mxu0 0.0
    %3506 = vmatpush1.msra.mxu0 0.0
    %3507 = vmatprep.subr.mxu0 0.0
    %3508 = vmatpush1.msra.mxu0 0.0
    %3509 = vmatprep.subr.mxu0 0.0
    %3510 = vmatpush1.msra.mxu0 0.0
    %3511 = vmatprep.subr.mxu0 0.0
    %3512 = vmatpush1.msra.mxu0 0.0
    %3513 = vmatprep.subr.mxu0 0.0
    %3514 = vmatpush1.msra.mxu0 0.0
    %3515 = vmatprep.subr.mxu0 0.0
    %3516 = vmatpush1.msra.mxu0 0.0
    %3517 = vmatprep.subr.mxu0 0.0
    %3518 = vmatpush1.msra.mxu0 0.0
    %3519 = vmatprep.subr.mxu0 0.0
    %3520 = vmatpush1.msra.mxu0 0.0
    %3521 = vmatprep.subr.mxu0 0.0
    %3522 = vmatpush1.msra.mxu0 0.0
    %3523 = vmatprep.subr.mxu0 0.0
    %3524 = vmatpush1.msra.mxu0 0.0
    %3525 = vmatprep.subr.mxu0 0.0
    %3526 = vmatpush1.msra.mxu0 0.0
    %3527 = vmatprep.subr.mxu0 0.0
    %3528 = vmatpush1.msra.mxu0 0.0
    %3529 = vmatprep.subr.mxu0 0.0
    %3530 = vmatpush1.msra.mxu0 0.0
    %3531 = vmatprep.subr.mxu0 0.0
    %3532 = vmatpush1.msra.mxu0 0.0
    %3533 = vmatprep.subr.mxu0 0.0
    %3534 = vmatpush1.msra.mxu0 0.0
    %3535 = vmatprep.subr.mxu0 0.0
    %3536 = vmatpush1.msra.mxu0 0.0
    %3537 = vmatprep.subr.mxu0 0.0
    %3538 = vmatpush1.msra.mxu0 0.0
    %3539 = vmatprep.subr.mxu0 0.0
    %3540 = vmatpush1.msra.mxu0 0.0
    %3541 = vmatprep.subr.mxu0 0.0
    %3542 = vmatpush1.msra.mxu0 0.0
    %3543 = vmatprep.subr.mxu0 0.0
    %3544 = vmatpush1.msra.mxu0 0.0
    %3545 = vmatprep.subr.mxu0 0.0
    %3546 = vmatpush1.msra.mxu0 0.0
    %3547 = vmatprep.subr.mxu0 0.0
    %3548 = vmatpush1.msra.mxu0 0.0
    %3549 = vmatprep.subr.mxu0 0.0
    %3550 = vmatpush1.msra.mxu0 0.0
    %3551 = vmatprep.subr.mxu0 0.0
    %3552 = vmatpush1.msra.mxu0 0.0
    %3553 = vmatprep.subr.mxu0 0.0
    %3554 = vmatpush1.msra.mxu0 0.0
    %3555 = vmatprep.subr.mxu0 0.0
    %3556 = vmatpush1.msra.mxu0 0.0
    %3557 = vmatprep.subr.mxu0 0.0
    %3558 = vmatpush1.msra.mxu0 0.0
    %3559 = vmatprep.subr.mxu0 0.0
    %3560 = vmatpush1.msra.mxu0 0.0
    %3561 = vmatprep.mubr.f32.mxu0 0.0
    %v3562 = vand.u32 %v1629, 4294901760
    %3563 = vmatmul.mubr.f32.gmra.mrb[0].mxu0 %v3562
    %v3564 = vpop.f32.mrb[0].mxu0
    %v3565 = vadd.f32 %v3483, %v3564
    %v3566 = vpop.f32.mrb[0].mxu0
    %3567 = vmatprep.mubr.f32.mxu0 0.0
    %v3568 = vand.u32 %v1632, 4294901760
    %3569 = vmatmul.mubr.f32.gmra.mrb[0].mxu0 %v3568
    %v3570 = vpop.f32.mrb[0].mxu0
    %v3571 = vadd.f32 %v3491, %v3570
    %v3572 = vpop.f32.mrb[0].mxu0
    %3573 = vdwg.mxu0
    %3574 = vmatprep.subr.mxu0 0.0
    %v3575 = vand.u32 %v3160, 4294901760
    %3576 = vmatpush1.msra.mxu0 %v3575
    %3577 = vmatprep.subr.mxu0 0.0
    %3578 = vmatpush1.msra.mxu0 0.0
    %3579 = vmatprep.subr.mxu0 0.0
    %3580 = vmatpush1.msra.mxu0 0.0
    %3581 = vmatprep.subr.mxu0 0.0
    %3582 = vmatpush1.msra.mxu0 0.0
    %3583 = vmatprep.subr.mxu0 0.0
    %3584 = vmatpush1.msra.mxu0 0.0
    %3585 = vmatprep.subr.mxu0 0.0
    %3586 = vmatpush1.msra.mxu0 0.0
    %3587 = vmatprep.subr.mxu0 0.0
    %3588 = vmatpush1.msra.mxu0 0.0
    %3589 = vmatprep.subr.mxu0 0.0
    %3590 = vmatpush1.msra.mxu0 0.0
    %3591 = vmatprep.subr.mxu0 0.0
    %3592 = vmatpush1.msra.mxu0 0.0
    %3593 = vmatprep.subr.mxu0 0.0
    %3594 = vmatpush1.msra.mxu0 0.0
    %3595 = vmatprep.subr.mxu0 0.0
    %3596 = vmatpush1.msra.mxu0 0.0
    %3597 = vmatprep.subr.mxu0 0.0
    %3598 = vmatpush1.msra.mxu0 0.0
    %3599 = vmatprep.subr.mxu0 0.0
    %3600 = vmatpush1.msra.mxu0 0.0
    %3601 = vmatprep.subr.mxu0 0.0
    %3602 = vmatpush1.msra.mxu0 0.0
    %3603 = vmatprep.subr.mxu0 0.0
    %3604 = vmatpush1.msra.mxu0 0.0
    %3605 = vmatprep.subr.mxu0 0.0
    %3606 = vmatpush1.msra.mxu0 0.0
    %3607 = vmatprep.subr.mxu0 0.0
    %3608 = vmatpush1.msra.mxu0 0.0
    %3609 = vmatprep.subr.mxu0 0.0
    %3610 = vmatpush1.msra.mxu0 0.0
    %3611 = vmatprep.subr.mxu0 0.0
    %3612 = vmatpush1.msra.mxu0 0.0
    %3613 = vmatprep.subr.mxu0 0.0
    %3614 = vmatpush1.msra.mxu0 0.0
    %3615 = vmatprep.subr.mxu0 0.0
    %3616 = vmatpush1.msra.mxu0 0.0
    %3617 = vmatprep.subr.mxu0 0.0
    %3618 = vmatpush1.msra.mxu0 0.0
    %3619 = vmatprep.subr.mxu0 0.0
    %3620 = vmatpush1.msra.mxu0 0.0
    %3621 = vmatprep.subr.mxu0 0.0
    %3622 = vmatpush1.msra.mxu0 0.0
    %3623 = vmatprep.subr.mxu0 0.0
    %3624 = vmatpush1.msra.mxu0 0.0
    %3625 = vmatprep.subr.mxu0 0.0
    %3626 = vmatpush1.msra.mxu0 0.0
    %3627 = vmatprep.subr.mxu0 0.0
    %3628 = vmatpush1.msra.mxu0 0.0
    %3629 = vmatprep.subr.mxu0 0.0
    %3630 = vmatpush1.msra.mxu0 0.0
    %3631 = vmatprep.subr.mxu0 0.0
    %3632 = vmatpush1.msra.mxu0 0.0
    %3633 = vmatprep.subr.mxu0 0.0
    %3634 = vmatpush1.msra.mxu0 0.0
    %3635 = vmatprep.subr.mxu0 0.0
    %3636 = vmatpush1.msra.mxu0 0.0
    %3637 = vmatprep.subr.mxu0 0.0
    %3638 = vmatpush1.msra.mxu0 0.0
    %3639 = vmatprep.mubr.f32.mxu0 0.0
    %v3640 = vand.u32 %v1629, 4294901760
    %3641 = vmatmul.mubr.f32.gmra.mrb[0].mxu0 %v3640
    %v3642 = vpop.f32.mrb[0].mxu0
    %v3643 = vadd.f32 %v3565, %v3642
    %v3644 = vpop.f32.mrb[0].mxu0
    %3645 = vmatprep.mubr.f32.mxu0 0.0
    %v3646 = vand.u32 %v1632, 4294901760
    %3647 = vmatmul.mubr.f32.gmra.mrb[0].mxu0 %v3646
    %v3648 = vpop.f32.mrb[0].mxu0
    %v3649 = vadd.f32 %v3571, %v3648
    %v3650 = vpop.f32.mrb[0].mxu0
    %3651 = vdwg.mxu0
    %v3652 = vrcp.pop %v3643
    %v3653 = vmul.f32 %v2697, %v3652
    %v3654 = vrcp.pop %v3649
    %v3655 = vmul.f32 %v2699, %v3654
    %v3656 = vld [vmem:[%s10] sm:$0xf]
    %v3658 = vsel %vm2684, %v3653, 0
    %v3661 = vsel %vm2684, %v3655, 0
    %vm3663 = vcmask 1043456
    %v3665 = vsel %vm3663, %v3656, 0
    %3667 = vmatprep.subr.mxu0 0.0
    %v3668 = vand.u32 %v3665, 4294901760
    %3669 = vmatpush1.msra.mxu0 %v3668
    %3670 = vmatprep.subr.mxu0 0.0
    %3671 = vmatpush1.msra.mxu0 0.0
    %3672 = vmatprep.subr.mxu0 0.0
    %3673 = vmatpush1.msra.mxu0 0.0
    %3674 = vmatprep.subr.mxu0 0.0
    %3675 = vmatpush1.msra.mxu0 0.0
    %3676 = vmatprep.subr.mxu0 0.0
    %3677 = vmatpush1.msra.mxu0 0.0
    %3678 = vmatprep.subr.mxu0 0.0
    %3679 = vmatpush1.msra.mxu0 0.0
    %3680 = vmatprep.subr.mxu0 0.0
    %3681 = vmatpush1.msra.mxu0 0.0
    %3682 = vmatprep.subr.mxu0 0.0
    %3683 = vmatpush1.msra.mxu0 0.0
    %3684 = vmatprep.subr.mxu0 0.0
    %3685 = vmatpush1.msra.mxu0 0.0
    %3686 = vmatprep.subr.mxu0 0.0
    %3687 = vmatpush1.msra.mxu0 0.0
    %3688 = vmatprep.subr.mxu0 0.0
    %3689 = vmatpush1.msra.mxu0 0.0
    %3690 = vmatprep.subr.mxu0 0.0
    %3691 = vmatpush1.msra.mxu0 0.0
    %3692 = vmatprep.subr.mxu0 0.0
    %3693 = vmatpush1.msra.mxu0 0.0
    %3694 = vmatprep.subr.mxu0 0.0
    %3695 = vmatpush1.msra.mxu0 0.0
    %3696 = vmatprep.subr.mxu0 0.0
    %3697 = vmatpush1.msra.mxu0 0.0
    %3698 = vmatprep.subr.mxu0 0.0
    %3699 = vmatpush1.msra.mxu0 0.0
    %3700 = vmatprep.subr.mxu0 0.0
    %3701 = vmatpush1.msra.mxu0 0.0
    %3702 = vmatprep.subr.mxu0 0.0
    %3703 = vmatpush1.msra.mxu0 0.0
    %3704 = vmatprep.subr.mxu0 0.0
    %3705 = vmatpush1.msra.mxu0 0.0
    %3706 = vmatprep.subr.mxu0 0.0
    %3707 = vmatpush1.msra.mxu0 0.0
    %3708 = vmatprep.subr.mxu0 0.0
    %3709 = vmatpush1.msra.mxu0 0.0
    %3710 = vmatprep.subr.mxu0 0.0
    %3711 = vmatpush1.msra.mxu0 0.0
    %3712 = vmatprep.subr.mxu0 0.0
    %3713 = vmatpush1.msra.mxu0 0.0
    %3714 = vmatprep.subr.mxu0 0.0
    %3715 = vmatpush1.msra.mxu0 0.0
    %3716 = vmatprep.subr.mxu0 0.0
    %3717 = vmatpush1.msra.mxu0 0.0
    %3718 = vmatprep.subr.mxu0 0.0
    %3719 = vmatpush1.msra.mxu0 0.0
    %3720 = vmatprep.subr.mxu0 0.0
    %3721 = vmatpush1.msra.mxu0 0.0
    %3722 = vmatprep.subr.mxu0 0.0
    %3723 = vmatpush1.msra.mxu0 0.0
    %3724 = vmatprep.subr.mxu0 0.0
    %3725 = vmatpush1.msra.mxu0 0.0
    %3726 = vmatprep.subr.mxu0 0.0
    %3727 = vmatpush1.msra.mxu0 0.0
    %3728 = vmatprep.subr.mxu0 0.0
    %3729 = vmatpush1.msra.mxu0 0.0
    %3730 = vmatprep.subr.mxu0 0.0
    %3731 = vmatpush1.msra.mxu0 0.0
    %3732 = vmatprep.mubr.f32.mxu0 0.0
    %v3733 = vand.u32 %v3658, 4294901760
    %v3734 = vsub.f32 %v3658, %v3733
    %v3735 = vand.u32 %v3734, 4294901760
    %v3736 = vsub.f32 %v3734, %v3735
    %v3737 = vand.u32 %v3736, 4294901760
    %3738 = vmatmul.mubr.f32.gmra.mrb[0].mxu0 %v3737
    %v3739 = vpop.f32.mrb[0].mxu0
    %v3740 = vadd.f32 0.0, %v3739
    %v3741 = vpop.f32.mrb[0].mxu0
    %3742 = vmatprep.mubr.f32.mxu0 0.0
    %v3743 = vand.u32 %v3661, 4294901760
    %v3744 = vsub.f32 %v3661, %v3743
    %v3745 = vand.u32 %v3744, 4294901760
    %v3746 = vsub.f32 %v3744, %v3745
    %v3747 = vand.u32 %v3746, 4294901760
    %3748 = vmatmul.mubr.f32.gmra.mrb[0].mxu0 %v3747
    %v3749 = vpop.f32.mrb[0].mxu0
    %v3750 = vadd.f32 0.0, %v3749
    %v3751 = vpop.f32.mrb[0].mxu0
    %3752 = vdwg.mxu0
    %3753 = vmatprep.subr.mxu0 0.0
    %v3754 = vand.u32 %v3665, 4294901760
    %v3755 = vsub.f32 %v3665, %v3754
    %v3756 = vand.u32 %v3755, 4294901760
    %v3757 = vsub.f32 %v3755, %v3756
    %v3758 = vand.u32 %v3757, 4294901760
    %3759 = vmatpush1.msra.mxu0 %v3758
    %3760 = vmatprep.subr.mxu0 0.0
    %3761 = vmatpush1.msra.mxu0 0.0
    %3762 = vmatprep.subr.mxu0 0.0
    %3763 = vmatpush1.msra.mxu0 0.0
    %3764 = vmatprep.subr.mxu0 0.0
    %3765 = vmatpush1.msra.mxu0 0.0
    %3766 = vmatprep.subr.mxu0 0.0
    %3767 = vmatpush1.msra.mxu0 0.0
    %3768 = vmatprep.subr.mxu0 0.0
    %3769 = vmatpush1.msra.mxu0 0.0
    %3770 = vmatprep.subr.mxu0 0.0
    %3771 = vmatpush1.msra.mxu0 0.0
    %3772 = vmatprep.subr.mxu0 0.0
    %3773 = vmatpush1.msra.mxu0 0.0
    %3774 = vmatprep.subr.mxu0 0.0
    %3775 = vmatpush1.msra.mxu0 0.0
    %3776 = vmatprep.subr.mxu0 0.0
    %3777 = vmatpush1.msra.mxu0 0.0
    %3778 = vmatprep.subr.mxu0 0.0
    %3779 = vmatpush1.msra.mxu0 0.0
    %3780 = vmatprep.subr.mxu0 0.0
    %3781 = vmatpush1.msra.mxu0 0.0
    %3782 = vmatprep.subr.mxu0 0.0
    %3783 = vmatpush1.msra.mxu0 0.0
    %3784 = vmatprep.subr.mxu0 0.0
    %3785 = vmatpush1.msra.mxu0 0.0
    %3786 = vmatprep.subr.mxu0 0.0
    %3787 = vmatpush1.msra.mxu0 0.0
    %3788 = vmatprep.subr.mxu0 0.0
    %3789 = vmatpush1.msra.mxu0 0.0
    %3790 = vmatprep.subr.mxu0 0.0
    %3791 = vmatpush1.msra.mxu0 0.0
    %3792 = vmatprep.subr.mxu0 0.0
    %3793 = vmatpush1.msra.mxu0 0.0
    %3794 = vmatprep.subr.mxu0 0.0
    %3795 = vmatpush1.msra.mxu0 0.0
    %3796 = vmatprep.subr.mxu0 0.0
    %3797 = vmatpush1.msra.mxu0 0.0
    %3798 = vmatprep.subr.mxu0 0.0
    %3799 = vmatpush1.msra.mxu0 0.0
    %3800 = vmatprep.subr.mxu0 0.0
    %3801 = vmatpush1.msra.mxu0 0.0
    %3802 = vmatprep.subr.mxu0 0.0
    %3803 = vmatpush1.msra.mxu0 0.0
    %3804 = vmatprep.subr.mxu0 0.0
    %3805 = vmatpush1.msra.mxu0 0.0
    %3806 = vmatprep.subr.mxu0 0.0
    %3807 = vmatpush1.msra.mxu0 0.0
    %3808 = vmatprep.subr.mxu0 0.0
    %3809 = vmatpush1.msra.mxu0 0.0
    %3810 = vmatprep.subr.mxu0 0.0
    %3811 = vmatpush1.msra.mxu0 0.0
    %3812 = vmatprep.subr.mxu0 0.0
    %3813 = vmatpush1.msra.mxu0 0.0
    %3814 = vmatprep.subr.mxu0 0.0
    %3815 = vmatpush1.msra.mxu0 0.0
    %3816 = vmatprep.subr.mxu0 0.0
    %3817 = vmatpush1.msra.mxu0 0.0
    %3818 = vmatprep.subr.mxu0 0.0
    %3819 = vmatpush1.msra.mxu0 0.0
    %3820 = vmatprep.subr.mxu0 0.0
    %3821 = vmatpush1.msra.mxu0 0.0
    %3822 = vmatprep.mubr.f32.mxu0 0.0
    %v3823 = vand.u32 %v3658, 4294901760
    %3824 = vmatmul.mubr.f32.gmra.mrb[0].mxu0 %v3823
    %v3825 = vpop.f32.mrb[0].mxu0
    %v3826 = vadd.f32 %v3740, %v3825
    %v3827 = vpop.f32.mrb[0].mxu0
    %3828 = vmatprep.mubr.f32.mxu0 0.0
    %v3829 = vand.u32 %v3661, 4294901760
    %3830 = vmatmul.mubr.f32.gmra.mrb[0].mxu0 %v3829
    %v3831 = vpop.f32.mrb[0].mxu0
    %v3832 = vadd.f32 %v3750, %v3831
    %v3833 = vpop.f32.mrb[0].mxu0
    %3834 = vdwg.mxu0
    %3835 = vmatprep.subr.mxu0 0.0
    %v3836 = vand.u32 %v3665, 4294901760
    %v3837 = vsub.f32 %v3665, %v3836
    %3838 = vmatpush1.msra.mxu0 %v3837
    %3839 = vmatprep.subr.mxu0 0.0
    %3840 = vmatpush1.msra.mxu0 0.0
    %3841 = vmatprep.subr.mxu0 0.0
    %3842 = vmatpush1.msra.mxu0 0.0
    %3843 = vmatprep.subr.mxu0 0.0
    %3844 = vmatpush1.msra.mxu0 0.0
    %3845 = vmatprep.subr.mxu0 0.0
    %3846 = vmatpush1.msra.mxu0 0.0
    %3847 = vmatprep.subr.mxu0 0.0
    %3848 = vmatpush1.msra.mxu0 0.0
    %3849 = vmatprep.subr.mxu0 0.0
    %3850 = vmatpush1.msra.mxu0 0.0
    %3851 = vmatprep.subr.mxu0 0.0
    %3852 = vmatpush1.msra.mxu0 0.0
    %3853 = vmatprep.subr.mxu0 0.0
    %3854 = vmatpush1.msra.mxu0 0.0
    %3855 = vmatprep.subr.mxu0 0.0
    %3856 = vmatpush1.msra.mxu0 0.0
    %3857 = vmatprep.subr.mxu0 0.0
    %3858 = vmatpush1.msra.mxu0 0.0
    %3859 = vmatprep.subr.mxu0 0.0
    %3860 = vmatpush1.msra.mxu0 0.0
    %3861 = vmatprep.subr.mxu0 0.0
    %3862 = vmatpush1.msra.mxu0 0.0
    %3863 = vmatprep.subr.mxu0 0.0
    %3864 = vmatpush1.msra.mxu0 0.0
    %3865 = vmatprep.subr.mxu0 0.0
    %3866 = vmatpush1.msra.mxu0 0.0
    %3867 = vmatprep.subr.mxu0 0.0
    %3868 = vmatpush1.msra.mxu0 0.0
    %3869 = vmatprep.subr.mxu0 0.0
    %3870 = vmatpush1.msra.mxu0 0.0
    %3871 = vmatprep.subr.mxu0 0.0
    %3872 = vmatpush1.msra.mxu0 0.0
    %3873 = vmatprep.subr.mxu0 0.0
    %3874 = vmatpush1.msra.mxu0 0.0
    %3875 = vmatprep.subr.mxu0 0.0
    %3876 = vmatpush1.msra.mxu0 0.0
    %3877 = vmatprep.subr.mxu0 0.0
    %3878 = vmatpush1.msra.mxu0 0.0
    %3879 = vmatprep.subr.mxu0 0.0
    %3880 = vmatpush1.msra.mxu0 0.0
    %3881 = vmatprep.subr.mxu0 0.0
    %3882 = vmatpush1.msra.mxu0 0.0
    %3883 = vmatprep.subr.mxu0 0.0
    %3884 = vmatpush1.msra.mxu0 0.0
    %3885 = vmatprep.subr.mxu0 0.0
    %3886 = vmatpush1.msra.mxu0 0.0
    %3887 = vmatprep.subr.mxu0 0.0
    %3888 = vmatpush1.msra.mxu0 0.0
    %3889 = vmatprep.subr.mxu0 0.0
    %3890 = vmatpush1.msra.mxu0 0.0
    %3891 = vmatprep.subr.mxu0 0.0
    %3892 = vmatpush1.msra.mxu0 0.0
    %3893 = vmatprep.subr.mxu0 0.0
    %3894 = vmatpush1.msra.mxu0 0.0
    %3895 = vmatprep.subr.mxu0 0.0
    %3896 = vmatpush1.msra.mxu0 0.0
    %3897 = vmatprep.subr.mxu0 0.0
    %3898 = vmatpush1.msra.mxu0 0.0
    %3899 = vmatprep.subr.mxu0 0.0
    %3900 = vmatpush1.msra.mxu0 0.0
    %3901 = vmatprep.mubr.f32.mxu0 0.0
    %v3902 = vand.u32 %v3658, 4294901760
    %v3903 = vsub.f32 %v3658, %v3902
    %3904 = vmatmul.mubr.f32.gmra.mrb[0].mxu0 %v3903
    %v3905 = vpop.f32.mrb[0].mxu0
    %v3906 = vadd.f32 %v3826, %v3905
    %v3907 = vpop.f32.mrb[0].mxu0
    %3908 = vmatprep.mubr.f32.mxu0 0.0
    %v3909 = vand.u32 %v3661, 4294901760
    %v3910 = vsub.f32 %v3661, %v3909
    %3911 = vmatmul.mubr.f32.gmra.mrb[0].mxu0 %v3910
    %v3912 = vpop.f32.mrb[0].mxu0
    %v3913 = vadd.f32 %v3832, %v3912
    %v3914 = vpop.f32.mrb[0].mxu0
    %3915 = vdwg.mxu0
    %3916 = vmatprep.subr.mxu0 0.0
    %v3917 = vand.u32 %v3665, 4294901760
    %3918 = vmatpush1.msra.mxu0 %v3917
    %3919 = vmatprep.subr.mxu0 0.0
    %3920 = vmatpush1.msra.mxu0 0.0
    %3921 = vmatprep.subr.mxu0 0.0
    %3922 = vmatpush1.msra.mxu0 0.0
    %3923 = vmatprep.subr.mxu0 0.0
    %3924 = vmatpush1.msra.mxu0 0.0
    %3925 = vmatprep.subr.mxu0 0.0
    %3926 = vmatpush1.msra.mxu0 0.0
    %3927 = vmatprep.subr.mxu0 0.0
    %3928 = vmatpush1.msra.mxu0 0.0
    %3929 = vmatprep.subr.mxu0 0.0
    %3930 = vmatpush1.msra.mxu0 0.0
    %3931 = vmatprep.subr.mxu0 0.0
    %3932 = vmatpush1.msra.mxu0 0.0
    %3933 = vmatprep.subr.mxu0 0.0
    %3934 = vmatpush1.msra.mxu0 0.0
    %3935 = vmatprep.subr.mxu0 0.0
    %3936 = vmatpush1.msra.mxu0 0.0
    %3937 = vmatprep.subr.mxu0 0.0
    %3938 = vmatpush1.msra.mxu0 0.0
    %3939 = vmatprep.subr.mxu0 0.0
    %3940 = vmatpush1.msra.mxu0 0.0
    %3941 = vmatprep.subr.mxu0 0.0
    %3942 = vmatpush1.msra.mxu0 0.0
    %3943 = vmatprep.subr.mxu0 0.0
    %3944 = vmatpush1.msra.mxu0 0.0
    %3945 = vmatprep.subr.mxu0 0.0
    %3946 = vmatpush1.msra.mxu0 0.0
    %3947 = vmatprep.subr.mxu0 0.0
    %3948 = vmatpush1.msra.mxu0 0.0
    %3949 = vmatprep.subr.mxu0 0.0
    %3950 = vmatpush1.msra.mxu0 0.0
    %3951 = vmatprep.subr.mxu0 0.0
    %3952 = vmatpush1.msra.mxu0 0.0
    %3953 = vmatprep.subr.mxu0 0.0
    %3954 = vmatpush1.msra.mxu0 0.0
    %3955 = vmatprep.subr.mxu0 0.0
    %3956 = vmatpush1.msra.mxu0 0.0
    %3957 = vmatprep.subr.mxu0 0.0
    %3958 = vmatpush1.msra.mxu0 0.0
    %3959 = vmatprep.subr.mxu0 0.0
    %3960 = vmatpush1.msra.mxu0 0.0
    %3961 = vmatprep.subr.mxu0 0.0
    %3962 = vmatpush1.msra.mxu0 0.0
    %3963 = vmatprep.subr.mxu0 0.0
    %3964 = vmatpush1.msra.mxu0 0.0
    %3965 = vmatprep.subr.mxu0 0.0
    %3966 = vmatpush1.msra.mxu0 0.0
    %3967 = vmatprep.subr.mxu0 0.0
    %3968 = vmatpush1.msra.mxu0 0.0
    %3969 = vmatprep.subr.mxu0 0.0
    %3970 = vmatpush1.msra.mxu0 0.0
    %3971 = vmatprep.subr.mxu0 0.0
    %3972 = vmatpush1.msra.mxu0 0.0
    %3973 = vmatprep.subr.mxu0 0.0
    %3974 = vmatpush1.msra.mxu0 0.0
    %3975 = vmatprep.subr.mxu0 0.0
    %3976 = vmatpush1.msra.mxu0 0.0
    %3977 = vmatprep.subr.mxu0 0.0
    %3978 = vmatpush1.msra.mxu0 0.0
    %3979 = vmatprep.subr.mxu0 0.0
    %3980 = vmatpush1.msra.mxu0 0.0
    %3981 = vmatprep.mubr.f32.mxu0 0.0
    %v3982 = vand.u32 %v3658, 4294901760
    %v3983 = vsub.f32 %v3658, %v3982
    %v3984 = vand.u32 %v3983, 4294901760
    %3985 = vmatmul.mubr.f32.gmra.mrb[0].mxu0 %v3984
    %v3986 = vpop.f32.mrb[0].mxu0
    %v3987 = vadd.f32 %v3906, %v3986
    %v3988 = vpop.f32.mrb[0].mxu0
    %3989 = vmatprep.mubr.f32.mxu0 0.0
    %v3990 = vand.u32 %v3661, 4294901760
    %v3991 = vsub.f32 %v3661, %v3990
    %v3992 = vand.u32 %v3991, 4294901760
    %3993 = vmatmul.mubr.f32.gmra.mrb[0].mxu0 %v3992
    %v3994 = vpop.f32.mrb[0].mxu0
    %v3995 = vadd.f32 %v3913, %v3994
    %v3996 = vpop.f32.mrb[0].mxu0
    %3997 = vdwg.mxu0
    %3998 = vmatprep.subr.mxu0 0.0
    %v3999 = vand.u32 %v3665, 4294901760
    %v4000 = vsub.f32 %v3665, %v3999
    %v4001 = vand.u32 %v4000, 4294901760
    %4002 = vmatpush1.msra.mxu0 %v4001
    %4003 = vmatprep.subr.mxu0 0.0
    %4004 = vmatpush1.msra.mxu0 0.0
    %4005 = vmatprep.subr.mxu0 0.0
    %4006 = vmatpush1.msra.mxu0 0.0
    %4007 = vmatprep.subr.mxu0 0.0
    %4008 = vmatpush1.msra.mxu0 0.0
    %4009 = vmatprep.subr.mxu0 0.0
    %4010 = vmatpush1.msra.mxu0 0.0
    %4011 = vmatprep.subr.mxu0 0.0
    %4012 = vmatpush1.msra.mxu0 0.0
    %4013 = vmatprep.subr.mxu0 0.0
    %4014 = vmatpush1.msra.mxu0 0.0
    %4015 = vmatprep.subr.mxu0 0.0
    %4016 = vmatpush1.msra.mxu0 0.0
    %4017 = vmatprep.subr.mxu0 0.0
    %4018 = vmatpush1.msra.mxu0 0.0
    %4019 = vmatprep.subr.mxu0 0.0
    %4020 = vmatpush1.msra.mxu0 0.0
    %4021 = vmatprep.subr.mxu0 0.0
    %4022 = vmatpush1.msra.mxu0 0.0
    %4023 = vmatprep.subr.mxu0 0.0
    %4024 = vmatpush1.msra.mxu0 0.0
    %4025 = vmatprep.subr.mxu0 0.0
    %4026 = vmatpush1.msra.mxu0 0.0
    %4027 = vmatprep.subr.mxu0 0.0
    %4028 = vmatpush1.msra.mxu0 0.0
    %4029 = vmatprep.subr.mxu0 0.0
    %4030 = vmatpush1.msra.mxu0 0.0
    %4031 = vmatprep.subr.mxu0 0.0
    %4032 = vmatpush1.msra.mxu0 0.0
    %4033 = vmatprep.subr.mxu0 0.0
    %4034 = vmatpush1.msra.mxu0 0.0
    %4035 = vmatprep.subr.mxu0 0.0
    %4036 = vmatpush1.msra.mxu0 0.0
    %4037 = vmatprep.subr.mxu0 0.0
    %4038 = vmatpush1.msra.mxu0 0.0
    %4039 = vmatprep.subr.mxu0 0.0
    %4040 = vmatpush1.msra.mxu0 0.0
    %4041 = vmatprep.subr.mxu0 0.0
    %4042 = vmatpush1.msra.mxu0 0.0
    %4043 = vmatprep.subr.mxu0 0.0
    %4044 = vmatpush1.msra.mxu0 0.0
    %4045 = vmatprep.subr.mxu0 0.0
    %4046 = vmatpush1.msra.mxu0 0.0
    %4047 = vmatprep.subr.mxu0 0.0
    %4048 = vmatpush1.msra.mxu0 0.0
    %4049 = vmatprep.subr.mxu0 0.0
    %4050 = vmatpush1.msra.mxu0 0.0
    %4051 = vmatprep.subr.mxu0 0.0
    %4052 = vmatpush1.msra.mxu0 0.0
    %4053 = vmatprep.subr.mxu0 0.0
    %4054 = vmatpush1.msra.mxu0 0.0
    %4055 = vmatprep.subr.mxu0 0.0
    %4056 = vmatpush1.msra.mxu0 0.0
    %4057 = vmatprep.subr.mxu0 0.0
    %4058 = vmatpush1.msra.mxu0 0.0
    %4059 = vmatprep.subr.mxu0 0.0
    %4060 = vmatpush1.msra.mxu0 0.0
    %4061 = vmatprep.subr.mxu0 0.0
    %4062 = vmatpush1.msra.mxu0 0.0
    %4063 = vmatprep.subr.mxu0 0.0
    %4064 = vmatpush1.msra.mxu0 0.0
    %4065 = vmatprep.mubr.f32.mxu0 0.0
    %v4066 = vand.u32 %v3658, 4294901760
    %4067 = vmatmul.mubr.f32.gmra.mrb[0].mxu0 %v4066
    %v4068 = vpop.f32.mrb[0].mxu0
    %v4069 = vadd.f32 %v3987, %v4068
    %v4070 = vpop.f32.mrb[0].mxu0
    %4071 = vmatprep.mubr.f32.mxu0 0.0
    %v4072 = vand.u32 %v3661, 4294901760
    %4073 = vmatmul.mubr.f32.gmra.mrb[0].mxu0 %v4072
    %v4074 = vpop.f32.mrb[0].mxu0
    %v4075 = vadd.f32 %v3995, %v4074
    %v4076 = vpop.f32.mrb[0].mxu0
    %4077 = vdwg.mxu0
    %4078 = vmatprep.subr.mxu0 0.0
    %v4079 = vand.u32 %v3665, 4294901760
    %4080 = vmatpush1.msra.mxu0 %v4079
    %4081 = vmatprep.subr.mxu0 0.0
    %4082 = vmatpush1.msra.mxu0 0.0
    %4083 = vmatprep.subr.mxu0 0.0
    %4084 = vmatpush1.msra.mxu0 0.0
    %4085 = vmatprep.subr.mxu0 0.0
    %4086 = vmatpush1.msra.mxu0 0.0
    %4087 = vmatprep.subr.mxu0 0.0
    %4088 = vmatpush1.msra.mxu0 0.0
    %4089 = vmatprep.subr.mxu0 0.0
    %4090 = vmatpush1.msra.mxu0 0.0
    %4091 = vmatprep.subr.mxu0 0.0
    %4092 = vmatpush1.msra.mxu0 0.0
    %4093 = vmatprep.subr.mxu0 0.0
    %4094 = vmatpush1.msra.mxu0 0.0
    %4095 = vmatprep.subr.mxu0 0.0
    %4096 = vmatpush1.msra.mxu0 0.0
    %4097 = vmatprep.subr.mxu0 0.0
    %4098 = vmatpush1.msra.mxu0 0.0
    %4099 = vmatprep.subr.mxu0 0.0
    %4100 = vmatpush1.msra.mxu0 0.0
    %4101 = vmatprep.subr.mxu0 0.0
    %4102 = vmatpush1.msra.mxu0 0.0
    %4103 = vmatprep.subr.mxu0 0.0
    %4104 = vmatpush1.msra.mxu0 0.0
    %4105 = vmatprep.subr.mxu0 0.0
    %4106 = vmatpush1.msra.mxu0 0.0
    %4107 = vmatprep.subr.mxu0 0.0
    %4108 = vmatpush1.msra.mxu0 0.0
    %4109 = vmatprep.subr.mxu0 0.0
    %4110 = vmatpush1.msra.mxu0 0.0
    %4111 = vmatprep.subr.mxu0 0.0
    %4112 = vmatpush1.msra.mxu0 0.0
    %4113 = vmatprep.subr.mxu0 0.0
    %4114 = vmatpush1.msra.mxu0 0.0
    %4115 = vmatprep.subr.mxu0 0.0
    %4116 = vmatpush1.msra.mxu0 0.0
    %4117 = vmatprep.subr.mxu0 0.0
    %4118 = vmatpush1.msra.mxu0 0.0
    %4119 = vmatprep.subr.mxu0 0.0
    %4120 = vmatpush1.msra.mxu0 0.0
    %4121 = vmatprep.subr.mxu0 0.0
    %4122 = vmatpush1.msra.mxu0 0.0
    %4123 = vmatprep.subr.mxu0 0.0
    %4124 = vmatpush1.msra.mxu0 0.0
    %4125 = vmatprep.subr.mxu0 0.0
    %4126 = vmatpush1.msra.mxu0 0.0
    %4127 = vmatprep.subr.mxu0 0.0
    %4128 = vmatpush1.msra.mxu0 0.0
    %4129 = vmatprep.subr.mxu0 0.0
    %4130 = vmatpush1.msra.mxu0 0.0
    %4131 = vmatprep.subr.mxu0 0.0
    %4132 = vmatpush1.msra.mxu0 0.0
    %4133 = vmatprep.subr.mxu0 0.0
    %4134 = vmatpush1.msra.mxu0 0.0
    %4135 = vmatprep.subr.mxu0 0.0
    %4136 = vmatpush1.msra.mxu0 0.0
    %4137 = vmatprep.subr.mxu0 0.0
    %4138 = vmatpush1.msra.mxu0 0.0
    %4139 = vmatprep.subr.mxu0 0.0
    %4140 = vmatpush1.msra.mxu0 0.0
    %4141 = vmatprep.subr.mxu0 0.0
    %4142 = vmatpush1.msra.mxu0 0.0
    %4143 = vmatprep.mubr.f32.mxu0 0.0
    %v4144 = vand.u32 %v3658, 4294901760
    %4145 = vmatmul.mubr.f32.gmra.mrb[0].mxu0 %v4144
    %v4146 = vpop.f32.mrb[0].mxu0
    %v4147 = vadd.f32 %v4069, %v4146
    %v4148 = vpop.f32.mrb[0].mxu0
    %4149 = vmatprep.mubr.f32.mxu0 0.0
    %v4150 = vand.u32 %v3661, 4294901760
    %4151 = vmatmul.mubr.f32.gmra.mrb[0].mxu0 %v4150
    %v4152 = vpop.f32.mrb[0].mxu0
    %v4153 = vadd.f32 %v4075, %v4152
    %v4154 = vpop.f32.mrb[0].mxu0
    %4155 = vdwg.mxu0
    %v4156 = vmul.f32 %v1119, %v4147
    %v4157 = vmul.f32 %v1125, %v4153
    %4158 = vmatprep.subr.mxu0 0.0
    %v4159 = vand.u32 %v4156, 4294901760
    %4160 = vmatpush1.msra.mxu0 %v4159
    %4161 = vmatprep.subr.mxu0 0.0
    %v4162 = vand.u32 %v4157, 4294901760
    %4163 = vmatpush1.msra.mxu0 %v4162
    %4164 = vmatprep.subr.mxu0 0.0
    %4165 = vmatpush1.msra.mxu0 0.0
    %4166 = vmatprep.subr.mxu0 0.0
    %4167 = vmatpush1.msra.mxu0 0.0
    %4168 = vmatprep.subr.mxu0 0.0
    %4169 = vmatpush1.msra.mxu0 0.0
    %4170 = vmatprep.subr.mxu0 0.0
    %4171 = vmatpush1.msra.mxu0 0.0
    %4172 = vmatprep.subr.mxu0 0.0
    %4173 = vmatpush1.msra.mxu0 0.0
    %4174 = vmatprep.subr.mxu0 0.0
    %4175 = vmatpush1.msra.mxu0 0.0
    %4176 = vmatprep.subr.mxu0 0.0
    %4177 = vmatpush1.msra.mxu0 0.0
    %4178 = vmatprep.subr.mxu0 0.0
    %4179 = vmatpush1.msra.mxu0 0.0
    %4180 = vmatprep.subr.mxu0 0.0
    %4181 = vmatpush1.msra.mxu0 0.0
    %4182 = vmatprep.subr.mxu0 0.0
    %4183 = vmatpush1.msra.mxu0 0.0
    %4184 = vmatprep.subr.mxu0 0.0
    %4185 = vmatpush1.msra.mxu0 0.0
    %4186 = vmatprep.subr.mxu0 0.0
    %4187 = vmatpush1.msra.mxu0 0.0
    %4188 = vmatprep.subr.mxu0 0.0
    %4189 = vmatpush1.msra.mxu0 0.0
    %4190 = vmatprep.subr.mxu0 0.0
    %4191 = vmatpush1.msra.mxu0 0.0
    %4192 = vmatprep.subr.mxu0 0.0
    %4193 = vmatpush1.msra.mxu0 0.0
    %4194 = vmatprep.subr.mxu0 0.0
    %4195 = vmatpush1.msra.mxu0 0.0
    %4196 = vmatprep.subr.mxu0 0.0
    %4197 = vmatpush1.msra.mxu0 0.0
    %4198 = vmatprep.subr.mxu0 0.0
    %4199 = vmatpush1.msra.mxu0 0.0
    %4200 = vmatprep.subr.mxu0 0.0
    %4201 = vmatpush1.msra.mxu0 0.0
    %4202 = vmatprep.subr.mxu0 0.0
    %4203 = vmatpush1.msra.mxu0 0.0
    %4204 = vmatprep.subr.mxu0 0.0
    %4205 = vmatpush1.msra.mxu0 0.0
    %4206 = vmatprep.subr.mxu0 0.0
    %4207 = vmatpush1.msra.mxu0 0.0
    %4208 = vmatprep.subr.mxu0 0.0
    %4209 = vmatpush1.msra.mxu0 0.0
    %4210 = vmatprep.subr.mxu0 0.0
    %4211 = vmatpush1.msra.mxu0 0.0
    %4212 = vmatprep.subr.mxu0 0.0
    %4213 = vmatpush1.msra.mxu0 0.0
    %4214 = vmatprep.subr.mxu0 0.0
    %4215 = vmatpush1.msra.mxu0 0.0
    %4216 = vmatprep.subr.mxu0 0.0
    %4217 = vmatpush1.msra.mxu0 0.0
    %4218 = vmatprep.subr.mxu0 0.0
    %4219 = vmatpush1.msra.mxu0 0.0
    %4220 = vmatprep.subr.mxu0 0.0
    %4221 = vmatpush1.msra.mxu0 0.0
    %4222 = vmatprep.subr.mxu0 0.0
    %4223 = vmatpush1.msra.mxu0 0.0
    %4224 = vmatprep.mubr.f32.mxu0 0.0
    %v4225 = vand.u32 %v2702, 4294901760
    %v4226 = vsub.f32 %v2702, %v4225
    %v4227 = vand.u32 %v4226, 4294901760
    %v4228 = vsub.f32 %v4226, %v4227
    %v4229 = vand.u32 %v4228, 4294901760
    %4230 = vmatmul.mubr.f32.gmra.mrb[0].mxu0 %v4229
    %v4231 = vpop.f32.mrb[0].mxu0
    %v4232 = vadd.f32 0.0, %v4231
    %v4233 = vpop.f32.mrb[0].mxu0
    %4234 = vdwg.mxu0
    %4235 = vmatprep.subr.mxu0 0.0
    %v4236 = vand.u32 %v4156, 4294901760
    %v4237 = vsub.f32 %v4156, %v4236
    %v4238 = vand.u32 %v4237, 4294901760
    %v4239 = vsub.f32 %v4237, %v4238
    %v4240 = vand.u32 %v4239, 4294901760
    %4241 = vmatpush1.msra.mxu0 %v4240
    %4242 = vmatprep.subr.mxu0 0.0
    %v4243 = vand.u32 %v4157, 4294901760
    %v4244 = vsub.f32 %v4157, %v4243
    %v4245 = vand.u32 %v4244, 4294901760
    %v4246 = vsub.f32 %v4244, %v4245
    %v4247 = vand.u32 %v4246, 4294901760
    %4248 = vmatpush1.msra.mxu0 %v4247
    %4249 = vmatprep.subr.mxu0 0.0
    %4250 = vmatpush1.msra.mxu0 0.0
    %4251 = vmatprep.subr.mxu0 0.0
    %4252 = vmatpush1.msra.mxu0 0.0
    %4253 = vmatprep.subr.mxu0 0.0
    %4254 = vmatpush1.msra.mxu0 0.0
    %4255 = vmatprep.subr.mxu0 0.0
    %4256 = vmatpush1.msra.mxu0 0.0
    %4257 = vmatprep.subr.mxu0 0.0
    %4258 = vmatpush1.msra.mxu0 0.0
    %4259 = vmatprep.subr.mxu0 0.0
    %4260 = vmatpush1.msra.mxu0 0.0
    %4261 = vmatprep.subr.mxu0 0.0
    %4262 = vmatpush1.msra.mxu0 0.0
    %4263 = vmatprep.subr.mxu0 0.0
    %4264 = vmatpush1.msra.mxu0 0.0
    %4265 = vmatprep.subr.mxu0 0.0
    %4266 = vmatpush1.msra.mxu0 0.0
    %4267 = vmatprep.subr.mxu0 0.0
    %4268 = vmatpush1.msra.mxu0 0.0
    %4269 = vmatprep.subr.mxu0 0.0
    %4270 = vmatpush1.msra.mxu0 0.0
    %4271 = vmatprep.subr.mxu0 0.0
    %4272 = vmatpush1.msra.mxu0 0.0
    %4273 = vmatprep.subr.mxu0 0.0
    %4274 = vmatpush1.msra.mxu0 0.0
    %4275 = vmatprep.subr.mxu0 0.0
    %4276 = vmatpush1.msra.mxu0 0.0
    %4277 = vmatprep.subr.mxu0 0.0
    %4278 = vmatpush1.msra.mxu0 0.0
    %4279 = vmatprep.subr.mxu0 0.0
    %4280 = vmatpush1.msra.mxu0 0.0
    %4281 = vmatprep.subr.mxu0 0.0
    %4282 = vmatpush1.msra.mxu0 0.0
    %4283 = vmatprep.subr.mxu0 0.0
    %4284 = vmatpush1.msra.mxu0 0.0
    %4285 = vmatprep.subr.mxu0 0.0
    %4286 = vmatpush1.msra.mxu0 0.0
    %4287 = vmatprep.subr.mxu0 0.0
    %4288 = vmatpush1.msra.mxu0 0.0
    %4289 = vmatprep.subr.mxu0 0.0
    %4290 = vmatpush1.msra.mxu0 0.0
    %4291 = vmatprep.subr.mxu0 0.0
    %4292 = vmatpush1.msra.mxu0 0.0
    %4293 = vmatprep.subr.mxu0 0.0
    %4294 = vmatpush1.msra.mxu0 0.0
    %4295 = vmatprep.subr.mxu0 0.0
    %4296 = vmatpush1.msra.mxu0 0.0
    %4297 = vmatprep.subr.mxu0 0.0
    %4298 = vmatpush1.msra.mxu0 0.0
    %4299 = vmatprep.subr.mxu0 0.0
    %4300 = vmatpush1.msra.mxu0 0.0
    %4301 = vmatprep.subr.mxu0 0.0
    %4302 = vmatpush1.msra.mxu0 0.0
    %4303 = vmatprep.subr.mxu0 0.0
    %4304 = vmatpush1.msra.mxu0 0.0
    %4305 = vmatprep.subr.mxu0 0.0
    %4306 = vmatpush1.msra.mxu0 0.0
    %4307 = vmatprep.subr.mxu0 0.0
    %4308 = vmatpush1.msra.mxu0 0.0
    %4309 = vmatprep.mubr.f32.mxu0 0.0
    %v4310 = vand.u32 %v2702, 4294901760
    %4311 = vmatmul.mubr.f32.gmra.mrb[0].mxu0 %v4310
    %v4312 = vpop.f32.mrb[0].mxu0
    %v4313 = vadd.f32 %v4232, %v4312
    %v4314 = vpop.f32.mrb[0].mxu0
    %4315 = vdwg.mxu0
    %4316 = vmatprep.subr.mxu0 0.0
    %v4317 = vand.u32 %v4156, 4294901760
    %v4318 = vsub.f32 %v4156, %v4317
    %4319 = vmatpush1.msra.mxu0 %v4318
    %4320 = vmatprep.subr.mxu0 0.0
    %v4321 = vand.u32 %v4157, 4294901760
    %v4322 = vsub.f32 %v4157, %v4321
    %4323 = vmatpush1.msra.mxu0 %v4322
    %4324 = vmatprep.subr.mxu0 0.0
    %4325 = vmatpush1.msra.mxu0 0.0
    %4326 = vmatprep.subr.mxu0 0.0
    %4327 = vmatpush1.msra.mxu0 0.0
    %4328 = vmatprep.subr.mxu0 0.0
    %4329 = vmatpush1.msra.mxu0 0.0
    %4330 = vmatprep.subr.mxu0 0.0
    %4331 = vmatpush1.msra.mxu0 0.0
    %4332 = vmatprep.subr.mxu0 0.0
    %4333 = vmatpush1.msra.mxu0 0.0
    %4334 = vmatprep.subr.mxu0 0.0
    %4335 = vmatpush1.msra.mxu0 0.0
    %4336 = vmatprep.subr.mxu0 0.0
    %4337 = vmatpush1.msra.mxu0 0.0
    %4338 = vmatprep.subr.mxu0 0.0
    %4339 = vmatpush1.msra.mxu0 0.0
    %4340 = vmatprep.subr.mxu0 0.0
    %4341 = vmatpush1.msra.mxu0 0.0
    %4342 = vmatprep.subr.mxu0 0.0
    %4343 = vmatpush1.msra.mxu0 0.0
    %4344 = vmatprep.subr.mxu0 0.0
    %4345 = vmatpush1.msra.mxu0 0.0
    %4346 = vmatprep.subr.mxu0 0.0
    %4347 = vmatpush1.msra.mxu0 0.0
    %4348 = vmatprep.subr.mxu0 0.0
    %4349 = vmatpush1.msra.mxu0 0.0
    %4350 = vmatprep.subr.mxu0 0.0
    %4351 = vmatpush1.msra.mxu0 0.0
    %4352 = vmatprep.subr.mxu0 0.0
    %4353 = vmatpush1.msra.mxu0 0.0
    %4354 = vmatprep.subr.mxu0 0.0
    %4355 = vmatpush1.msra.mxu0 0.0
    %4356 = vmatprep.subr.mxu0 0.0
    %4357 = vmatpush1.msra.mxu0 0.0
    %4358 = vmatprep.subr.mxu0 0.0
    %4359 = vmatpush1.msra.mxu0 0.0
    %4360 = vmatprep.subr.mxu0 0.0
    %4361 = vmatpush1.msra.mxu0 0.0
    %4362 = vmatprep.subr.mxu0 0.0
    %4363 = vmatpush1.msra.mxu0 0.0
    %4364 = vmatprep.subr.mxu0 0.0
    %4365 = vmatpush1.msra.mxu0 0.0
    %4366 = vmatprep.subr.mxu0 0.0
    %4367 = vmatpush1.msra.mxu0 0.0
    %4368 = vmatprep.subr.mxu0 0.0
    %4369 = vmatpush1.msra.mxu0 0.0
    %4370 = vmatprep.subr.mxu0 0.0
    %4371 = vmatpush1.msra.mxu0 0.0
    %4372 = vmatprep.subr.mxu0 0.0
    %4373 = vmatpush1.msra.mxu0 0.0
    %4374 = vmatprep.subr.mxu0 0.0
    %4375 = vmatpush1.msra.mxu0 0.0
    %4376 = vmatprep.subr.mxu0 0.0
    %4377 = vmatpush1.msra.mxu0 0.0
    %4378 = vmatprep.subr.mxu0 0.0
    %4379 = vmatpush1.msra.mxu0 0.0
    %4380 = vmatprep.subr.mxu0 0.0
    %4381 = vmatpush1.msra.mxu0 0.0
    %4382 = vmatprep.subr.mxu0 0.0
    %4383 = vmatpush1.msra.mxu0 0.0
    %4384 = vmatprep.mubr.f32.mxu0 0.0
    %v4385 = vand.u32 %v2702, 4294901760
    %v4386 = vsub.f32 %v2702, %v4385
    %4387 = vmatmul.mubr.f32.gmra.mrb[0].mxu0 %v4386
    %v4388 = vpop.f32.mrb[0].mxu0
    %v4389 = vadd.f32 %v4313, %v4388
    %v4390 = vpop.f32.mrb[0].mxu0
    %4391 = vdwg.mxu0
    %4392 = vmatprep.subr.mxu0 0.0
    %v4393 = vand.u32 %v4156, 4294901760
    %4394 = vmatpush1.msra.mxu0 %v4393
    %4395 = vmatprep.subr.mxu0 0.0
    %v4396 = vand.u32 %v4157, 4294901760
    %4397 = vmatpush1.msra.mxu0 %v4396
    %4398 = vmatprep.subr.mxu0 0.0
    %4399 = vmatpush1.msra.mxu0 0.0
    %4400 = vmatprep.subr.mxu0 0.0
    %4401 = vmatpush1.msra.mxu0 0.0
    %4402 = vmatprep.subr.mxu0 0.0
    %4403 = vmatpush1.msra.mxu0 0.0
    %4404 = vmatprep.subr.mxu0 0.0
    %4405 = vmatpush1.msra.mxu0 0.0
    %4406 = vmatprep.subr.mxu0 0.0
    %4407 = vmatpush1.msra.mxu0 0.0
    %4408 = vmatprep.subr.mxu0 0.0
    %4409 = vmatpush1.msra.mxu0 0.0
    %4410 = vmatprep.subr.mxu0 0.0
    %4411 = vmatpush1.msra.mxu0 0.0
    %4412 = vmatprep.subr.mxu0 0.0
    %4413 = vmatpush1.msra.mxu0 0.0
    %4414 = vmatprep.subr.mxu0 0.0
    %4415 = vmatpush1.msra.mxu0 0.0
    %4416 = vmatprep.subr.mxu0 0.0
    %4417 = vmatpush1.msra.mxu0 0.0
    %4418 = vmatprep.subr.mxu0 0.0
    %4419 = vmatpush1.msra.mxu0 0.0
    %4420 = vmatprep.subr.mxu0 0.0
    %4421 = vmatpush1.msra.mxu0 0.0
    %4422 = vmatprep.subr.mxu0 0.0
    %4423 = vmatpush1.msra.mxu0 0.0
    %4424 = vmatprep.subr.mxu0 0.0
    %4425 = vmatpush1.msra.mxu0 0.0
    %4426 = vmatprep.subr.mxu0 0.0
    %4427 = vmatpush1.msra.mxu0 0.0
    %4428 = vmatprep.subr.mxu0 0.0
    %4429 = vmatpush1.msra.mxu0 0.0
    %4430 = vmatprep.subr.mxu0 0.0
    %4431 = vmatpush1.msra.mxu0 0.0
    %4432 = vmatprep.subr.mxu0 0.0
    %4433 = vmatpush1.msra.mxu0 0.0
    %4434 = vmatprep.subr.mxu0 0.0
    %4435 = vmatpush1.msra.mxu0 0.0
    %4436 = vmatprep.subr.mxu0 0.0
    %4437 = vmatpush1.msra.mxu0 0.0
    %4438 = vmatprep.subr.mxu0 0.0
    %4439 = vmatpush1.msra.mxu0 0.0
    %4440 = vmatprep.subr.mxu0 0.0
    %4441 = vmatpush1.msra.mxu0 0.0
    %4442 = vmatprep.subr.mxu0 0.0
    %4443 = vmatpush1.msra.mxu0 0.0
    %4444 = vmatprep.subr.mxu0 0.0
    %4445 = vmatpush1.msra.mxu0 0.0
    %4446 = vmatprep.subr.mxu0 0.0
    %4447 = vmatpush1.msra.mxu0 0.0
    %4448 = vmatprep.subr.mxu0 0.0
    %4449 = vmatpush1.msra.mxu0 0.0
    %4450 = vmatprep.subr.mxu0 0.0
    %4451 = vmatpush1.msra.mxu0 0.0
    %4452 = vmatprep.subr.mxu0 0.0
    %4453 = vmatpush1.msra.mxu0 0.0
    %4454 = vmatprep.subr.mxu0 0.0
    %4455 = vmatpush1.msra.mxu0 0.0
    %4456 = vmatprep.subr.mxu0 0.0
    %4457 = vmatpush1.msra.mxu0 0.0
    %4458 = vmatprep.mubr.f32.mxu0 0.0
    %v4459 = vand.u32 %v2702, 4294901760
    %v4460 = vsub.f32 %v2702, %v4459
    %v4461 = vand.u32 %v4460, 4294901760
    %4462 = vmatmul.mubr.f32.gmra.mrb[0].mxu0 %v4461
    %v4463 = vpop.f32.mrb[0].mxu0
    %v4464 = vadd.f32 %v4389, %v4463
    %v4465 = vpop.f32.mrb[0].mxu0
    %4466 = vdwg.mxu0
    %4467 = vmatprep.subr.mxu0 0.0
    %v4468 = vand.u32 %v4156, 4294901760
    %v4469 = vsub.f32 %v4156, %v4468
    %v4470 = vand.u32 %v4469, 4294901760
    %4471 = vmatpush1.msra.mxu0 %v4470
    %4472 = vmatprep.subr.mxu0 0.0
    %v4473 = vand.u32 %v4157, 4294901760
    %v4474 = vsub.f32 %v4157, %v4473
    %v4475 = vand.u32 %v4474, 4294901760
    %4476 = vmatpush1.msra.mxu0 %v4475
    %4477 = vmatprep.subr.mxu0 0.0
    %4478 = vmatpush1.msra.mxu0 0.0
    %4479 = vmatprep.subr.mxu0 0.0
    %4480 = vmatpush1.msra.mxu0 0.0
    %4481 = vmatprep.subr.mxu0 0.0
    %4482 = vmatpush1.msra.mxu0 0.0
    %4483 = vmatprep.subr.mxu0 0.0
    %4484 = vmatpush1.msra.mxu0 0.0
    %4485 = vmatprep.subr.mxu0 0.0
    %4486 = vmatpush1.msra.mxu0 0.0
    %4487 = vmatprep.subr.mxu0 0.0
    %4488 = vmatpush1.msra.mxu0 0.0
    %4489 = vmatprep.subr.mxu0 0.0
    %4490 = vmatpush1.msra.mxu0 0.0
    %4491 = vmatprep.subr.mxu0 0.0
    %4492 = vmatpush1.msra.mxu0 0.0
    %4493 = vmatprep.subr.mxu0 0.0
    %4494 = vmatpush1.msra.mxu0 0.0
    %4495 = vmatprep.subr.mxu0 0.0
    %4496 = vmatpush1.msra.mxu0 0.0
    %4497 = vmatprep.subr.mxu0 0.0
    %4498 = vmatpush1.msra.mxu0 0.0
    %4499 = vmatprep.subr.mxu0 0.0
    %4500 = vmatpush1.msra.mxu0 0.0
    %4501 = vmatprep.subr.mxu0 0.0
    %4502 = vmatpush1.msra.mxu0 0.0
    %4503 = vmatprep.subr.mxu0 0.0
    %4504 = vmatpush1.msra.mxu0 0.0
    %4505 = vmatprep.subr.mxu0 0.0
    %4506 = vmatpush1.msra.mxu0 0.0
    %4507 = vmatprep.subr.mxu0 0.0
    %4508 = vmatpush1.msra.mxu0 0.0
    %4509 = vmatprep.subr.mxu0 0.0
    %4510 = vmatpush1.msra.mxu0 0.0
    %4511 = vmatprep.subr.mxu0 0.0
    %4512 = vmatpush1.msra.mxu0 0.0
    %4513 = vmatprep.subr.mxu0 0.0
    %4514 = vmatpush1.msra.mxu0 0.0
    %4515 = vmatprep.subr.mxu0 0.0
    %4516 = vmatpush1.msra.mxu0 0.0
    %4517 = vmatprep.subr.mxu0 0.0
    %4518 = vmatpush1.msra.mxu0 0.0
    %4519 = vmatprep.subr.mxu0 0.0
    %4520 = vmatpush1.msra.mxu0 0.0
    %4521 = vmatprep.subr.mxu0 0.0
    %4522 = vmatpush1.msra.mxu0 0.0
    %4523 = vmatprep.subr.mxu0 0.0
    %4524 = vmatpush1.msra.mxu0 0.0
    %4525 = vmatprep.subr.mxu0 0.0
    %4526 = vmatpush1.msra.mxu0 0.0
    %4527 = vmatprep.subr.mxu0 0.0
    %4528 = vmatpush1.msra.mxu0 0.0
    %4529 = vmatprep.subr.mxu0 0.0
    %4530 = vmatpush1.msra.mxu0 0.0
    %4531 = vmatprep.subr.mxu0 0.0
    %4532 = vmatpush1.msra.mxu0 0.0
    %4533 = vmatprep.subr.mxu0 0.0
    %4534 = vmatpush1.msra.mxu0 0.0
    %4535 = vmatprep.subr.mxu0 0.0
    %4536 = vmatpush1.msra.mxu0 0.0
    %4537 = vmatprep.mubr.f32.mxu0 0.0
    %v4538 = vand.u32 %v2702, 4294901760
    %4539 = vmatmul.mubr.f32.gmra.mrb[0].mxu0 %v4538
    %v4540 = vpop.f32.mrb[0].mxu0
    %v4541 = vadd.f32 %v4464, %v4540
    %v4542 = vpop.f32.mrb[0].mxu0
    %4543 = vdwg.mxu0
    %4544 = vmatprep.subr.mxu0 0.0
    %v4545 = vand.u32 %v4156, 4294901760
    %4546 = vmatpush1.msra.mxu0 %v4545
    %4547 = vmatprep.subr.mxu0 0.0
    %v4548 = vand.u32 %v4157, 4294901760
    %4549 = vmatpush1.msra.mxu0 %v4548
    %4550 = vmatprep.subr.mxu0 0.0
    %4551 = vmatpush1.msra.mxu0 0.0
    %4552 = vmatprep.subr.mxu0 0.0
    %4553 = vmatpush1.msra.mxu0 0.0
    %4554 = vmatprep.subr.mxu0 0.0
    %4555 = vmatpush1.msra.mxu0 0.0
    %4556 = vmatprep.subr.mxu0 0.0
    %4557 = vmatpush1.msra.mxu0 0.0
    %4558 = vmatprep.subr.mxu0 0.0
    %4559 = vmatpush1.msra.mxu0 0.0
    %4560 = vmatprep.subr.mxu0 0.0
    %4561 = vmatpush1.msra.mxu0 0.0
    %4562 = vmatprep.subr.mxu0 0.0
    %4563 = vmatpush1.msra.mxu0 0.0
    %4564 = vmatprep.subr.mxu0 0.0
    %4565 = vmatpush1.msra.mxu0 0.0
    %4566 = vmatprep.subr.mxu0 0.0
    %4567 = vmatpush1.msra.mxu0 0.0
    %4568 = vmatprep.subr.mxu0 0.0
    %4569 = vmatpush1.msra.mxu0 0.0
    %4570 = vmatprep.subr.mxu0 0.0
    %4571 = vmatpush1.msra.mxu0 0.0
    %4572 = vmatprep.subr.mxu0 0.0
    %4573 = vmatpush1.msra.mxu0 0.0
    %4574 = vmatprep.subr.mxu0 0.0
    %4575 = vmatpush1.msra.mxu0 0.0
    %4576 = vmatprep.subr.mxu0 0.0
    %4577 = vmatpush1.msra.mxu0 0.0
    %4578 = vmatprep.subr.mxu0 0.0
    %4579 = vmatpush1.msra.mxu0 0.0
    %4580 = vmatprep.subr.mxu0 0.0
    %4581 = vmatpush1.msra.mxu0 0.0
    %4582 = vmatprep.subr.mxu0 0.0
    %4583 = vmatpush1.msra.mxu0 0.0
    %4584 = vmatprep.subr.mxu0 0.0
    %4585 = vmatpush1.msra.mxu0 0.0
    %4586 = vmatprep.subr.mxu0 0.0
    %4587 = vmatpush1.msra.mxu0 0.0
    %4588 = vmatprep.subr.mxu0 0.0
    %4589 = vmatpush1.msra.mxu0 0.0
    %4590 = vmatprep.subr.mxu0 0.0
    %4591 = vmatpush1.msra.mxu0 0.0
    %4592 = vmatprep.subr.mxu0 0.0
    %4593 = vmatpush1.msra.mxu0 0.0
    %4594 = vmatprep.subr.mxu0 0.0
    %4595 = vmatpush1.msra.mxu0 0.0
    %4596 = vmatprep.subr.mxu0 0.0
    %4597 = vmatpush1.msra.mxu0 0.0
    %4598 = vmatprep.subr.mxu0 0.0
    %4599 = vmatpush1.msra.mxu0 0.0
    %4600 = vmatprep.subr.mxu0 0.0
    %4601 = vmatpush1.msra.mxu0 0.0
    %4602 = vmatprep.subr.mxu0 0.0
    %4603 = vmatpush1.msra.mxu0 0.0
    %4604 = vmatprep.subr.mxu0 0.0
    %4605 = vmatpush1.msra.mxu0 0.0
    %4606 = vmatprep.subr.mxu0 0.0
    %4607 = vmatpush1.msra.mxu0 0.0
    %4608 = vmatprep.subr.mxu0 0.0
    %4609 = vmatpush1.msra.mxu0 0.0
    %4610 = vmatprep.mubr.f32.mxu0 0.0
    %v4611 = vand.u32 %v2702, 4294901760
    %4612 = vmatmul.mubr.f32.gmra.mrb[0].mxu0 %v4611
    %v4613 = vpop.f32.mrb[0].mxu0
    %v4614 = vadd.f32 %v4541, %v4613
    %v4615 = vpop.f32.mrb[0].mxu0
    %4616 = vdwg.mxu0
    %v4617 = vld [vmem:[%s11] sm:$0x1]
    %v4619 = vlaneseq
    %v4620 = vshrl.u32 %v4619, 7
    %v4621 = vsub.s32 0, %v4620
    %v4622 = vrot.slane %v4617, %v4621
    %v4624 = vmul.f32 %v4614, %v4622
    %v4625 = vld [vmem:[%s12] sm:$0x1]
    %v4627 = vlaneseq
    %v4628 = vshrl.u32 %v4627, 7
    %v4629 = vsub.s32 0, %v4628
    %v4630 = vrot.slane %v4625, %v4629
    %v4632 = vmul.f32 %v54, %v4630
    %v4633 = vadd.f32 %v4624, %v4632
    %v4634 = vsel %vm101, %v4633, 0.0
    %4635 = vadd.xlane.f32.xlu0 %v4634
    %v4636 = vpop.xlane.xlu0 %4635
    %v4637 = vsub.f32 0.0, %v4636
    %v4638 = vmul.f32 %v4637, 1.442695
    %v4639 = vpow.pop %v4638
    %v4640 = vadd.f32 %v4639, 1.0
    %v4641 = vrcp.pop %v4640
    %v4642 = vmul.f32 1.0, %v4641
    %v4643 = vsub.f32 %v54, %v4614
    %v4644 = vmul.f32 %v4642, %v4643
    %v4645 = vadd.f32 %v4614, %v4644
    %v4646 = vsel %vm101, %v4645, 0.0
    %4647 = vadd.xlane.f32.xlu0 %v4646
    %v4648 = vpop.xlane.xlu0 %4647
    %v4649 = vrcp.pop 32.0
    %v4650 = vmul.f32 %v4648, %v4649
    %v4651 = vsub.f32 %v4645, %v4650
    %v4652 = vmul.f32 %v4651, %v4651
    %v4653 = vsel %vm101, %v4652, 0.0
    %4654 = vadd.xlane.f32.xlu0 %v4653
    %v4655 = vpop.xlane.xlu0 %4654
    %v4656 = vmul.f32 %v4655, %v4649
    %v4657 = vadd.f32 %v4656, 1e-05
    %v4658 = vrsqrt.pop %v4657
    %v4659 = vmul.f32 %v4651, %v4658
    %v4660 = vld [vmem:[%s13] sm:$0xff]
    %v4661 = vld [vmem:[%s13 + $0x8] sm:$0xff]
    %v4662 = vld [vmem:[%s13 + $0x10] sm:$0xff]
    %v4663 = vld [vmem:[%s13 + $0x18] sm:$0xff]
    %v4664 = vld [vmem:[%s14] sm:$0x1]
    %v4666 = vlaneseq
    %v4667 = vshrl.u32 %v4666, 7
    %v4668 = vsub.s32 0, %v4667
    %v4669 = vrot.slane %v4664, %v4668
    %v4672 = vsel %vm101, %v4659, 0
    %4674 = vmatprep.subr.mxu0 0.0
    %v4675 = vand.u32 %v4660, 4294901760
    %4676 = vmatpush1.msra.mxu0 %v4675
    %4677 = vmatprep.subr.mxu0 0.0
    %v4678 = vand.u32 %v4661, 4294901760
    %4679 = vmatpush1.msra.mxu0 %v4678
    %4680 = vmatprep.subr.mxu0 0.0
    %v4681 = vand.u32 %v4662, 4294901760
    %4682 = vmatpush1.msra.mxu0 %v4681
    %4683 = vmatprep.subr.mxu0 0.0
    %v4684 = vand.u32 %v4663, 4294901760
    %4685 = vmatpush1.msra.mxu0 %v4684
    %4686 = vmatprep.subr.mxu0 0.0
    %4687 = vmatpush1.msra.mxu0 0.0
    %4688 = vmatprep.subr.mxu0 0.0
    %4689 = vmatpush1.msra.mxu0 0.0
    %4690 = vmatprep.subr.mxu0 0.0
    %4691 = vmatpush1.msra.mxu0 0.0
    %4692 = vmatprep.subr.mxu0 0.0
    %4693 = vmatpush1.msra.mxu0 0.0
    %4694 = vmatprep.subr.mxu0 0.0
    %4695 = vmatpush1.msra.mxu0 0.0
    %4696 = vmatprep.subr.mxu0 0.0
    %4697 = vmatpush1.msra.mxu0 0.0
    %4698 = vmatprep.subr.mxu0 0.0
    %4699 = vmatpush1.msra.mxu0 0.0
    %4700 = vmatprep.subr.mxu0 0.0
    %4701 = vmatpush1.msra.mxu0 0.0
    %4702 = vmatprep.subr.mxu0 0.0
    %4703 = vmatpush1.msra.mxu0 0.0
    %4704 = vmatprep.subr.mxu0 0.0
    %4705 = vmatpush1.msra.mxu0 0.0
    %4706 = vmatprep.subr.mxu0 0.0
    %4707 = vmatpush1.msra.mxu0 0.0
    %4708 = vmatprep.subr.mxu0 0.0
    %4709 = vmatpush1.msra.mxu0 0.0
    %4710 = vmatprep.subr.mxu0 0.0
    %4711 = vmatpush1.msra.mxu0 0.0
    %4712 = vmatprep.subr.mxu0 0.0
    %4713 = vmatpush1.msra.mxu0 0.0
    %4714 = vmatprep.subr.mxu0 0.0
    %4715 = vmatpush1.msra.mxu0 0.0
    %4716 = vmatprep.subr.mxu0 0.0
    %4717 = vmatpush1.msra.mxu0 0.0
    %4718 = vmatprep.subr.mxu0 0.0
    %4719 = vmatpush1.msra.mxu0 0.0
    %4720 = vmatprep.subr.mxu0 0.0
    %4721 = vmatpush1.msra.mxu0 0.0
    %4722 = vmatprep.subr.mxu0 0.0
    %4723 = vmatpush1.msra.mxu0 0.0
    %4724 = vmatprep.subr.mxu0 0.0
    %4725 = vmatpush1.msra.mxu0 0.0
    %4726 = vmatprep.subr.mxu0 0.0
    %4727 = vmatpush1.msra.mxu0 0.0
    %4728 = vmatprep.subr.mxu0 0.0
    %4729 = vmatpush1.msra.mxu0 0.0
    %4730 = vmatprep.subr.mxu0 0.0
    %4731 = vmatpush1.msra.mxu0 0.0
    %4732 = vmatprep.subr.mxu0 0.0
    %4733 = vmatpush1.msra.mxu0 0.0
    %4734 = vmatprep.subr.mxu0 0.0
    %4735 = vmatpush1.msra.mxu0 0.0
    %4736 = vmatprep.subr.mxu0 0.0
    %4737 = vmatpush1.msra.mxu0 0.0
    %4738 = vmatprep.subr.mxu0 0.0
    %4739 = vmatpush1.msra.mxu0 0.0
    %4740 = vmatprep.subr.mxu0 0.0
    %4741 = vmatpush1.msra.mxu0 0.0
    %4742 = vmatprep.mubr.f32.mxu0 0.0
    %v4743 = vand.u32 %v4672, 4294901760
    %v4744 = vsub.f32 %v4672, %v4743
    %v4745 = vand.u32 %v4744, 4294901760
    %v4746 = vsub.f32 %v4744, %v4745
    %v4747 = vand.u32 %v4746, 4294901760
    %4748 = vmatmul.mubr.f32.gmra.mrb[0].mxu0 %v4747
    %v4749 = vpop.f32.mrb[0].mxu0
    %v4750 = vadd.f32 %v4669, %v4749
    %v4751 = vpop.f32.mrb[0].mxu0
    %4752 = vdwg.mxu0
    %4753 = vmatprep.subr.mxu0 0.0
    %v4754 = vand.u32 %v4660, 4294901760
    %v4755 = vsub.f32 %v4660, %v4754
    %v4756 = vand.u32 %v4755, 4294901760
    %v4757 = vsub.f32 %v4755, %v4756
    %v4758 = vand.u32 %v4757, 4294901760
    %4759 = vmatpush1.msra.mxu0 %v4758
    %4760 = vmatprep.subr.mxu0 0.0
    %v4761 = vand.u32 %v4661, 4294901760
    %v4762 = vsub.f32 %v4661, %v4761
    %v4763 = vand.u32 %v4762, 4294901760
    %v4764 = vsub.f32 %v4762, %v4763
    %v4765 = vand.u32 %v4764, 4294901760
    %4766 = vmatpush1.msra.mxu0 %v4765
    %4767 = vmatprep.subr.mxu0 0.0
    %v4768 = vand.u32 %v4662, 4294901760
    %v4769 = vsub.f32 %v4662, %v4768
    %v4770 = vand.u32 %v4769, 4294901760
    %v4771 = vsub.f32 %v4769, %v4770
    %v4772 = vand.u32 %v4771, 4294901760
    %4773 = vmatpush1.msra.mxu0 %v4772
    %4774 = vmatprep.subr.mxu0 0.0
    %v4775 = vand.u32 %v4663, 4294901760
    %v4776 = vsub.f32 %v4663, %v4775
    %v4777 = vand.u32 %v4776, 4294901760
    %v4778 = vsub.f32 %v4776, %v4777
    %v4779 = vand.u32 %v4778, 4294901760
    %4780 = vmatpush1.msra.mxu0 %v4779
    %4781 = vmatprep.subr.mxu0 0.0
    %4782 = vmatpush1.msra.mxu0 0.0
    %4783 = vmatprep.subr.mxu0 0.0
    %4784 = vmatpush1.msra.mxu0 0.0
    %4785 = vmatprep.subr.mxu0 0.0
    %4786 = vmatpush1.msra.mxu0 0.0
    %4787 = vmatprep.subr.mxu0 0.0
    %4788 = vmatpush1.msra.mxu0 0.0
    %4789 = vmatprep.subr.mxu0 0.0
    %4790 = vmatpush1.msra.mxu0 0.0
    %4791 = vmatprep.subr.mxu0 0.0
    %4792 = vmatpush1.msra.mxu0 0.0
    %4793 = vmatprep.subr.mxu0 0.0
    %4794 = vmatpush1.msra.mxu0 0.0
    %4795 = vmatprep.subr.mxu0 0.0
    %4796 = vmatpush1.msra.mxu0 0.0
    %4797 = vmatprep.subr.mxu0 0.0
    %4798 = vmatpush1.msra.mxu0 0.0
    %4799 = vmatprep.subr.mxu0 0.0
    %4800 = vmatpush1.msra.mxu0 0.0
    %4801 = vmatprep.subr.mxu0 0.0
    %4802 = vmatpush1.msra.mxu0 0.0
    %4803 = vmatprep.subr.mxu0 0.0
    %4804 = vmatpush1.msra.mxu0 0.0
    %4805 = vmatprep.subr.mxu0 0.0
    %4806 = vmatpush1.msra.mxu0 0.0
    %4807 = vmatprep.subr.mxu0 0.0
    %4808 = vmatpush1.msra.mxu0 0.0
    %4809 = vmatprep.subr.mxu0 0.0
    %4810 = vmatpush1.msra.mxu0 0.0
    %4811 = vmatprep.subr.mxu0 0.0
    %4812 = vmatpush1.msra.mxu0 0.0
    %4813 = vmatprep.subr.mxu0 0.0
    %4814 = vmatpush1.msra.mxu0 0.0
    %4815 = vmatprep.subr.mxu0 0.0
    %4816 = vmatpush1.msra.mxu0 0.0
    %4817 = vmatprep.subr.mxu0 0.0
    %4818 = vmatpush1.msra.mxu0 0.0
    %4819 = vmatprep.subr.mxu0 0.0
    %4820 = vmatpush1.msra.mxu0 0.0
    %4821 = vmatprep.subr.mxu0 0.0
    %4822 = vmatpush1.msra.mxu0 0.0
    %4823 = vmatprep.subr.mxu0 0.0
    %4824 = vmatpush1.msra.mxu0 0.0
    %4825 = vmatprep.subr.mxu0 0.0
    %4826 = vmatpush1.msra.mxu0 0.0
    %4827 = vmatprep.subr.mxu0 0.0
    %4828 = vmatpush1.msra.mxu0 0.0
    %4829 = vmatprep.subr.mxu0 0.0
    %4830 = vmatpush1.msra.mxu0 0.0
    %4831 = vmatprep.subr.mxu0 0.0
    %4832 = vmatpush1.msra.mxu0 0.0
    %4833 = vmatprep.subr.mxu0 0.0
    %4834 = vmatpush1.msra.mxu0 0.0
    %4835 = vmatprep.subr.mxu0 0.0
    %4836 = vmatpush1.msra.mxu0 0.0
    %4837 = vmatprep.mubr.f32.mxu0 0.0
    %v4838 = vand.u32 %v4672, 4294901760
    %4839 = vmatmul.mubr.f32.gmra.mrb[0].mxu0 %v4838
    %v4840 = vpop.f32.mrb[0].mxu0
    %v4841 = vadd.f32 %v4750, %v4840
    %v4842 = vpop.f32.mrb[0].mxu0
    %4843 = vdwg.mxu0
    %4844 = vmatprep.subr.mxu0 0.0
    %v4845 = vand.u32 %v4660, 4294901760
    %v4846 = vsub.f32 %v4660, %v4845
    %4847 = vmatpush1.msra.mxu0 %v4846
    %4848 = vmatprep.subr.mxu0 0.0
    %v4849 = vand.u32 %v4661, 4294901760
    %v4850 = vsub.f32 %v4661, %v4849
    %4851 = vmatpush1.msra.mxu0 %v4850
    %4852 = vmatprep.subr.mxu0 0.0
    %v4853 = vand.u32 %v4662, 4294901760
    %v4854 = vsub.f32 %v4662, %v4853
    %4855 = vmatpush1.msra.mxu0 %v4854
    %4856 = vmatprep.subr.mxu0 0.0
    %v4857 = vand.u32 %v4663, 4294901760
    %v4858 = vsub.f32 %v4663, %v4857
    %4859 = vmatpush1.msra.mxu0 %v4858
    %4860 = vmatprep.subr.mxu0 0.0
    %4861 = vmatpush1.msra.mxu0 0.0
    %4862 = vmatprep.subr.mxu0 0.0
    %4863 = vmatpush1.msra.mxu0 0.0
    %4864 = vmatprep.subr.mxu0 0.0
    %4865 = vmatpush1.msra.mxu0 0.0
    %4866 = vmatprep.subr.mxu0 0.0
    %4867 = vmatpush1.msra.mxu0 0.0
    %4868 = vmatprep.subr.mxu0 0.0
    %4869 = vmatpush1.msra.mxu0 0.0
    %4870 = vmatprep.subr.mxu0 0.0
    %4871 = vmatpush1.msra.mxu0 0.0
    %4872 = vmatprep.subr.mxu0 0.0
    %4873 = vmatpush1.msra.mxu0 0.0
    %4874 = vmatprep.subr.mxu0 0.0
    %4875 = vmatpush1.msra.mxu0 0.0
    %4876 = vmatprep.subr.mxu0 0.0
    %4877 = vmatpush1.msra.mxu0 0.0
    %4878 = vmatprep.subr.mxu0 0.0
    %4879 = vmatpush1.msra.mxu0 0.0
    %4880 = vmatprep.subr.mxu0 0.0
    %4881 = vmatpush1.msra.mxu0 0.0
    %4882 = vmatprep.subr.mxu0 0.0
    %4883 = vmatpush1.msra.mxu0 0.0
    %4884 = vmatprep.subr.mxu0 0.0
    %4885 = vmatpush1.msra.mxu0 0.0
    %4886 = vmatprep.subr.mxu0 0.0
    %4887 = vmatpush1.msra.mxu0 0.0
    %4888 = vmatprep.subr.mxu0 0.0
    %4889 = vmatpush1.msra.mxu0 0.0
    %4890 = vmatprep.subr.mxu0 0.0
    %4891 = vmatpush1.msra.mxu0 0.0
    %4892 = vmatprep.subr.mxu0 0.0
    %4893 = vmatpush1.msra.mxu0 0.0
    %4894 = vmatprep.subr.mxu0 0.0
    %4895 = vmatpush1.msra.mxu0 0.0
    %4896 = vmatprep.subr.mxu0 0.0
    %4897 = vmatpush1.msra.mxu0 0.0
    %4898 = vmatprep.subr.mxu0 0.0
    %4899 = vmatpush1.msra.mxu0 0.0
    %4900 = vmatprep.subr.mxu0 0.0
    %4901 = vmatpush1.msra.mxu0 0.0
    %4902 = vmatprep.subr.mxu0 0.0
    %4903 = vmatpush1.msra.mxu0 0.0
    %4904 = vmatprep.subr.mxu0 0.0
    %4905 = vmatpush1.msra.mxu0 0.0
    %4906 = vmatprep.subr.mxu0 0.0
    %4907 = vmatpush1.msra.mxu0 0.0
    %4908 = vmatprep.subr.mxu0 0.0
    %4909 = vmatpush1.msra.mxu0 0.0
    %4910 = vmatprep.subr.mxu0 0.0
    %4911 = vmatpush1.msra.mxu0 0.0
    %4912 = vmatprep.subr.mxu0 0.0
    %4913 = vmatpush1.msra.mxu0 0.0
    %4914 = vmatprep.subr.mxu0 0.0
    %4915 = vmatpush1.msra.mxu0 0.0
    %4916 = vmatprep.mubr.f32.mxu0 0.0
    %v4917 = vand.u32 %v4672, 4294901760
    %v4918 = vsub.f32 %v4672, %v4917
    %4919 = vmatmul.mubr.f32.gmra.mrb[0].mxu0 %v4918
    %v4920 = vpop.f32.mrb[0].mxu0
    %v4921 = vadd.f32 %v4841, %v4920
    %v4922 = vpop.f32.mrb[0].mxu0
    %4923 = vdwg.mxu0
    %4924 = vmatprep.subr.mxu0 0.0
    %v4925 = vand.u32 %v4660, 4294901760
    %4926 = vmatpush1.msra.mxu0 %v4925
    %4927 = vmatprep.subr.mxu0 0.0
    %v4928 = vand.u32 %v4661, 4294901760
    %4929 = vmatpush1.msra.mxu0 %v4928
    %4930 = vmatprep.subr.mxu0 0.0
    %v4931 = vand.u32 %v4662, 4294901760
    %4932 = vmatpush1.msra.mxu0 %v4931
    %4933 = vmatprep.subr.mxu0 0.0
    %v4934 = vand.u32 %v4663, 4294901760
    %4935 = vmatpush1.msra.mxu0 %v4934
    %4936 = vmatprep.subr.mxu0 0.0
    %4937 = vmatpush1.msra.mxu0 0.0
    %4938 = vmatprep.subr.mxu0 0.0
    %4939 = vmatpush1.msra.mxu0 0.0
    %4940 = vmatprep.subr.mxu0 0.0
    %4941 = vmatpush1.msra.mxu0 0.0
    %4942 = vmatprep.subr.mxu0 0.0
    %4943 = vmatpush1.msra.mxu0 0.0
    %4944 = vmatprep.subr.mxu0 0.0
    %4945 = vmatpush1.msra.mxu0 0.0
    %4946 = vmatprep.subr.mxu0 0.0
    %4947 = vmatpush1.msra.mxu0 0.0
    %4948 = vmatprep.subr.mxu0 0.0
    %4949 = vmatpush1.msra.mxu0 0.0
    %4950 = vmatprep.subr.mxu0 0.0
    %4951 = vmatpush1.msra.mxu0 0.0
    %4952 = vmatprep.subr.mxu0 0.0
    %4953 = vmatpush1.msra.mxu0 0.0
    %4954 = vmatprep.subr.mxu0 0.0
    %4955 = vmatpush1.msra.mxu0 0.0
    %4956 = vmatprep.subr.mxu0 0.0
    %4957 = vmatpush1.msra.mxu0 0.0
    %4958 = vmatprep.subr.mxu0 0.0
    %4959 = vmatpush1.msra.mxu0 0.0
    %4960 = vmatprep.subr.mxu0 0.0
    %4961 = vmatpush1.msra.mxu0 0.0
    %4962 = vmatprep.subr.mxu0 0.0
    %4963 = vmatpush1.msra.mxu0 0.0
    %4964 = vmatprep.subr.mxu0 0.0
    %4965 = vmatpush1.msra.mxu0 0.0
    %4966 = vmatprep.subr.mxu0 0.0
    %4967 = vmatpush1.msra.mxu0 0.0
    %4968 = vmatprep.subr.mxu0 0.0
    %4969 = vmatpush1.msra.mxu0 0.0
    %4970 = vmatprep.subr.mxu0 0.0
    %4971 = vmatpush1.msra.mxu0 0.0
    %4972 = vmatprep.subr.mxu0 0.0
    %4973 = vmatpush1.msra.mxu0 0.0
    %4974 = vmatprep.subr.mxu0 0.0
    %4975 = vmatpush1.msra.mxu0 0.0
    %4976 = vmatprep.subr.mxu0 0.0
    %4977 = vmatpush1.msra.mxu0 0.0
    %4978 = vmatprep.subr.mxu0 0.0
    %4979 = vmatpush1.msra.mxu0 0.0
    %4980 = vmatprep.subr.mxu0 0.0
    %4981 = vmatpush1.msra.mxu0 0.0
    %4982 = vmatprep.subr.mxu0 0.0
    %4983 = vmatpush1.msra.mxu0 0.0
    %4984 = vmatprep.subr.mxu0 0.0
    %4985 = vmatpush1.msra.mxu0 0.0
    %4986 = vmatprep.subr.mxu0 0.0
    %4987 = vmatpush1.msra.mxu0 0.0
    %4988 = vmatprep.subr.mxu0 0.0
    %4989 = vmatpush1.msra.mxu0 0.0
    %4990 = vmatprep.subr.mxu0 0.0
    %4991 = vmatpush1.msra.mxu0 0.0
    %4992 = vmatprep.mubr.f32.mxu0 0.0
    %v4993 = vand.u32 %v4672, 4294901760
    %v4994 = vsub.f32 %v4672, %v4993
    %v4995 = vand.u32 %v4994, 4294901760
    %4996 = vmatmul.mubr.f32.gmra.mrb[0].mxu0 %v4995
    %v4997 = vpop.f32.mrb[0].mxu0
    %v4998 = vadd.f32 %v4921, %v4997
    %v4999 = vpop.f32.mrb[0].mxu0
    %5000 = vdwg.mxu0
    %5001 = vmatprep.subr.mxu0 0.0
    %v5002 = vand.u32 %v4660, 4294901760
    %v5003 = vsub.f32 %v4660, %v5002
    %v5004 = vand.u32 %v5003, 4294901760
    %5005 = vmatpush1.msra.mxu0 %v5004
    %5006 = vmatprep.subr.mxu0 0.0
    %v5007 = vand.u32 %v4661, 4294901760
    %v5008 = vsub.f32 %v4661, %v5007
    %v5009 = vand.u32 %v5008, 4294901760
    %5010 = vmatpush1.msra.mxu0 %v5009
    %5011 = vmatprep.subr.mxu0 0.0
    %v5012 = vand.u32 %v4662, 4294901760
    %v5013 = vsub.f32 %v4662, %v5012
    %v5014 = vand.u32 %v5013, 4294901760
    %5015 = vmatpush1.msra.mxu0 %v5014
    %5016 = vmatprep.subr.mxu0 0.0
    %v5017 = vand.u32 %v4663, 4294901760
    %v5018 = vsub.f32 %v4663, %v5017
    %v5019 = vand.u32 %v5018, 4294901760
    %5020 = vmatpush1.msra.mxu0 %v5019
    %5021 = vmatprep.subr.mxu0 0.0
    %5022 = vmatpush1.msra.mxu0 0.0
    %5023 = vmatprep.subr.mxu0 0.0
    %5024 = vmatpush1.msra.mxu0 0.0
    %5025 = vmatprep.subr.mxu0 0.0
    %5026 = vmatpush1.msra.mxu0 0.0
    %5027 = vmatprep.subr.mxu0 0.0
    %5028 = vmatpush1.msra.mxu0 0.0
    %5029 = vmatprep.subr.mxu0 0.0
    %5030 = vmatpush1.msra.mxu0 0.0
    %5031 = vmatprep.subr.mxu0 0.0
    %5032 = vmatpush1.msra.mxu0 0.0
    %5033 = vmatprep.subr.mxu0 0.0
    %5034 = vmatpush1.msra.mxu0 0.0
    %5035 = vmatprep.subr.mxu0 0.0
    %5036 = vmatpush1.msra.mxu0 0.0
    %5037 = vmatprep.subr.mxu0 0.0
    %5038 = vmatpush1.msra.mxu0 0.0
    %5039 = vmatprep.subr.mxu0 0.0
    %5040 = vmatpush1.msra.mxu0 0.0
    %5041 = vmatprep.subr.mxu0 0.0
    %5042 = vmatpush1.msra.mxu0 0.0
    %5043 = vmatprep.subr.mxu0 0.0
    %5044 = vmatpush1.msra.mxu0 0.0
    %5045 = vmatprep.subr.mxu0 0.0
    %5046 = vmatpush1.msra.mxu0 0.0
    %5047 = vmatprep.subr.mxu0 0.0
    %5048 = vmatpush1.msra.mxu0 0.0
    %5049 = vmatprep.subr.mxu0 0.0
    %5050 = vmatpush1.msra.mxu0 0.0
    %5051 = vmatprep.subr.mxu0 0.0
    %5052 = vmatpush1.msra.mxu0 0.0
    %5053 = vmatprep.subr.mxu0 0.0
    %5054 = vmatpush1.msra.mxu0 0.0
    %5055 = vmatprep.subr.mxu0 0.0
    %5056 = vmatpush1.msra.mxu0 0.0
    %5057 = vmatprep.subr.mxu0 0.0
    %5058 = vmatpush1.msra.mxu0 0.0
    %5059 = vmatprep.subr.mxu0 0.0
    %5060 = vmatpush1.msra.mxu0 0.0
    %5061 = vmatprep.subr.mxu0 0.0
    %5062 = vmatpush1.msra.mxu0 0.0
    %5063 = vmatprep.subr.mxu0 0.0
    %5064 = vmatpush1.msra.mxu0 0.0
    %5065 = vmatprep.subr.mxu0 0.0
    %5066 = vmatpush1.msra.mxu0 0.0
    %5067 = vmatprep.subr.mxu0 0.0
    %5068 = vmatpush1.msra.mxu0 0.0
    %5069 = vmatprep.subr.mxu0 0.0
    %5070 = vmatpush1.msra.mxu0 0.0
    %5071 = vmatprep.subr.mxu0 0.0
    %5072 = vmatpush1.msra.mxu0 0.0
    %5073 = vmatprep.subr.mxu0 0.0
    %5074 = vmatpush1.msra.mxu0 0.0
    %5075 = vmatprep.subr.mxu0 0.0
    %5076 = vmatpush1.msra.mxu0 0.0
    %5077 = vmatprep.mubr.f32.mxu0 0.0
    %v5078 = vand.u32 %v4672, 4294901760
    %5079 = vmatmul.mubr.f32.gmra.mrb[0].mxu0 %v5078
    %v5080 = vpop.f32.mrb[0].mxu0
    %v5081 = vadd.f32 %v4998, %v5080
    %v5082 = vpop.f32.mrb[0].mxu0
    %5083 = vdwg.mxu0
    %5084 = vmatprep.subr.mxu0 0.0
    %v5085 = vand.u32 %v4660, 4294901760
    %5086 = vmatpush1.msra.mxu0 %v5085
    %5087 = vmatprep.subr.mxu0 0.0
    %v5088 = vand.u32 %v4661, 4294901760
    %5089 = vmatpush1.msra.mxu0 %v5088
    %5090 = vmatprep.subr.mxu0 0.0
    %v5091 = vand.u32 %v4662, 4294901760
    %5092 = vmatpush1.msra.mxu0 %v5091
    %5093 = vmatprep.subr.mxu0 0.0
    %v5094 = vand.u32 %v4663, 4294901760
    %5095 = vmatpush1.msra.mxu0 %v5094
    %5096 = vmatprep.subr.mxu0 0.0
    %5097 = vmatpush1.msra.mxu0 0.0
    %5098 = vmatprep.subr.mxu0 0.0
    %5099 = vmatpush1.msra.mxu0 0.0
    %5100 = vmatprep.subr.mxu0 0.0
    %5101 = vmatpush1.msra.mxu0 0.0
    %5102 = vmatprep.subr.mxu0 0.0
    %5103 = vmatpush1.msra.mxu0 0.0
    %5104 = vmatprep.subr.mxu0 0.0
    %5105 = vmatpush1.msra.mxu0 0.0
    %5106 = vmatprep.subr.mxu0 0.0
    %5107 = vmatpush1.msra.mxu0 0.0
    %5108 = vmatprep.subr.mxu0 0.0
    %5109 = vmatpush1.msra.mxu0 0.0
    %5110 = vmatprep.subr.mxu0 0.0
    %5111 = vmatpush1.msra.mxu0 0.0
    %5112 = vmatprep.subr.mxu0 0.0
    %5113 = vmatpush1.msra.mxu0 0.0
    %5114 = vmatprep.subr.mxu0 0.0
    %5115 = vmatpush1.msra.mxu0 0.0
    %5116 = vmatprep.subr.mxu0 0.0
    %5117 = vmatpush1.msra.mxu0 0.0
    %5118 = vmatprep.subr.mxu0 0.0
    %5119 = vmatpush1.msra.mxu0 0.0
    %5120 = vmatprep.subr.mxu0 0.0
    %5121 = vmatpush1.msra.mxu0 0.0
    %5122 = vmatprep.subr.mxu0 0.0
    %5123 = vmatpush1.msra.mxu0 0.0
    %5124 = vmatprep.subr.mxu0 0.0
    %5125 = vmatpush1.msra.mxu0 0.0
    %5126 = vmatprep.subr.mxu0 0.0
    %5127 = vmatpush1.msra.mxu0 0.0
    %5128 = vmatprep.subr.mxu0 0.0
    %5129 = vmatpush1.msra.mxu0 0.0
    %5130 = vmatprep.subr.mxu0 0.0
    %5131 = vmatpush1.msra.mxu0 0.0
    %5132 = vmatprep.subr.mxu0 0.0
    %5133 = vmatpush1.msra.mxu0 0.0
    %5134 = vmatprep.subr.mxu0 0.0
    %5135 = vmatpush1.msra.mxu0 0.0
    %5136 = vmatprep.subr.mxu0 0.0
    %5137 = vmatpush1.msra.mxu0 0.0
    %5138 = vmatprep.subr.mxu0 0.0
    %5139 = vmatpush1.msra.mxu0 0.0
    %5140 = vmatprep.subr.mxu0 0.0
    %5141 = vmatpush1.msra.mxu0 0.0
    %5142 = vmatprep.subr.mxu0 0.0
    %5143 = vmatpush1.msra.mxu0 0.0
    %5144 = vmatprep.subr.mxu0 0.0
    %5145 = vmatpush1.msra.mxu0 0.0
    %5146 = vmatprep.subr.mxu0 0.0
    %5147 = vmatpush1.msra.mxu0 0.0
    %5148 = vmatprep.subr.mxu0 0.0
    %5149 = vmatpush1.msra.mxu0 0.0
    %5150 = vmatprep.subr.mxu0 0.0
    %5151 = vmatpush1.msra.mxu0 0.0
    %5152 = vmatprep.mubr.f32.mxu0 0.0
    %v5153 = vand.u32 %v4672, 4294901760
    %5154 = vmatmul.mubr.f32.gmra.mrb[0].mxu0 %v5153
    %v5155 = vpop.f32.mrb[0].mxu0
    %v5156 = vadd.f32 %v5081, %v5155
    %v5157 = vpop.f32.mrb[0].mxu0
    %5158 = vdwg.mxu0
    %v5159 = vmax.f32 %v5156, 0.0
    %v5160 = vld [vmem:[%s15] sm:$0xff]
    %v5161 = vld [vmem:[%s15 + $0x8] sm:$0xff]
    %v5162 = vld [vmem:[%s15 + $0x10] sm:$0xff]
    %v5163 = vld [vmem:[%s15 + $0x18] sm:$0xff]
    %v5164 = vld [vmem:[%s15 + $0x20] sm:$0xff]
    %v5165 = vld [vmem:[%s15 + $0x28] sm:$0xff]
    %v5166 = vld [vmem:[%s15 + $0x30] sm:$0xff]
    %v5167 = vld [vmem:[%s15 + $0x38] sm:$0xff]
    %vm5168 = vcmask 523264
    %v5170 = vsel %vm5168, %v5159, 0
    %5172 = vmatprep.subr.mxu0 0.0
    %v5173 = vand.u32 %v5160, 4294901760
    %5174 = vmatpush1.msra.mxu0 %v5173
    %5175 = vmatprep.subr.mxu0 0.0
    %v5176 = vand.u32 %v5161, 4294901760
    %5177 = vmatpush1.msra.mxu0 %v5176
    %5178 = vmatprep.subr.mxu0 0.0
    %v5179 = vand.u32 %v5162, 4294901760
    %5180 = vmatpush1.msra.mxu0 %v5179
    %5181 = vmatprep.subr.mxu0 0.0
    %v5182 = vand.u32 %v5163, 4294901760
    %5183 = vmatpush1.msra.mxu0 %v5182
    %5184 = vmatprep.subr.mxu0 0.0
    %v5185 = vand.u32 %v5164, 4294901760
    %5186 = vmatpush1.msra.mxu0 %v5185
    %5187 = vmatprep.subr.mxu0 0.0
    %v5188 = vand.u32 %v5165, 4294901760
    %5189 = vmatpush1.msra.mxu0 %v5188
    %5190 = vmatprep.subr.mxu0 0.0
    %v5191 = vand.u32 %v5166, 4294901760
    %5192 = vmatpush1.msra.mxu0 %v5191
    %5193 = vmatprep.subr.mxu0 0.0
    %v5194 = vand.u32 %v5167, 4294901760
    %5195 = vmatpush1.msra.mxu0 %v5194
    %5196 = vmatprep.subr.mxu0 0.0
    %5197 = vmatpush1.msra.mxu0 0.0
    %5198 = vmatprep.subr.mxu0 0.0
    %5199 = vmatpush1.msra.mxu0 0.0
    %5200 = vmatprep.subr.mxu0 0.0
    %5201 = vmatpush1.msra.mxu0 0.0
    %5202 = vmatprep.subr.mxu0 0.0
    %5203 = vmatpush1.msra.mxu0 0.0
    %5204 = vmatprep.subr.mxu0 0.0
    %5205 = vmatpush1.msra.mxu0 0.0
    %5206 = vmatprep.subr.mxu0 0.0
    %5207 = vmatpush1.msra.mxu0 0.0
    %5208 = vmatprep.subr.mxu0 0.0
    %5209 = vmatpush1.msra.mxu0 0.0
    %5210 = vmatprep.subr.mxu0 0.0
    %5211 = vmatpush1.msra.mxu0 0.0
    %5212 = vmatprep.subr.mxu0 0.0
    %5213 = vmatpush1.msra.mxu0 0.0
    %5214 = vmatprep.subr.mxu0 0.0
    %5215 = vmatpush1.msra.mxu0 0.0
    %5216 = vmatprep.subr.mxu0 0.0
    %5217 = vmatpush1.msra.mxu0 0.0
    %5218 = vmatprep.subr.mxu0 0.0
    %5219 = vmatpush1.msra.mxu0 0.0
    %5220 = vmatprep.subr.mxu0 0.0
    %5221 = vmatpush1.msra.mxu0 0.0
    %5222 = vmatprep.subr.mxu0 0.0
    %5223 = vmatpush1.msra.mxu0 0.0
    %5224 = vmatprep.subr.mxu0 0.0
    %5225 = vmatpush1.msra.mxu0 0.0
    %5226 = vmatprep.subr.mxu0 0.0
    %5227 = vmatpush1.msra.mxu0 0.0
    %5228 = vmatprep.subr.mxu0 0.0
    %5229 = vmatpush1.msra.mxu0 0.0
    %5230 = vmatprep.subr.mxu0 0.0
    %5231 = vmatpush1.msra.mxu0 0.0
    %5232 = vmatprep.subr.mxu0 0.0
    %5233 = vmatpush1.msra.mxu0 0.0
    %5234 = vmatprep.subr.mxu0 0.0
    %5235 = vmatpush1.msra.mxu0 0.0
    %5236 = vmatprep.subr.mxu0 0.0
    %5237 = vmatpush1.msra.mxu0 0.0
    %5238 = vmatprep.subr.mxu0 0.0
    %5239 = vmatpush1.msra.mxu0 0.0
    %5240 = vmatprep.subr.mxu0 0.0
    %5241 = vmatpush1.msra.mxu0 0.0
    %5242 = vmatprep.subr.mxu0 0.0
    %5243 = vmatpush1.msra.mxu0 0.0
    %5244 = vmatprep.mubr.f32.mxu0 0.0
    %v5245 = vand.u32 %v5170, 4294901760
    %v5246 = vsub.f32 %v5170, %v5245
    %v5247 = vand.u32 %v5246, 4294901760
    %v5248 = vsub.f32 %v5246, %v5247
    %v5249 = vand.u32 %v5248, 4294901760
    %5250 = vmatmul.mubr.f32.gmra.mrb[0].mxu0 %v5249
    %v5251 = vpop.f32.mrb[0].mxu0
    %v5252 = vadd.f32 %v4645, %v5251
    %v5253 = vpop.f32.mrb[0].mxu0
    %5254 = vdwg.mxu0
    %5255 = vmatprep.subr.mxu0 0.0
    %v5256 = vand.u32 %v5160, 4294901760
    %v5257 = vsub.f32 %v5160, %v5256
    %v5258 = vand.u32 %v5257, 4294901760
    %v5259 = vsub.f32 %v5257, %v5258
    %v5260 = vand.u32 %v5259, 4294901760
    %5261 = vmatpush1.msra.mxu0 %v5260
    %5262 = vmatprep.subr.mxu0 0.0
    %v5263 = vand.u32 %v5161, 4294901760
    %v5264 = vsub.f32 %v5161, %v5263
    %v5265 = vand.u32 %v5264, 4294901760
    %v5266 = vsub.f32 %v5264, %v5265
    %v5267 = vand.u32 %v5266, 4294901760
    %5268 = vmatpush1.msra.mxu0 %v5267
    %5269 = vmatprep.subr.mxu0 0.0
    %v5270 = vand.u32 %v5162, 4294901760
    %v5271 = vsub.f32 %v5162, %v5270
    %v5272 = vand.u32 %v5271, 4294901760
    %v5273 = vsub.f32 %v5271, %v5272
    %v5274 = vand.u32 %v5273, 4294901760
    %5275 = vmatpush1.msra.mxu0 %v5274
    %5276 = vmatprep.subr.mxu0 0.0
    %v5277 = vand.u32 %v5163, 4294901760
    %v5278 = vsub.f32 %v5163, %v5277
    %v5279 = vand.u32 %v5278, 4294901760
    %v5280 = vsub.f32 %v5278, %v5279
    %v5281 = vand.u32 %v5280, 4294901760
    %5282 = vmatpush1.msra.mxu0 %v5281
    %5283 = vmatprep.subr.mxu0 0.0
    %v5284 = vand.u32 %v5164, 4294901760
    %v5285 = vsub.f32 %v5164, %v5284
    %v5286 = vand.u32 %v5285, 4294901760
    %v5287 = vsub.f32 %v5285, %v5286
    %v5288 = vand.u32 %v5287, 4294901760
    %5289 = vmatpush1.msra.mxu0 %v5288
    %5290 = vmatprep.subr.mxu0 0.0
    %v5291 = vand.u32 %v5165, 4294901760
    %v5292 = vsub.f32 %v5165, %v5291
    %v5293 = vand.u32 %v5292, 4294901760
    %v5294 = vsub.f32 %v5292, %v5293
    %v5295 = vand.u32 %v5294, 4294901760
    %5296 = vmatpush1.msra.mxu0 %v5295
    %5297 = vmatprep.subr.mxu0 0.0
    %v5298 = vand.u32 %v5166, 4294901760
    %v5299 = vsub.f32 %v5166, %v5298
    %v5300 = vand.u32 %v5299, 4294901760
    %v5301 = vsub.f32 %v5299, %v5300
    %v5302 = vand.u32 %v5301, 4294901760
    %5303 = vmatpush1.msra.mxu0 %v5302
    %5304 = vmatprep.subr.mxu0 0.0
    %v5305 = vand.u32 %v5167, 4294901760
    %v5306 = vsub.f32 %v5167, %v5305
    %v5307 = vand.u32 %v5306, 4294901760
    %v5308 = vsub.f32 %v5306, %v5307
    %v5309 = vand.u32 %v5308, 4294901760
    %5310 = vmatpush1.msra.mxu0 %v5309
    %5311 = vmatprep.subr.mxu0 0.0
    %5312 = vmatpush1.msra.mxu0 0.0
    %5313 = vmatprep.subr.mxu0 0.0
    %5314 = vmatpush1.msra.mxu0 0.0
    %5315 = vmatprep.subr.mxu0 0.0
    %5316 = vmatpush1.msra.mxu0 0.0
    %5317 = vmatprep.subr.mxu0 0.0
    %5318 = vmatpush1.msra.mxu0 0.0
    %5319 = vmatprep.subr.mxu0 0.0
    %5320 = vmatpush1.msra.mxu0 0.0
    %5321 = vmatprep.subr.mxu0 0.0
    %5322 = vmatpush1.msra.mxu0 0.0
    %5323 = vmatprep.subr.mxu0 0.0
    %5324 = vmatpush1.msra.mxu0 0.0
    %5325 = vmatprep.subr.mxu0 0.0
    %5326 = vmatpush1.msra.mxu0 0.0
    %5327 = vmatprep.subr.mxu0 0.0
    %5328 = vmatpush1.msra.mxu0 0.0
    %5329 = vmatprep.subr.mxu0 0.0
    %5330 = vmatpush1.msra.mxu0 0.0
    %5331 = vmatprep.subr.mxu0 0.0
    %5332 = vmatpush1.msra.mxu0 0.0
    %5333 = vmatprep.subr.mxu0 0.0
    %5334 = vmatpush1.msra.mxu0 0.0
    %5335 = vmatprep.subr.mxu0 0.0
    %5336 = vmatpush1.msra.mxu0 0.0
    %5337 = vmatprep.subr.mxu0 0.0
    %5338 = vmatpush1.msra.mxu0 0.0
    %5339 = vmatprep.subr.mxu0 0.0
    %5340 = vmatpush1.msra.mxu0 0.0
    %5341 = vmatprep.subr.mxu0 0.0
    %5342 = vmatpush1.msra.mxu0 0.0
    %5343 = vmatprep.subr.mxu0 0.0
    %5344 = vmatpush1.msra.mxu0 0.0
    %5345 = vmatprep.subr.mxu0 0.0
    %5346 = vmatpush1.msra.mxu0 0.0
    %5347 = vmatprep.subr.mxu0 0.0
    %5348 = vmatpush1.msra.mxu0 0.0
    %5349 = vmatprep.subr.mxu0 0.0
    %5350 = vmatpush1.msra.mxu0 0.0
    %5351 = vmatprep.subr.mxu0 0.0
    %5352 = vmatpush1.msra.mxu0 0.0
    %5353 = vmatprep.subr.mxu0 0.0
    %5354 = vmatpush1.msra.mxu0 0.0
    %5355 = vmatprep.subr.mxu0 0.0
    %5356 = vmatpush1.msra.mxu0 0.0
    %5357 = vmatprep.subr.mxu0 0.0
    %5358 = vmatpush1.msra.mxu0 0.0
    %5359 = vmatprep.mubr.f32.mxu0 0.0
    %v5360 = vand.u32 %v5170, 4294901760
    %5361 = vmatmul.mubr.f32.gmra.mrb[0].mxu0 %v5360
    %v5362 = vpop.f32.mrb[0].mxu0
    %v5363 = vadd.f32 %v5252, %v5362
    %v5364 = vpop.f32.mrb[0].mxu0
    %5365 = vdwg.mxu0
    %5366 = vmatprep.subr.mxu0 0.0
    %v5367 = vand.u32 %v5160, 4294901760
    %v5368 = vsub.f32 %v5160, %v5367
    %5369 = vmatpush1.msra.mxu0 %v5368
    %5370 = vmatprep.subr.mxu0 0.0
    %v5371 = vand.u32 %v5161, 4294901760
    %v5372 = vsub.f32 %v5161, %v5371
    %5373 = vmatpush1.msra.mxu0 %v5372
    %5374 = vmatprep.subr.mxu0 0.0
    %v5375 = vand.u32 %v5162, 4294901760
    %v5376 = vsub.f32 %v5162, %v5375
    %5377 = vmatpush1.msra.mxu0 %v5376
    %5378 = vmatprep.subr.mxu0 0.0
    %v5379 = vand.u32 %v5163, 4294901760
    %v5380 = vsub.f32 %v5163, %v5379
    %5381 = vmatpush1.msra.mxu0 %v5380
    %5382 = vmatprep.subr.mxu0 0.0
    %v5383 = vand.u32 %v5164, 4294901760
    %v5384 = vsub.f32 %v5164, %v5383
    %5385 = vmatpush1.msra.mxu0 %v5384
    %5386 = vmatprep.subr.mxu0 0.0
    %v5387 = vand.u32 %v5165, 4294901760
    %v5388 = vsub.f32 %v5165, %v5387
    %5389 = vmatpush1.msra.mxu0 %v5388
    %5390 = vmatprep.subr.mxu0 0.0
    %v5391 = vand.u32 %v5166, 4294901760
    %v5392 = vsub.f32 %v5166, %v5391
    %5393 = vmatpush1.msra.mxu0 %v5392
    %5394 = vmatprep.subr.mxu0 0.0
    %v5395 = vand.u32 %v5167, 4294901760
    %v5396 = vsub.f32 %v5167, %v5395
    %5397 = vmatpush1.msra.mxu0 %v5396
    %5398 = vmatprep.subr.mxu0 0.0
    %5399 = vmatpush1.msra.mxu0 0.0
    %5400 = vmatprep.subr.mxu0 0.0
    %5401 = vmatpush1.msra.mxu0 0.0
    %5402 = vmatprep.subr.mxu0 0.0
    %5403 = vmatpush1.msra.mxu0 0.0
    %5404 = vmatprep.subr.mxu0 0.0
    %5405 = vmatpush1.msra.mxu0 0.0
    %5406 = vmatprep.subr.mxu0 0.0
    %5407 = vmatpush1.msra.mxu0 0.0
    %5408 = vmatprep.subr.mxu0 0.0
    %5409 = vmatpush1.msra.mxu0 0.0
    %5410 = vmatprep.subr.mxu0 0.0
    %5411 = vmatpush1.msra.mxu0 0.0
    %5412 = vmatprep.subr.mxu0 0.0
    %5413 = vmatpush1.msra.mxu0 0.0
    %5414 = vmatprep.subr.mxu0 0.0
    %5415 = vmatpush1.msra.mxu0 0.0
    %5416 = vmatprep.subr.mxu0 0.0
    %5417 = vmatpush1.msra.mxu0 0.0
    %5418 = vmatprep.subr.mxu0 0.0
    %5419 = vmatpush1.msra.mxu0 0.0
    %5420 = vmatprep.subr.mxu0 0.0
    %5421 = vmatpush1.msra.mxu0 0.0
    %5422 = vmatprep.subr.mxu0 0.0
    %5423 = vmatpush1.msra.mxu0 0.0
    %5424 = vmatprep.subr.mxu0 0.0
    %5425 = vmatpush1.msra.mxu0 0.0
    %5426 = vmatprep.subr.mxu0 0.0
    %5427 = vmatpush1.msra.mxu0 0.0
    %5428 = vmatprep.subr.mxu0 0.0
    %5429 = vmatpush1.msra.mxu0 0.0
    %5430 = vmatprep.subr.mxu0 0.0
    %5431 = vmatpush1.msra.mxu0 0.0
    %5432 = vmatprep.subr.mxu0 0.0
    %5433 = vmatpush1.msra.mxu0 0.0
    %5434 = vmatprep.subr.mxu0 0.0
    %5435 = vmatpush1.msra.mxu0 0.0
    %5436 = vmatprep.subr.mxu0 0.0
    %5437 = vmatpush1.msra.mxu0 0.0
    %5438 = vmatprep.subr.mxu0 0.0
    %5439 = vmatpush1.msra.mxu0 0.0
    %5440 = vmatprep.subr.mxu0 0.0
    %5441 = vmatpush1.msra.mxu0 0.0
    %5442 = vmatprep.subr.mxu0 0.0
    %5443 = vmatpush1.msra.mxu0 0.0
    %5444 = vmatprep.subr.mxu0 0.0
    %5445 = vmatpush1.msra.mxu0 0.0
    %5446 = vmatprep.mubr.f32.mxu0 0.0
    %v5447 = vand.u32 %v5170, 4294901760
    %v5448 = vsub.f32 %v5170, %v5447
    %5449 = vmatmul.mubr.f32.gmra.mrb[0].mxu0 %v5448
    %v5450 = vpop.f32.mrb[0].mxu0
    %v5451 = vadd.f32 %v5363, %v5450
    %v5452 = vpop.f32.mrb[0].mxu0
    %5453 = vdwg.mxu0
    %5454 = vmatprep.subr.mxu0 0.0
    %v5455 = vand.u32 %v5160, 4294901760
    %5456 = vmatpush1.msra.mxu0 %v5455
    %5457 = vmatprep.subr.mxu0 0.0
    %v5458 = vand.u32 %v5161, 4294901760
    %5459 = vmatpush1.msra.mxu0 %v5458
    %5460 = vmatprep.subr.mxu0 0.0
    %v5461 = vand.u32 %v5162, 4294901760
    %5462 = vmatpush1.msra.mxu0 %v5461
    %5463 = vmatprep.subr.mxu0 0.0
    %v5464 = vand.u32 %v5163, 4294901760
    %5465 = vmatpush1.msra.mxu0 %v5464
    %5466 = vmatprep.subr.mxu0 0.0
    %v5467 = vand.u32 %v5164, 4294901760
    %5468 = vmatpush1.msra.mxu0 %v5467
    %5469 = vmatprep.subr.mxu0 0.0
    %v5470 = vand.u32 %v5165, 4294901760
    %5471 = vmatpush1.msra.mxu0 %v5470
    %5472 = vmatprep.subr.mxu0 0.0
    %v5473 = vand.u32 %v5166, 4294901760
    %5474 = vmatpush1.msra.mxu0 %v5473
    %5475 = vmatprep.subr.mxu0 0.0
    %v5476 = vand.u32 %v5167, 4294901760
    %5477 = vmatpush1.msra.mxu0 %v5476
    %5478 = vmatprep.subr.mxu0 0.0
    %5479 = vmatpush1.msra.mxu0 0.0
    %5480 = vmatprep.subr.mxu0 0.0
    %5481 = vmatpush1.msra.mxu0 0.0
    %5482 = vmatprep.subr.mxu0 0.0
    %5483 = vmatpush1.msra.mxu0 0.0
    %5484 = vmatprep.subr.mxu0 0.0
    %5485 = vmatpush1.msra.mxu0 0.0
    %5486 = vmatprep.subr.mxu0 0.0
    %5487 = vmatpush1.msra.mxu0 0.0
    %5488 = vmatprep.subr.mxu0 0.0
    %5489 = vmatpush1.msra.mxu0 0.0
    %5490 = vmatprep.subr.mxu0 0.0
    %5491 = vmatpush1.msra.mxu0 0.0
    %5492 = vmatprep.subr.mxu0 0.0
    %5493 = vmatpush1.msra.mxu0 0.0
    %5494 = vmatprep.subr.mxu0 0.0
    %5495 = vmatpush1.msra.mxu0 0.0
    %5496 = vmatprep.subr.mxu0 0.0
    %5497 = vmatpush1.msra.mxu0 0.0
    %5498 = vmatprep.subr.mxu0 0.0
    %5499 = vmatpush1.msra.mxu0 0.0
    %5500 = vmatprep.subr.mxu0 0.0
    %5501 = vmatpush1.msra.mxu0 0.0
    %5502 = vmatprep.subr.mxu0 0.0
    %5503 = vmatpush1.msra.mxu0 0.0
    %5504 = vmatprep.subr.mxu0 0.0
    %5505 = vmatpush1.msra.mxu0 0.0
    %5506 = vmatprep.subr.mxu0 0.0
    %5507 = vmatpush1.msra.mxu0 0.0
    %5508 = vmatprep.subr.mxu0 0.0
    %5509 = vmatpush1.msra.mxu0 0.0
    %5510 = vmatprep.subr.mxu0 0.0
    %5511 = vmatpush1.msra.mxu0 0.0
    %5512 = vmatprep.subr.mxu0 0.0
    %5513 = vmatpush1.msra.mxu0 0.0
    %5514 = vmatprep.subr.mxu0 0.0
    %5515 = vmatpush1.msra.mxu0 0.0
    %5516 = vmatprep.subr.mxu0 0.0
    %5517 = vmatpush1.msra.mxu0 0.0
    %5518 = vmatprep.subr.mxu0 0.0
    %5519 = vmatpush1.msra.mxu0 0.0
    %5520 = vmatprep.subr.mxu0 0.0
    %5521 = vmatpush1.msra.mxu0 0.0
    %5522 = vmatprep.subr.mxu0 0.0
    %5523 = vmatpush1.msra.mxu0 0.0
    %5524 = vmatprep.subr.mxu0 0.0
    %5525 = vmatpush1.msra.mxu0 0.0
    %5526 = vmatprep.mubr.f32.mxu0 0.0
    %v5527 = vand.u32 %v5170, 4294901760
    %v5528 = vsub.f32 %v5170, %v5527
    %v5529 = vand.u32 %v5528, 4294901760
    %5530 = vmatmul.mubr.f32.gmra.mrb[0].mxu0 %v5529
    %v5531 = vpop.f32.mrb[0].mxu0
    %v5532 = vadd.f32 %v5451, %v5531
    %v5533 = vpop.f32.mrb[0].mxu0
    %5534 = vdwg.mxu0
    %5535 = vmatprep.subr.mxu0 0.0
    %v5536 = vand.u32 %v5160, 4294901760
    %v5537 = vsub.f32 %v5160, %v5536
    %v5538 = vand.u32 %v5537, 4294901760
    %5539 = vmatpush1.msra.mxu0 %v5538
    %5540 = vmatprep.subr.mxu0 0.0
    %v5541 = vand.u32 %v5161, 4294901760
    %v5542 = vsub.f32 %v5161, %v5541
    %v5543 = vand.u32 %v5542, 4294901760
    %5544 = vmatpush1.msra.mxu0 %v5543
    %5545 = vmatprep.subr.mxu0 0.0
    %v5546 = vand.u32 %v5162, 4294901760
    %v5547 = vsub.f32 %v5162, %v5546
    %v5548 = vand.u32 %v5547, 4294901760
    %5549 = vmatpush1.msra.mxu0 %v5548
    %5550 = vmatprep.subr.mxu0 0.0
    %v5551 = vand.u32 %v5163, 4294901760
    %v5552 = vsub.f32 %v5163, %v5551
    %v5553 = vand.u32 %v5552, 4294901760
    %5554 = vmatpush1.msra.mxu0 %v5553
    %5555 = vmatprep.subr.mxu0 0.0
    %v5556 = vand.u32 %v5164, 4294901760
    %v5557 = vsub.f32 %v5164, %v5556
    %v5558 = vand.u32 %v5557, 4294901760
    %5559 = vmatpush1.msra.mxu0 %v5558
    %5560 = vmatprep.subr.mxu0 0.0
    %v5561 = vand.u32 %v5165, 4294901760
    %v5562 = vsub.f32 %v5165, %v5561
    %v5563 = vand.u32 %v5562, 4294901760
    %5564 = vmatpush1.msra.mxu0 %v5563
    %5565 = vmatprep.subr.mxu0 0.0
    %v5566 = vand.u32 %v5166, 4294901760
    %v5567 = vsub.f32 %v5166, %v5566
    %v5568 = vand.u32 %v5567, 4294901760
    %5569 = vmatpush1.msra.mxu0 %v5568
    %5570 = vmatprep.subr.mxu0 0.0
    %v5571 = vand.u32 %v5167, 4294901760
    %v5572 = vsub.f32 %v5167, %v5571
    %v5573 = vand.u32 %v5572, 4294901760
    %5574 = vmatpush1.msra.mxu0 %v5573
    %5575 = vmatprep.subr.mxu0 0.0
    %5576 = vmatpush1.msra.mxu0 0.0
    %5577 = vmatprep.subr.mxu0 0.0
    %5578 = vmatpush1.msra.mxu0 0.0
    %5579 = vmatprep.subr.mxu0 0.0
    %5580 = vmatpush1.msra.mxu0 0.0
    %5581 = vmatprep.subr.mxu0 0.0
    %5582 = vmatpush1.msra.mxu0 0.0
    %5583 = vmatprep.subr.mxu0 0.0
    %5584 = vmatpush1.msra.mxu0 0.0
    %5585 = vmatprep.subr.mxu0 0.0
    %5586 = vmatpush1.msra.mxu0 0.0
    %5587 = vmatprep.subr.mxu0 0.0
    %5588 = vmatpush1.msra.mxu0 0.0
    %5589 = vmatprep.subr.mxu0 0.0
    %5590 = vmatpush1.msra.mxu0 0.0
    %5591 = vmatprep.subr.mxu0 0.0
    %5592 = vmatpush1.msra.mxu0 0.0
    %5593 = vmatprep.subr.mxu0 0.0
    %5594 = vmatpush1.msra.mxu0 0.0
    %5595 = vmatprep.subr.mxu0 0.0
    %5596 = vmatpush1.msra.mxu0 0.0
    %5597 = vmatprep.subr.mxu0 0.0
    %5598 = vmatpush1.msra.mxu0 0.0
    %5599 = vmatprep.subr.mxu0 0.0
    %5600 = vmatpush1.msra.mxu0 0.0
    %5601 = vmatprep.subr.mxu0 0.0
    %5602 = vmatpush1.msra.mxu0 0.0
    %5603 = vmatprep.subr.mxu0 0.0
    %5604 = vmatpush1.msra.mxu0 0.0
    %5605 = vmatprep.subr.mxu0 0.0
    %5606 = vmatpush1.msra.mxu0 0.0
    %5607 = vmatprep.subr.mxu0 0.0
    %5608 = vmatpush1.msra.mxu0 0.0
    %5609 = vmatprep.subr.mxu0 0.0
    %5610 = vmatpush1.msra.mxu0 0.0
    %5611 = vmatprep.subr.mxu0 0.0
    %5612 = vmatpush1.msra.mxu0 0.0
    %5613 = vmatprep.subr.mxu0 0.0
    %5614 = vmatpush1.msra.mxu0 0.0
    %5615 = vmatprep.subr.mxu0 0.0
    %5616 = vmatpush1.msra.mxu0 0.0
    %5617 = vmatprep.subr.mxu0 0.0
    %5618 = vmatpush1.msra.mxu0 0.0
    %5619 = vmatprep.subr.mxu0 0.0
    %5620 = vmatpush1.msra.mxu0 0.0
    %5621 = vmatprep.subr.mxu0 0.0
    %5622 = vmatpush1.msra.mxu0 0.0
    %5623 = vmatprep.mubr.f32.mxu0 0.0
    %v5624 = vand.u32 %v5170, 4294901760
    %5625 = vmatmul.mubr.f32.gmra.mrb[0].mxu0 %v5624
    %v5626 = vpop.f32.mrb[0].mxu0
    %v5627 = vadd.f32 %v5532, %v5626
    %v5628 = vpop.f32.mrb[0].mxu0
    %5629 = vdwg.mxu0
    %5630 = vmatprep.subr.mxu0 0.0
    %v5631 = vand.u32 %v5160, 4294901760
    %5632 = vmatpush1.msra.mxu0 %v5631
    %5633 = vmatprep.subr.mxu0 0.0
    %v5634 = vand.u32 %v5161, 4294901760
    %5635 = vmatpush1.msra.mxu0 %v5634
    %5636 = vmatprep.subr.mxu0 0.0
    %v5637 = vand.u32 %v5162, 4294901760
    %5638 = vmatpush1.msra.mxu0 %v5637
    %5639 = vmatprep.subr.mxu0 0.0
    %v5640 = vand.u32 %v5163, 4294901760
    %5641 = vmatpush1.msra.mxu0 %v5640
    %5642 = vmatprep.subr.mxu0 0.0
    %v5643 = vand.u32 %v5164, 4294901760
    %5644 = vmatpush1.msra.mxu0 %v5643
    %5645 = vmatprep.subr.mxu0 0.0
    %v5646 = vand.u32 %v5165, 4294901760
    %5647 = vmatpush1.msra.mxu0 %v5646
    %5648 = vmatprep.subr.mxu0 0.0
    %v5649 = vand.u32 %v5166, 4294901760
    %5650 = vmatpush1.msra.mxu0 %v5649
    %5651 = vmatprep.subr.mxu0 0.0
    %v5652 = vand.u32 %v5167, 4294901760
    %5653 = vmatpush1.msra.mxu0 %v5652
    %5654 = vmatprep.subr.mxu0 0.0
    %5655 = vmatpush1.msra.mxu0 0.0
    %5656 = vmatprep.subr.mxu0 0.0
    %5657 = vmatpush1.msra.mxu0 0.0
    %5658 = vmatprep.subr.mxu0 0.0
    %5659 = vmatpush1.msra.mxu0 0.0
    %5660 = vmatprep.subr.mxu0 0.0
    %5661 = vmatpush1.msra.mxu0 0.0
    %5662 = vmatprep.subr.mxu0 0.0
    %5663 = vmatpush1.msra.mxu0 0.0
    %5664 = vmatprep.subr.mxu0 0.0
    %5665 = vmatpush1.msra.mxu0 0.0
    %5666 = vmatprep.subr.mxu0 0.0
    %5667 = vmatpush1.msra.mxu0 0.0
    %5668 = vmatprep.subr.mxu0 0.0
    %5669 = vmatpush1.msra.mxu0 0.0
    %5670 = vmatprep.subr.mxu0 0.0
    %5671 = vmatpush1.msra.mxu0 0.0
    %5672 = vmatprep.subr.mxu0 0.0
    %5673 = vmatpush1.msra.mxu0 0.0
    %5674 = vmatprep.subr.mxu0 0.0
    %5675 = vmatpush1.msra.mxu0 0.0
    %5676 = vmatprep.subr.mxu0 0.0
    %5677 = vmatpush1.msra.mxu0 0.0
    %5678 = vmatprep.subr.mxu0 0.0
    %5679 = vmatpush1.msra.mxu0 0.0
    %5680 = vmatprep.subr.mxu0 0.0
    %5681 = vmatpush1.msra.mxu0 0.0
    %5682 = vmatprep.subr.mxu0 0.0
    %5683 = vmatpush1.msra.mxu0 0.0
    %5684 = vmatprep.subr.mxu0 0.0
    %5685 = vmatpush1.msra.mxu0 0.0
    %5686 = vmatprep.subr.mxu0 0.0
    %5687 = vmatpush1.msra.mxu0 0.0
    %5688 = vmatprep.subr.mxu0 0.0
    %5689 = vmatpush1.msra.mxu0 0.0
    %5690 = vmatprep.subr.mxu0 0.0
    %5691 = vmatpush1.msra.mxu0 0.0
    %5692 = vmatprep.subr.mxu0 0.0
    %5693 = vmatpush1.msra.mxu0 0.0
    %5694 = vmatprep.subr.mxu0 0.0
    %5695 = vmatpush1.msra.mxu0 0.0
    %5696 = vmatprep.subr.mxu0 0.0
    %5697 = vmatpush1.msra.mxu0 0.0
    %5698 = vmatprep.subr.mxu0 0.0
    %5699 = vmatpush1.msra.mxu0 0.0
    %5700 = vmatprep.subr.mxu0 0.0
    %5701 = vmatpush1.msra.mxu0 0.0
    %5702 = vmatprep.mubr.f32.mxu0 0.0
    %v5703 = vand.u32 %v5170, 4294901760
    %5704 = vmatmul.mubr.f32.gmra.mrb[0].mxu0 %v5703
    %v5705 = vpop.f32.mrb[0].mxu0
    %v5706 = vadd.f32 %v5627, %v5705
    %v5707 = vpop.f32.mrb[0].mxu0
    %5708 = vdwg.mxu0
    %v5709 = vsel %vm101, %v5706, 0.0
    %5710 = vadd.xlane.f32.xlu0 %v5709
    %v5711 = vpop.xlane.xlu0 %5710
    %v5712 = vmul.f32 %v5711, %v4649
    %v5713 = vsub.f32 %v5706, %v5712
    %v5714 = vmul.f32 %v5713, %v5713
    %v5715 = vsel %vm101, %v5714, 0.0
    %5716 = vadd.xlane.f32.xlu0 %v5715
    %v5717 = vpop.xlane.xlu0 %5716
    %v5718 = vmul.f32 %v5717, %v4649
    %v5719 = vadd.f32 %v5718, 1e-05
    %v5720 = vrsqrt.pop %v5719
    %v5721 = vmul.f32 %v5713, %v5720
    %5722 = vst.msk [vmem:[#allocation2] sm:$0xff] %vm101, %v5721
    // Predicated region
    $region66: #{tpu_custom_call.1} parent=1 // pred_check
      _
    $region67: #{tpu_custom_call.1} parent=1 // pred_check_branch
      %5724 = sbr.rel (0) target = $region69
    $region68: #{tpu_custom_call.1} parent=1 // pred_region
      %s5726 = ssub.s32 128, 128
      %5727 = vsyncadd [#allocation3], %s5726
      %s5729 = sshll.u32 [#allocation2], 4
      %s5730 = int_to_ptr.vmem [resolvable:$true] %s5729
      %5732 = dma.vmem_to_hbm [thread:$0]  %s5730, 128, %s16, [#allocation3]
    $region69: #{tpu_custom_call.1} parent=1 // pred_fallthru
      _
    // Predicated region
    $region70: #{tpu_custom_call.1} parent=1 // pred_check
      _
    $region71: #{tpu_custom_call.1} parent=1 // pred_check_branch
      %5734 = sbr.rel (0) target = $region73
    $region72: #{tpu_custom_call.1} parent=1 // pred_region
      %5735 = dma.done [#allocation3], 128
    $region73: #{tpu_custom_call.1} parent=1 // pred_fallthru
      _
    %5736 = vsyncpa [#allocation3], 1

</llo_original>
